<compile_context>
chip_gen: v7x
topology: tpu7x:2x2x1
jax: 0.10.0
libtpu: 0.0.40
codegen_flags: <defaults>
</compile_context>

<pallas_src>
import functools

import jax
import jax.numpy as jnp
from jax.experimental import pallas as pl
from jax.experimental.pallas import tpu as pltpu

_TABLE_ROWS = 128  # 105 atom types padded up to 128 (one-hot lane width)


def _silu(v):
    return v * jax.nn.sigmoid(v)


def embedding_block_kernel(
    ai_ref,     # [TE, 1]  int32 atom type of edge source  (x[i])
    aj_ref,     # [TE, 1]  int32 atom type of edge target  (x[j])
    pb_ref,     # [TE, D]  pair_basis tile
    table_ref,  # [2*128, H]  [emb_w @ Wi (padded) ; emb_w @ Wj (padded)]
    wp_ref,     # [D, H]   pair_network Linear weight (in x out)
    bp_ref,     # [1, H]   pair_network Linear bias
    wpp_ref,    # [H, H]   embedding_network weight slice acting on pair feats
    be_ref,     # [1, H]   embedding_network bias
    o_ref,      # [TE, H]  output tile
):
    te = ai_ref.shape[0]
    two_k = table_ref.shape[0]           # 256
    half = two_k // 2                    # 128

    # --- embedding-network contribution of x[i], x[j] via one-hot MXU gather
    #   one_hot(x[i]) @ (emb_w @ Wi)  +  one_hot(x[j]) @ (emb_w @ Wj)
    # fused into a single [TE, 256] @ [256, H] matmul.
    lane = jax.lax.broadcasted_iota(jnp.int32, (te, two_k), 1)
    ai = ai_ref[...]                     # [TE, 1]
    aj = aj_ref[...]                     # [TE, 1]
    onehot = jnp.logical_or(lane == ai, lane == (aj + half)).astype(jnp.float32)
    acc = jnp.dot(onehot, table_ref[...], preferred_element_type=jnp.float32)

    # --- pair_network: Linear + SiLU (kept in f32 throughout)
    pair = jnp.dot(pb_ref[...], wp_ref[...], preferred_element_type=jnp.float32)
    pair = _silu(pair + bp_ref[...])

    # --- embedding_network pair-slice matmul + bias + SiLU
    acc = acc + jnp.dot(pair, wpp_ref[...], preferred_element_type=jnp.float32)
    acc = _silu(acc + be_ref[...])

    o_ref[...] = acc.astype(o_ref.dtype)


@functools.partial(jax.jit, static_argnames=("tile_e",))
def embedding_block_forward(x, pair_basis, i, j, params, tile_e=512):
    """Pallas-backed EmbeddingBlock forward.

    x:          int32 [N]   atomic numbers (0..104)
    pair_basis: f32   [E, D]
    i, j:       int32 [E]   edge endpoint indices into x
    """
    emb_w = params["emb_w"]        # [105, H]
    wp = params["pair_w"]          # [D, H]
    bp = params["pair_b"]          # [H]
    we = params["emb_net_w"]       # [3H, H]
    be = params["emb_net_b"]       # [H]

    H = emb_w.shape[1]
    E, D = pair_basis.shape
    n_types = emb_w.shape[0]       # 105

    # --- one-time algebraic precompute (tiny 105xHxH matmuls, done by XLA):
    #     x_emb[i] @ Wi == (emb_w @ Wi)[x[i]]
    wi, wj, wpp = we[:H], we[H:2 * H], we[2 * H:]
    table_i = emb_w @ wi                                   # [105, H]
    table_j = emb_w @ wj                                   # [105, H]
    pad_t = _TABLE_ROWS - n_types
    table = jnp.concatenate(
        [jnp.pad(table_i, ((0, pad_t), (0, 0))),
         jnp.pad(table_j, ((0, pad_t), (0, 0)))], axis=0)  # [256, H]

    # --- per-edge atom types (4 B/edge int gathers; the only edge-embedding
    #     data crossing HBM).
    ai = jnp.take(x, i, axis=0).astype(jnp.int32)          # [E]
    aj = jnp.take(x, j, axis=0).astype(jnp.int32)          # [E]

    # --- ragged-tail handling: pad E up to a multiple of tile_e.
    n_tiles = pl.cdiv(E, tile_e)
    e_pad = n_tiles * tile_e
    pad_e = e_pad - E
    if pad_e:
        pair_basis = jnp.pad(pair_basis, ((0, pad_e), (0, 0)))
        ai = jnp.pad(ai, (0, pad_e))
        aj = jnp.pad(aj, (0, pad_e))
    ai2 = ai.reshape(e_pad, 1)
    aj2 = aj.reshape(e_pad, 1)
    bp2 = bp.reshape(1, H)
    be2 = be.reshape(1, H)

    edge_h = pl.BlockSpec((tile_e, H), lambda e: (e, 0))
    edge_d = pl.BlockSpec((tile_e, D), lambda e: (e, 0))
    edge_i = pl.BlockSpec((tile_e, 1), lambda e: (e, 0))
    full = lambda shape: pl.BlockSpec(shape, lambda e: (0, 0))

    out = pl.pallas_call(
        embedding_block_kernel,
        out_shape=jax.ShapeDtypeStruct((e_pad, H), pair_basis.dtype),
        grid_spec=pltpu.PrefetchScalarGridSpec(
            num_scalar_prefetch=0,
            grid=(n_tiles,),
            in_specs=[
                edge_i,                       # ai
                edge_i,                       # aj
                edge_d,                       # pair_basis
                full((2 * _TABLE_ROWS, H)),   # fused precomputed tables
                full((D, H)),                 # pair W
                full((1, H)),                 # pair b
                full((H, H)),                 # Wpair (embedding_network slice)
                full((1, H)),                 # emb_net b
            ],
            out_specs=edge_h,
        ),
        compiler_params=pltpu.CompilerParams(
            dimension_semantics=("parallel",)),
    )(ai2, aj2, pair_basis, table, wp, bp2, wpp, be2)

    return out[:E]


def reference_forward(x, pair_basis, i, j, params):
    """Plain-JAX reference identical to the PyTorch module forward."""
    x_emb = jnp.take(params["emb_w"], x, axis=0)
    pair = _silu(pair_basis @ params["pair_w"] + params["pair_b"])
    inp = jnp.concatenate([x_emb[i], x_emb[j], pair], axis=-1)
    return _silu(inp @ params["emb_net_w"] + params["emb_net_b"])


def init_params(key, output_dim, hidden_channels):
    """Deterministic synthetic parameters (weights stored as [in, out])."""
    k1, k2, k3, k4, k5 = jax.random.split(key, 5)
    H, D = hidden_channels, output_dim
    return {
        "emb_w": jax.random.normal(k1, (105, H), jnp.float32) * 0.1,
        "pair_w": jax.random.normal(k2, (D, H), jnp.float32) * 0.1,
        "pair_b": jax.random.normal(k3, (H,), jnp.float32) * 0.1,
        "emb_net_w": jax.random.normal(k4, (3 * H, H), jnp.float32) * 0.1,
        "emb_net_b": jax.random.normal(k5, (H,), jnp.float32) * 0.1,
    }


if __name__ == "__main__":
    key = jax.random.PRNGKey(0)
    H = 32            # hidden_channels
    D = 16            # output_dim (pair basis size)
    N = 10            # number of nodes (atoms)
    E = 16            # number of edges (ragged: not a multiple of tile_e)

    kp, kx, kb, ki, kj = jax.random.split(key, 5)
    params = init_params(kp, output_dim=D, hidden_channels=H)

    x = jax.random.randint(kx, (N,), 0, 105, dtype=jnp.int32)
    pair_basis = jax.random.normal(kb, (E, D), jnp.float32)
    i_idx = jax.random.randint(ki, (E,), 0, N, dtype=jnp.int32)
    j_idx = jax.random.randint(kj, (E,), 0, N, dtype=jnp.int32)

    out = embedding_block_forward(x, pair_basis, i_idx, j_idx, params)
    out = jax.block_until_ready(out)

    ref = reference_forward(x, pair_basis, i_idx, j_idx, params)
    assert out.shape == (E, H)
    assert jnp.allclose(out, ref, atol=1e-5, rtol=1e-5), "mismatch vs reference"

    print("KERNEL_OK")
</pallas_src>

<mosaic_0001>
module attributes {stable_mosaic.version = 11 : i64} {
  func.func @embedding_block_kernel(%arg0: i32, %arg1: memref<512x1xi32, #tpu.memory_space<vmem>>, %arg2: memref<512x1xi32, #tpu.memory_space<vmem>>, %arg3: memref<512x16xf32, #tpu.memory_space<vmem>>, %arg4: memref<256x32xf32, #tpu.memory_space<vmem>>, %arg5: memref<16x32xf32, #tpu.memory_space<vmem>>, %arg6: memref<1x32xf32, #tpu.memory_space<vmem>>, %arg7: memref<32x32xf32, #tpu.memory_space<vmem>>, %arg8: memref<1x32xf32, #tpu.memory_space<vmem>>, %arg9: memref<512x32xf32, #tpu.memory_space<vmem>>) attributes {dimension_semantics = [#tpu.dimension_semantics<parallel>], iteration_bounds = array<i64: 1>, scalar_prefetch = 0 : i64, scratch_operands = 0 : i64, tpu.core_type = #tpu.core_type<tc>, window_params = [{transform_indices = @transform_0, window_bounds = array<i64: 512, 1>}, {transform_indices = @transform_1, window_bounds = array<i64: 512, 1>}, {transform_indices = @transform_2, window_bounds = array<i64: 512, 16>}, {pipeline_mode = #tpu.pipeline_mode<synchronous>, transform_indices = @transform_3, window_bounds = array<i64: 256, 32>}, {pipeline_mode = #tpu.pipeline_mode<synchronous>, transform_indices = @transform_4, window_bounds = array<i64: 16, 32>}, {pipeline_mode = #tpu.pipeline_mode<synchronous>, transform_indices = @transform_5, window_bounds = array<i64: 1, 32>}, {pipeline_mode = #tpu.pipeline_mode<synchronous>, transform_indices = @transform_6, window_bounds = array<i64: 32, 32>}, {pipeline_mode = #tpu.pipeline_mode<synchronous>, transform_indices = @transform_7, window_bounds = array<i64: 1, 32>}, {transform_indices = @transform_8, window_bounds = array<i64: 512, 32>}]} {
    %0 = tpu.iota {dimensions = array<i32: 1>} : vector<512x256xi32>
    %c0 = arith.constant 0 : index
    %c0_0 = arith.constant 0 : index
    %1 = vector.load %arg1[%c0, %c0_0] : memref<512x1xi32, #tpu.memory_space<vmem>>, vector<512x1xi32>
    %c0_1 = arith.constant 0 : index
    %c0_2 = arith.constant 0 : index
    %2 = vector.load %arg2[%c0_1, %c0_2] : memref<512x1xi32, #tpu.memory_space<vmem>>, vector<512x1xi32>
    %3 = vector.broadcast %1 : vector<512x1xi32> to vector<512x256xi32>
    %4 = arith.cmpi eq, %0, %3 : vector<512x256xi32>
    %c128_i32 = arith.constant 128 : i32
    %5 = vector.broadcast %c128_i32 : i32 to vector<512x1xi32>
    %6 = arith.addi %2, %5 : vector<512x1xi32>
    %7 = vector.broadcast %6 : vector<512x1xi32> to vector<512x256xi32>
    %8 = arith.cmpi eq, %0, %7 : vector<512x256xi32>
    %9 = arith.ori %4, %8 : vector<512x256xi1>
    %10 = arith.extui %9 : vector<512x256xi1> to vector<512x256xi32>
    %11 = arith.sitofp %10 : vector<512x256xi32> to vector<512x256xf32>
    %c0_3 = arith.constant 0 : index
    %c0_4 = arith.constant 0 : index
    %12 = vector.load %arg4[%c0_3, %c0_4] : memref<256x32xf32, #tpu.memory_space<vmem>>, vector<256x32xf32>
    %cst = arith.constant dense<0.000000e+00> : vector<512x32xf32>
    %13 = tpu.matmul %11, %12, %cst {dimension_numbers = #tpu.dot_dimension_numbers<[1], [0], [0], [1], [0, 0, 1, 1], [], []>} : vector<512x256xf32>, vector<256x32xf32>, vector<512x32xf32> -> vector<512x32xf32>
    %c0_5 = arith.constant 0 : index
    %c0_6 = arith.constant 0 : index
    %14 = vector.load %arg3[%c0_5, %c0_6] : memref<512x16xf32, #tpu.memory_space<vmem>>, vector<512x16xf32>
    %c0_7 = arith.constant 0 : index
    %c0_8 = arith.constant 0 : index
    %15 = vector.load %arg5[%c0_7, %c0_8] : memref<16x32xf32, #tpu.memory_space<vmem>>, vector<16x32xf32>
    %cst_9 = arith.constant dense<0.000000e+00> : vector<512x32xf32>
    %16 = tpu.matmul %14, %15, %cst_9 {dimension_numbers = #tpu.dot_dimension_numbers<[1], [0], [0], [1], [0, 0, 1, 1], [], []>} : vector<512x16xf32>, vector<16x32xf32>, vector<512x32xf32> -> vector<512x32xf32>
    %c0_10 = arith.constant 0 : index
    %c0_11 = arith.constant 0 : index
    %17 = vector.load %arg6[%c0_10, %c0_11] : memref<1x32xf32, #tpu.memory_space<vmem>>, vector<1x32xf32>
    %18 = vector.broadcast %17 : vector<1x32xf32> to vector<512x32xf32>
    %19 = arith.addf %16, %18 : vector<512x32xf32>
    %20 = arith.negf %19 : vector<512x32xf32>
    %21 = math.exp %20 : vector<512x32xf32>
    %cst_12 = arith.constant 1.000000e+00 : f32
    %22 = vector.broadcast %cst_12 : f32 to vector<512x32xf32>
    %23 = arith.addf %22, %21 : vector<512x32xf32>
    %24 = arith.divf %22, %23 : vector<512x32xf32>
    %25 = arith.mulf %19, %24 : vector<512x32xf32>
    %c0_13 = arith.constant 0 : index
    %c0_14 = arith.constant 0 : index
    %26 = vector.load %arg7[%c0_13, %c0_14] : memref<32x32xf32, #tpu.memory_space<vmem>>, vector<32x32xf32>
    %cst_15 = arith.constant dense<0.000000e+00> : vector<512x32xf32>
    %27 = tpu.matmul %25, %26, %cst_15 {dimension_numbers = #tpu.dot_dimension_numbers<[1], [0], [0], [1], [0, 0, 1, 1], [], []>} : vector<512x32xf32>, vector<32x32xf32>, vector<512x32xf32> -> vector<512x32xf32>
    %28 = arith.addf %13, %27 : vector<512x32xf32>
    %c0_16 = arith.constant 0 : index
    %c0_17 = arith.constant 0 : index
    %29 = vector.load %arg8[%c0_16, %c0_17] : memref<1x32xf32, #tpu.memory_space<vmem>>, vector<1x32xf32>
    %30 = vector.broadcast %29 : vector<1x32xf32> to vector<512x32xf32>
    %31 = arith.addf %28, %30 : vector<512x32xf32>
    %32 = arith.negf %31 : vector<512x32xf32>
    %33 = math.exp %32 : vector<512x32xf32>
    %cst_18 = arith.constant 1.000000e+00 : f32
    %34 = vector.broadcast %cst_18 : f32 to vector<512x32xf32>
    %35 = arith.addf %34, %33 : vector<512x32xf32>
    %36 = arith.divf %34, %35 : vector<512x32xf32>
    %37 = arith.mulf %31, %36 : vector<512x32xf32>
    %c0_19 = arith.constant 0 : index
    %c0_20 = arith.constant 0 : index
    %38 = vector.load %arg9[%c0_19, %c0_20] : memref<512x32xf32, #tpu.memory_space<vmem>>, vector<512x32xf32>
    tpu.vector_store %arg9[%c0_19, %c0_20], %37 {strides = array<i32>} : memref<512x32xf32, #tpu.memory_space<vmem>>, vector<512x32xf32>,
    return
  }
  func.func @transform_0(%arg0: i32) -> (i32, i32) {
    %c0_i32 = arith.constant 0 : i32
    %c0_i32_0 = arith.constant 0 : i32
    return %arg0, %c0_i32 : i32, i32
  }
  func.func @transform_1(%arg0: i32) -> (i32, i32) {
    %c0_i32 = arith.constant 0 : i32
    %c0_i32_0 = arith.constant 0 : i32
    return %arg0, %c0_i32 : i32, i32
  }
  func.func @transform_2(%arg0: i32) -> (i32, i32) {
    %c0_i32 = arith.constant 0 : i32
    %c0_i32_0 = arith.constant 0 : i32
    return %arg0, %c0_i32 : i32, i32
  }
  func.func @transform_3(%arg0: i32) -> (i32, i32) {
    %c0_i32 = arith.constant 0 : i32
    %c0_i32_0 = arith.constant 0 : i32
    %c0_i32_1 = arith.constant 0 : i32
    return %c0_i32, %c0_i32_0 : i32, i32
  }
  func.func @transform_4(%arg0: i32) -> (i32, i32) {
    %c0_i32 = arith.constant 0 : i32
    %c0_i32_0 = arith.constant 0 : i32
    %c0_i32_1 = arith.constant 0 : i32
    return %c0_i32, %c0_i32_0 : i32, i32
  }
  func.func @transform_5(%arg0: i32) -> (i32, i32) {
    %c0_i32 = arith.constant 0 : i32
    %c0_i32_0 = arith.constant 0 : i32
    %c0_i32_1 = arith.constant 0 : i32
    return %c0_i32, %c0_i32_0 : i32, i32
  }
  func.func @transform_6(%arg0: i32) -> (i32, i32) {
    %c0_i32 = arith.constant 0 : i32
    %c0_i32_0 = arith.constant 0 : i32
    %c0_i32_1 = arith.constant 0 : i32
    return %c0_i32, %c0_i32_0 : i32, i32
  }
  func.func @transform_7(%arg0: i32) -> (i32, i32) {
    %c0_i32 = arith.constant 0 : i32
    %c0_i32_0 = arith.constant 0 : i32
    %c0_i32_1 = arith.constant 0 : i32
    return %c0_i32, %c0_i32_0 : i32, i32
  }
  func.func @transform_8(%arg0: i32) -> (i32, i32) {
    %c0_i32 = arith.constant 0 : i32
    %c0_i32_0 = arith.constant 0 : i32
    return %arg0, %c0_i32 : i32, i32
  }
}

</mosaic_0001>

<llo_original>
// kernel: embedding_block_forward.1
$region0: #{embedding_block_forward.1}
  #allocation0 [shape = 'u32[]', space=smem, size = 0x4, offset = 0x4, fixed_abs, tag = 'smem constant byte address 0x4 - core index']
  #allocation1 [shape = 'u32[144,128]{1,0:T(1,128)}', space=vmem, size = 0x12000, scoped, tag = 'internal scratch']
  %s0 = inlined_call_operand.vmem [shape: s32[512,1], index: 0, kind: input, shape index: {}]
  %s1 = inlined_call_operand.vmem [shape: s32[512,1], index: 1, kind: input, shape index: {}]
  %s2 = inlined_call_operand.vmem [shape: f32[512,16], index: 2, kind: input, shape index: {}]
  %s3 = inlined_call_operand.vmem [shape: f32[256,32], index: 3, kind: input, shape index: {}]
  %s4 = inlined_call_operand.vmem [shape: f32[16,32], index: 4, kind: input, shape index: {}]
  %s5 = inlined_call_operand.vmem [shape: f32[1,32], index: 5, kind: input, shape index: {}]
  %s6 = inlined_call_operand.vmem [shape: f32[32,32], index: 6, kind: input, shape index: {}]
  %s7 = inlined_call_operand.vmem [shape: f32[1,32], index: 7, kind: input, shape index: {}]
  %s8 = inlined_call_operand.vmem [shape: f32[512,32], index: 8, kind: output, shape index: {}]
  %s9 = sld [smem:[#allocation0]]
  $region42: #{embedding_block_forward.1} parent=0
    _
  %s11 = ssub.s32 1, %s9
  %s12 = scalar_select 0, %s11, %s9
  // Predicated region
  $region2: #{embedding_block_forward.1} parent=0 // pred_check
    _
  $region3: #{embedding_block_forward.1} parent=0 // pred_check_branch
    %14 = sbr.rel (0) target = $region5
  $region4: #{embedding_block_forward.1} parent=0 // pred_region
    _
  $region5: #{embedding_block_forward.1} parent=0 // pred_fallthru
    _
  // Predicated region
  $region6: #{embedding_block_forward.1} parent=0 // pred_check
    _
  $region7: #{embedding_block_forward.1} parent=0 // pred_check_branch
    %16 = sbr.rel (0) target = $region9
  $region8: #{embedding_block_forward.1} parent=0 // pred_region
    _
  $region9: #{embedding_block_forward.1} parent=0 // pred_fallthru
    _
  // Predicated region
  $region10: #{embedding_block_forward.1} parent=0 // pred_check
    _
  $region11: #{embedding_block_forward.1} parent=0 // pred_check_branch
    %18 = sbr.rel (0) target = $region13
  $region12: #{embedding_block_forward.1} parent=0 // pred_region
    _
  $region13: #{embedding_block_forward.1} parent=0 // pred_fallthru
    _
  // Predicated region
  $region14: #{embedding_block_forward.1} parent=0 // pred_check
    _
  $region15: #{embedding_block_forward.1} parent=0 // pred_check_branch
    %20 = sbr.rel (0) target = $region17
  $region16: #{embedding_block_forward.1} parent=0 // pred_region
    _
  $region17: #{embedding_block_forward.1} parent=0 // pred_fallthru
    _
  // Predicated region
  $region18: #{embedding_block_forward.1} parent=0 // pred_check
    _
  $region19: #{embedding_block_forward.1} parent=0 // pred_check_branch
    %22 = sbr.rel (0) target = $region21
  $region20: #{embedding_block_forward.1} parent=0 // pred_region
    _
  $region21: #{embedding_block_forward.1} parent=0 // pred_fallthru
    _
  // Predicated region
  $region22: #{embedding_block_forward.1} parent=0 // pred_check
    _
  $region23: #{embedding_block_forward.1} parent=0 // pred_check_branch
    %24 = sbr.rel (0) target = $region25
  $region24: #{embedding_block_forward.1} parent=0 // pred_region
    _
  $region25: #{embedding_block_forward.1} parent=0 // pred_fallthru
    _
  // Predicated region
  $region26: #{embedding_block_forward.1} parent=0 // pred_check
    _
  $region27: #{embedding_block_forward.1} parent=0 // pred_check_branch
    %26 = sbr.rel (0) target = $region29
  $region28: #{embedding_block_forward.1} parent=0 // pred_region
    _
  $region29: #{embedding_block_forward.1} parent=0 // pred_fallthru
    _
  // Predicated region
  $region30: #{embedding_block_forward.1} parent=0 // pred_check
    _
  $region31: #{embedding_block_forward.1} parent=0 // pred_check_branch
    %28 = sbr.rel (0) target = $region33
  $region32: #{embedding_block_forward.1} parent=0 // pred_region
    _
  $region33: #{embedding_block_forward.1} parent=0 // pred_fallthru
    _
  %v29 = vlaneseq
  %v30 = vand.u32 %v29, 127
  %v31 = vadd.s32 %v30, 128
  %v32 = vld [vmem:[%s0] sm:$0xff]
  %v33 = vld [vmem:[%s0 + $0x8] sm:$0xff]
  %v34 = vld [vmem:[%s0 + $0x10] sm:$0xff]
  %v35 = vld [vmem:[%s0 + $0x18] sm:$0xff]
  %v36 = vld [vmem:[%s0 + $0x20] sm:$0xff]
  %v37 = vld [vmem:[%s0 + $0x28] sm:$0xff]
  %v38 = vld [vmem:[%s0 + $0x30] sm:$0xff]
  %v39 = vld [vmem:[%s0 + $0x38] sm:$0xff]
  %v40 = vld [vmem:[%s0 + $0x40] sm:$0xff]
  %v41 = vld [vmem:[%s0 + $0x48] sm:$0xff]
  %v42 = vld [vmem:[%s0 + $0x50] sm:$0xff]
  %v43 = vld [vmem:[%s0 + $0x58] sm:$0xff]
  %v44 = vld [vmem:[%s0 + $0x60] sm:$0xff]
  %v45 = vld [vmem:[%s0 + $0x68] sm:$0xff]
  %v46 = vld [vmem:[%s0 + $0x70] sm:$0xff]
  %v47 = vld [vmem:[%s0 + $0x78] sm:$0xff]
  %v48 = vld [vmem:[%s0 + $0x80] sm:$0xff]
  %v49 = vld [vmem:[%s0 + $0x88] sm:$0xff]
  %v50 = vld [vmem:[%s0 + $0x90] sm:$0xff]
  %v51 = vld [vmem:[%s0 + $0x98] sm:$0xff]
  %v52 = vld [vmem:[%s0 + $0xa0] sm:$0xff]
  %v53 = vld [vmem:[%s0 + $0xa8] sm:$0xff]
  %v54 = vld [vmem:[%s0 + $0xb0] sm:$0xff]
  %v55 = vld [vmem:[%s0 + $0xb8] sm:$0xff]
  %v56 = vld [vmem:[%s0 + $0xc0] sm:$0xff]
  %v57 = vld [vmem:[%s0 + $0xc8] sm:$0xff]
  %v58 = vld [vmem:[%s0 + $0xd0] sm:$0xff]
  %v59 = vld [vmem:[%s0 + $0xd8] sm:$0xff]
  %v60 = vld [vmem:[%s0 + $0xe0] sm:$0xff]
  %v61 = vld [vmem:[%s0 + $0xe8] sm:$0xff]
  %v62 = vld [vmem:[%s0 + $0xf0] sm:$0xff]
  %v63 = vld [vmem:[%s0 + $0xf8] sm:$0xff]
  %v64 = vld [vmem:[%s0 + $0x100] sm:$0xff]
  %v65 = vld [vmem:[%s0 + $0x108] sm:$0xff]
  %v66 = vld [vmem:[%s0 + $0x110] sm:$0xff]
  %v67 = vld [vmem:[%s0 + $0x118] sm:$0xff]
  %v68 = vld [vmem:[%s0 + $0x120] sm:$0xff]
  %v69 = vld [vmem:[%s0 + $0x128] sm:$0xff]
  %v70 = vld [vmem:[%s0 + $0x130] sm:$0xff]
  %v71 = vld [vmem:[%s0 + $0x138] sm:$0xff]
  %v72 = vld [vmem:[%s0 + $0x140] sm:$0xff]
  %v73 = vld [vmem:[%s0 + $0x148] sm:$0xff]
  %v74 = vld [vmem:[%s0 + $0x150] sm:$0xff]
  %v75 = vld [vmem:[%s0 + $0x158] sm:$0xff]
  %v76 = vld [vmem:[%s0 + $0x160] sm:$0xff]
  %v77 = vld [vmem:[%s0 + $0x168] sm:$0xff]
  %v78 = vld [vmem:[%s0 + $0x170] sm:$0xff]
  %v79 = vld [vmem:[%s0 + $0x178] sm:$0xff]
  %v80 = vld [vmem:[%s0 + $0x180] sm:$0xff]
  %v81 = vld [vmem:[%s0 + $0x188] sm:$0xff]
  %v82 = vld [vmem:[%s0 + $0x190] sm:$0xff]
  %v83 = vld [vmem:[%s0 + $0x198] sm:$0xff]
  %v84 = vld [vmem:[%s0 + $0x1a0] sm:$0xff]
  %v85 = vld [vmem:[%s0 + $0x1a8] sm:$0xff]
  %v86 = vld [vmem:[%s0 + $0x1b0] sm:$0xff]
  %v87 = vld [vmem:[%s0 + $0x1b8] sm:$0xff]
  %v88 = vld [vmem:[%s0 + $0x1c0] sm:$0xff]
  %v89 = vld [vmem:[%s0 + $0x1c8] sm:$0xff]
  %v90 = vld [vmem:[%s0 + $0x1d0] sm:$0xff]
  %v91 = vld [vmem:[%s0 + $0x1d8] sm:$0xff]
  %v92 = vld [vmem:[%s0 + $0x1e0] sm:$0xff]
  %v93 = vld [vmem:[%s0 + $0x1e8] sm:$0xff]
  %v94 = vld [vmem:[%s0 + $0x1f0] sm:$0xff]
  %v95 = vld [vmem:[%s0 + $0x1f8] sm:$0xff]
  %v96 = vld [vmem:[%s1] sm:$0xff]
  %v97 = vld [vmem:[%s1 + $0x8] sm:$0xff]
  %v98 = vld [vmem:[%s1 + $0x10] sm:$0xff]
  %v99 = vld [vmem:[%s1 + $0x18] sm:$0xff]
  %v100 = vld [vmem:[%s1 + $0x20] sm:$0xff]
  %v101 = vld [vmem:[%s1 + $0x28] sm:$0xff]
  %v102 = vld [vmem:[%s1 + $0x30] sm:$0xff]
  %v103 = vld [vmem:[%s1 + $0x38] sm:$0xff]
  %v104 = vld [vmem:[%s1 + $0x40] sm:$0xff]
  %v105 = vld [vmem:[%s1 + $0x48] sm:$0xff]
  %v106 = vld [vmem:[%s1 + $0x50] sm:$0xff]
  %v107 = vld [vmem:[%s1 + $0x58] sm:$0xff]
  %v108 = vld [vmem:[%s1 + $0x60] sm:$0xff]
  %v109 = vld [vmem:[%s1 + $0x68] sm:$0xff]
  %v110 = vld [vmem:[%s1 + $0x70] sm:$0xff]
  %v111 = vld [vmem:[%s1 + $0x78] sm:$0xff]
  %v112 = vld [vmem:[%s1 + $0x80] sm:$0xff]
  %v113 = vld [vmem:[%s1 + $0x88] sm:$0xff]
  %v114 = vld [vmem:[%s1 + $0x90] sm:$0xff]
  %v115 = vld [vmem:[%s1 + $0x98] sm:$0xff]
  %v116 = vld [vmem:[%s1 + $0xa0] sm:$0xff]
  %v117 = vld [vmem:[%s1 + $0xa8] sm:$0xff]
  %v118 = vld [vmem:[%s1 + $0xb0] sm:$0xff]
  %v119 = vld [vmem:[%s1 + $0xb8] sm:$0xff]
  %v120 = vld [vmem:[%s1 + $0xc0] sm:$0xff]
  %v121 = vld [vmem:[%s1 + $0xc8] sm:$0xff]
  %v122 = vld [vmem:[%s1 + $0xd0] sm:$0xff]
  %v123 = vld [vmem:[%s1 + $0xd8] sm:$0xff]
  %v124 = vld [vmem:[%s1 + $0xe0] sm:$0xff]
  %v125 = vld [vmem:[%s1 + $0xe8] sm:$0xff]
  %v126 = vld [vmem:[%s1 + $0xf0] sm:$0xff]
  %v127 = vld [vmem:[%s1 + $0xf8] sm:$0xff]
  %v128 = vld [vmem:[%s1 + $0x100] sm:$0xff]
  %v129 = vld [vmem:[%s1 + $0x108] sm:$0xff]
  %v130 = vld [vmem:[%s1 + $0x110] sm:$0xff]
  %v131 = vld [vmem:[%s1 + $0x118] sm:$0xff]
  %v132 = vld [vmem:[%s1 + $0x120] sm:$0xff]
  %v133 = vld [vmem:[%s1 + $0x128] sm:$0xff]
  %v134 = vld [vmem:[%s1 + $0x130] sm:$0xff]
  %v135 = vld [vmem:[%s1 + $0x138] sm:$0xff]
  %v136 = vld [vmem:[%s1 + $0x140] sm:$0xff]
  %v137 = vld [vmem:[%s1 + $0x148] sm:$0xff]
  %v138 = vld [vmem:[%s1 + $0x150] sm:$0xff]
  %v139 = vld [vmem:[%s1 + $0x158] sm:$0xff]
  %v140 = vld [vmem:[%s1 + $0x160] sm:$0xff]
  %v141 = vld [vmem:[%s1 + $0x168] sm:$0xff]
  %v142 = vld [vmem:[%s1 + $0x170] sm:$0xff]
  %v143 = vld [vmem:[%s1 + $0x178] sm:$0xff]
  %v144 = vld [vmem:[%s1 + $0x180] sm:$0xff]
  %v145 = vld [vmem:[%s1 + $0x188] sm:$0xff]
  %v146 = vld [vmem:[%s1 + $0x190] sm:$0xff]
  %v147 = vld [vmem:[%s1 + $0x198] sm:$0xff]
  %v148 = vld [vmem:[%s1 + $0x1a0] sm:$0xff]
  %v149 = vld [vmem:[%s1 + $0x1a8] sm:$0xff]
  %v150 = vld [vmem:[%s1 + $0x1b0] sm:$0xff]
  %v151 = vld [vmem:[%s1 + $0x1b8] sm:$0xff]
  %v152 = vld [vmem:[%s1 + $0x1c0] sm:$0xff]
  %v153 = vld [vmem:[%s1 + $0x1c8] sm:$0xff]
  %v154 = vld [vmem:[%s1 + $0x1d0] sm:$0xff]
  %v155 = vld [vmem:[%s1 + $0x1d8] sm:$0xff]
  %v156 = vld [vmem:[%s1 + $0x1e0] sm:$0xff]
  %v157 = vld [vmem:[%s1 + $0x1e8] sm:$0xff]
  %v158 = vld [vmem:[%s1 + $0x1f0] sm:$0xff]
  %v159 = vld [vmem:[%s1 + $0x1f8] sm:$0xff]
  %160 = vset.pattern.permute.xlu0 0
  %161 = vperm.xlu0 %160, %v32
  %v162 = vpop.permute.xlu0 %161
  %163 = vset.pattern.permute.xlu0 0
  %164 = vperm.xlu0 %163, %v33
  %v165 = vpop.permute.xlu0 %164
  %166 = vset.pattern.permute.xlu0 0
  %167 = vperm.xlu0 %166, %v34
  %v168 = vpop.permute.xlu0 %167
  %169 = vset.pattern.permute.xlu0 0
  %170 = vperm.xlu0 %169, %v35
  %v171 = vpop.permute.xlu0 %170
  %172 = vset.pattern.permute.xlu0 0
  %173 = vperm.xlu0 %172, %v36
  %v174 = vpop.permute.xlu0 %173
  %175 = vset.pattern.permute.xlu0 0
  %176 = vperm.xlu0 %175, %v37
  %v177 = vpop.permute.xlu0 %176
  %178 = vset.pattern.permute.xlu0 0
  %179 = vperm.xlu0 %178, %v38
  %v180 = vpop.permute.xlu0 %179
  %181 = vset.pattern.permute.xlu0 0
  %182 = vperm.xlu0 %181, %v39
  %v183 = vpop.permute.xlu0 %182
  %184 = vset.pattern.permute.xlu0 0
  %185 = vperm.xlu0 %184, %v40
  %v186 = vpop.permute.xlu0 %185
  %187 = vset.pattern.permute.xlu0 0
  %188 = vperm.xlu0 %187, %v41
  %v189 = vpop.permute.xlu0 %188
  %190 = vset.pattern.permute.xlu0 0
  %191 = vperm.xlu0 %190, %v42
  %v192 = vpop.permute.xlu0 %191
  %193 = vset.pattern.permute.xlu0 0
  %194 = vperm.xlu0 %193, %v43
  %v195 = vpop.permute.xlu0 %194
  %196 = vset.pattern.permute.xlu0 0
  %197 = vperm.xlu0 %196, %v44
  %v198 = vpop.permute.xlu0 %197
  %199 = vset.pattern.permute.xlu0 0
  %200 = vperm.xlu0 %199, %v45
  %v201 = vpop.permute.xlu0 %200
  %202 = vset.pattern.permute.xlu0 0
  %203 = vperm.xlu0 %202, %v46
  %v204 = vpop.permute.xlu0 %203
  %205 = vset.pattern.permute.xlu0 0
  %206 = vperm.xlu0 %205, %v47
  %v207 = vpop.permute.xlu0 %206
  %208 = vset.pattern.permute.xlu0 0
  %209 = vperm.xlu0 %208, %v48
  %v210 = vpop.permute.xlu0 %209
  %211 = vset.pattern.permute.xlu0 0
  %212 = vperm.xlu0 %211, %v49
  %v213 = vpop.permute.xlu0 %212
  %214 = vset.pattern.permute.xlu0 0
  %215 = vperm.xlu0 %214, %v50
  %v216 = vpop.permute.xlu0 %215
  %217 = vset.pattern.permute.xlu0 0
  %218 = vperm.xlu0 %217, %v51
  %v219 = vpop.permute.xlu0 %218
  %220 = vset.pattern.permute.xlu0 0
  %221 = vperm.xlu0 %220, %v52
  %v222 = vpop.permute.xlu0 %221
  %223 = vset.pattern.permute.xlu0 0
  %224 = vperm.xlu0 %223, %v53
  %v225 = vpop.permute.xlu0 %224
  %226 = vset.pattern.permute.xlu0 0
  %227 = vperm.xlu0 %226, %v54
  %v228 = vpop.permute.xlu0 %227
  %229 = vset.pattern.permute.xlu0 0
  %230 = vperm.xlu0 %229, %v55
  %v231 = vpop.permute.xlu0 %230
  %232 = vset.pattern.permute.xlu0 0
  %233 = vperm.xlu0 %232, %v56
  %v234 = vpop.permute.xlu0 %233
  %235 = vset.pattern.permute.xlu0 0
  %236 = vperm.xlu0 %235, %v57
  %v237 = vpop.permute.xlu0 %236
  %238 = vset.pattern.permute.xlu0 0
  %239 = vperm.xlu0 %238, %v58
  %v240 = vpop.permute.xlu0 %239
  %241 = vset.pattern.permute.xlu0 0
  %242 = vperm.xlu0 %241, %v59
  %v243 = vpop.permute.xlu0 %242
  %244 = vset.pattern.permute.xlu0 0
  %245 = vperm.xlu0 %244, %v60
  %v246 = vpop.permute.xlu0 %245
  %247 = vset.pattern.permute.xlu0 0
  %248 = vperm.xlu0 %247, %v61
  %v249 = vpop.permute.xlu0 %248
  %250 = vset.pattern.permute.xlu0 0
  %251 = vperm.xlu0 %250, %v62
  %v252 = vpop.permute.xlu0 %251
  %253 = vset.pattern.permute.xlu0 0
  %254 = vperm.xlu0 %253, %v63
  %v255 = vpop.permute.xlu0 %254
  %256 = vset.pattern.permute.xlu0 0
  %257 = vperm.xlu0 %256, %v64
  %v258 = vpop.permute.xlu0 %257
  %259 = vset.pattern.permute.xlu0 0
  %260 = vperm.xlu0 %259, %v65
  %v261 = vpop.permute.xlu0 %260
  %262 = vset.pattern.permute.xlu0 0
  %263 = vperm.xlu0 %262, %v66
  %v264 = vpop.permute.xlu0 %263
  %265 = vset.pattern.permute.xlu0 0
  %266 = vperm.xlu0 %265, %v67
  %v267 = vpop.permute.xlu0 %266
  %268 = vset.pattern.permute.xlu0 0
  %269 = vperm.xlu0 %268, %v68
  %v270 = vpop.permute.xlu0 %269
  %271 = vset.pattern.permute.xlu0 0
  %272 = vperm.xlu0 %271, %v69
  %v273 = vpop.permute.xlu0 %272
  %274 = vset.pattern.permute.xlu0 0
  %275 = vperm.xlu0 %274, %v70
  %v276 = vpop.permute.xlu0 %275
  %277 = vset.pattern.permute.xlu0 0
  %278 = vperm.xlu0 %277, %v71
  %v279 = vpop.permute.xlu0 %278
  %280 = vset.pattern.permute.xlu0 0
  %281 = vperm.xlu0 %280, %v72
  %v282 = vpop.permute.xlu0 %281
  %283 = vset.pattern.permute.xlu0 0
  %284 = vperm.xlu0 %283, %v73
  %v285 = vpop.permute.xlu0 %284
  %286 = vset.pattern.permute.xlu0 0
  %287 = vperm.xlu0 %286, %v74
  %v288 = vpop.permute.xlu0 %287
  %289 = vset.pattern.permute.xlu0 0
  %290 = vperm.xlu0 %289, %v75
  %v291 = vpop.permute.xlu0 %290
  %292 = vset.pattern.permute.xlu0 0
  %293 = vperm.xlu0 %292, %v76
  %v294 = vpop.permute.xlu0 %293
  %295 = vset.pattern.permute.xlu0 0
  %296 = vperm.xlu0 %295, %v77
  %v297 = vpop.permute.xlu0 %296
  %298 = vset.pattern.permute.xlu0 0
  %299 = vperm.xlu0 %298, %v78
  %v300 = vpop.permute.xlu0 %299
  %301 = vset.pattern.permute.xlu0 0
  %302 = vperm.xlu0 %301, %v79
  %v303 = vpop.permute.xlu0 %302
  %304 = vset.pattern.permute.xlu0 0
  %305 = vperm.xlu0 %304, %v80
  %v306 = vpop.permute.xlu0 %305
  %307 = vset.pattern.permute.xlu0 0
  %308 = vperm.xlu0 %307, %v81
  %v309 = vpop.permute.xlu0 %308
  %310 = vset.pattern.permute.xlu0 0
  %311 = vperm.xlu0 %310, %v82
  %v312 = vpop.permute.xlu0 %311
  %313 = vset.pattern.permute.xlu0 0
  %314 = vperm.xlu0 %313, %v83
  %v315 = vpop.permute.xlu0 %314
  %316 = vset.pattern.permute.xlu0 0
  %317 = vperm.xlu0 %316, %v84
  %v318 = vpop.permute.xlu0 %317
  %319 = vset.pattern.permute.xlu0 0
  %320 = vperm.xlu0 %319, %v85
  %v321 = vpop.permute.xlu0 %320
  %322 = vset.pattern.permute.xlu0 0
  %323 = vperm.xlu0 %322, %v86
  %v324 = vpop.permute.xlu0 %323
  %325 = vset.pattern.permute.xlu0 0
  %326 = vperm.xlu0 %325, %v87
  %v327 = vpop.permute.xlu0 %326
  %328 = vset.pattern.permute.xlu0 0
  %329 = vperm.xlu0 %328, %v88
  %v330 = vpop.permute.xlu0 %329
  %331 = vset.pattern.permute.xlu0 0
  %332 = vperm.xlu0 %331, %v89
  %v333 = vpop.permute.xlu0 %332
  %334 = vset.pattern.permute.xlu0 0
  %335 = vperm.xlu0 %334, %v90
  %v336 = vpop.permute.xlu0 %335
  %337 = vset.pattern.permute.xlu0 0
  %338 = vperm.xlu0 %337, %v91
  %v339 = vpop.permute.xlu0 %338
  %340 = vset.pattern.permute.xlu0 0
  %341 = vperm.xlu0 %340, %v92
  %v342 = vpop.permute.xlu0 %341
  %343 = vset.pattern.permute.xlu0 0
  %344 = vperm.xlu0 %343, %v93
  %v345 = vpop.permute.xlu0 %344
  %346 = vset.pattern.permute.xlu0 0
  %347 = vperm.xlu0 %346, %v94
  %v348 = vpop.permute.xlu0 %347
  %349 = vset.pattern.permute.xlu0 0
  %350 = vperm.xlu0 %349, %v95
  %v351 = vpop.permute.xlu0 %350
  %vm352 = vcmp.eq.s32.totalorder %v30, %v162
  %vm353 = vcmp.eq.s32.totalorder %v31, %v162
  %vm354 = vcmp.eq.s32.totalorder %v30, %v165
  %vm355 = vcmp.eq.s32.totalorder %v31, %v165
  %vm356 = vcmp.eq.s32.totalorder %v30, %v168
  %vm357 = vcmp.eq.s32.totalorder %v31, %v168
  %vm358 = vcmp.eq.s32.totalorder %v30, %v171
  %vm359 = vcmp.eq.s32.totalorder %v31, %v171
  %vm360 = vcmp.eq.s32.totalorder %v30, %v174
  %vm361 = vcmp.eq.s32.totalorder %v31, %v174
  %vm362 = vcmp.eq.s32.totalorder %v30, %v177
  %vm363 = vcmp.eq.s32.totalorder %v31, %v177
  %vm364 = vcmp.eq.s32.totalorder %v30, %v180
  %vm365 = vcmp.eq.s32.totalorder %v31, %v180
  %vm366 = vcmp.eq.s32.totalorder %v30, %v183
  %vm367 = vcmp.eq.s32.totalorder %v31, %v183
  %vm368 = vcmp.eq.s32.totalorder %v30, %v186
  %vm369 = vcmp.eq.s32.totalorder %v31, %v186
  %vm370 = vcmp.eq.s32.totalorder %v30, %v189
  %vm371 = vcmp.eq.s32.totalorder %v31, %v189
  %vm372 = vcmp.eq.s32.totalorder %v30, %v192
  %vm373 = vcmp.eq.s32.totalorder %v31, %v192
  %vm374 = vcmp.eq.s32.totalorder %v30, %v195
  %vm375 = vcmp.eq.s32.totalorder %v31, %v195
  %vm376 = vcmp.eq.s32.totalorder %v30, %v198
  %vm377 = vcmp.eq.s32.totalorder %v31, %v198
  %vm378 = vcmp.eq.s32.totalorder %v30, %v201
  %vm379 = vcmp.eq.s32.totalorder %v31, %v201
  %vm380 = vcmp.eq.s32.totalorder %v30, %v204
  %vm381 = vcmp.eq.s32.totalorder %v31, %v204
  %vm382 = vcmp.eq.s32.totalorder %v30, %v207
  %vm383 = vcmp.eq.s32.totalorder %v31, %v207
  %vm384 = vcmp.eq.s32.totalorder %v30, %v210
  %vm385 = vcmp.eq.s32.totalorder %v31, %v210
  %vm386 = vcmp.eq.s32.totalorder %v30, %v213
  %vm387 = vcmp.eq.s32.totalorder %v31, %v213
  %vm388 = vcmp.eq.s32.totalorder %v30, %v216
  %vm389 = vcmp.eq.s32.totalorder %v31, %v216
  %vm390 = vcmp.eq.s32.totalorder %v30, %v219
  %vm391 = vcmp.eq.s32.totalorder %v31, %v219
  %vm392 = vcmp.eq.s32.totalorder %v30, %v222
  %vm393 = vcmp.eq.s32.totalorder %v31, %v222
  %vm394 = vcmp.eq.s32.totalorder %v30, %v225
  %vm395 = vcmp.eq.s32.totalorder %v31, %v225
  %vm396 = vcmp.eq.s32.totalorder %v30, %v228
  %vm397 = vcmp.eq.s32.totalorder %v31, %v228
  %vm398 = vcmp.eq.s32.totalorder %v30, %v231
  %vm399 = vcmp.eq.s32.totalorder %v31, %v231
  %vm400 = vcmp.eq.s32.totalorder %v30, %v234
  %vm401 = vcmp.eq.s32.totalorder %v31, %v234
  %vm402 = vcmp.eq.s32.totalorder %v30, %v237
  %vm403 = vcmp.eq.s32.totalorder %v31, %v237
  %vm404 = vcmp.eq.s32.totalorder %v30, %v240
  %vm405 = vcmp.eq.s32.totalorder %v31, %v240
  %vm406 = vcmp.eq.s32.totalorder %v30, %v243
  %vm407 = vcmp.eq.s32.totalorder %v31, %v243
  %vm408 = vcmp.eq.s32.totalorder %v30, %v246
  %vm409 = vcmp.eq.s32.totalorder %v31, %v246
  %vm410 = vcmp.eq.s32.totalorder %v30, %v249
  %vm411 = vcmp.eq.s32.totalorder %v31, %v249
  %vm412 = vcmp.eq.s32.totalorder %v30, %v252
  %vm413 = vcmp.eq.s32.totalorder %v31, %v252
  %vm414 = vcmp.eq.s32.totalorder %v30, %v255
  %vm415 = vcmp.eq.s32.totalorder %v31, %v255
  %vm416 = vcmp.eq.s32.totalorder %v30, %v258
  %vm417 = vcmp.eq.s32.totalorder %v31, %v258
  %vm418 = vcmp.eq.s32.totalorder %v30, %v261
  %vm419 = vcmp.eq.s32.totalorder %v31, %v261
  %vm420 = vcmp.eq.s32.totalorder %v30, %v264
  %vm421 = vcmp.eq.s32.totalorder %v31, %v264
  %vm422 = vcmp.eq.s32.totalorder %v30, %v267
  %vm423 = vcmp.eq.s32.totalorder %v31, %v267
  %vm424 = vcmp.eq.s32.totalorder %v30, %v270
  %vm425 = vcmp.eq.s32.totalorder %v31, %v270
  %vm426 = vcmp.eq.s32.totalorder %v30, %v273
  %vm427 = vcmp.eq.s32.totalorder %v31, %v273
  %vm428 = vcmp.eq.s32.totalorder %v30, %v276
  %vm429 = vcmp.eq.s32.totalorder %v31, %v276
  %vm430 = vcmp.eq.s32.totalorder %v30, %v279
  %vm431 = vcmp.eq.s32.totalorder %v31, %v279
  %vm432 = vcmp.eq.s32.totalorder %v30, %v282
  %vm433 = vcmp.eq.s32.totalorder %v31, %v282
  %vm434 = vcmp.eq.s32.totalorder %v30, %v285
  %vm435 = vcmp.eq.s32.totalorder %v31, %v285
  %vm436 = vcmp.eq.s32.totalorder %v30, %v288
  %vm437 = vcmp.eq.s32.totalorder %v31, %v288
  %vm438 = vcmp.eq.s32.totalorder %v30, %v291
  %vm439 = vcmp.eq.s32.totalorder %v31, %v291
  %vm440 = vcmp.eq.s32.totalorder %v30, %v294
  %vm441 = vcmp.eq.s32.totalorder %v31, %v294
  %vm442 = vcmp.eq.s32.totalorder %v30, %v297
  %vm443 = vcmp.eq.s32.totalorder %v31, %v297
  %vm444 = vcmp.eq.s32.totalorder %v30, %v300
  %vm445 = vcmp.eq.s32.totalorder %v31, %v300
  %vm446 = vcmp.eq.s32.totalorder %v30, %v303
  %vm447 = vcmp.eq.s32.totalorder %v31, %v303
  %vm448 = vcmp.eq.s32.totalorder %v30, %v306
  %vm449 = vcmp.eq.s32.totalorder %v31, %v306
  %vm450 = vcmp.eq.s32.totalorder %v30, %v309
  %vm451 = vcmp.eq.s32.totalorder %v31, %v309
  %vm452 = vcmp.eq.s32.totalorder %v30, %v312
  %vm453 = vcmp.eq.s32.totalorder %v31, %v312
  %vm454 = vcmp.eq.s32.totalorder %v30, %v315
  %vm455 = vcmp.eq.s32.totalorder %v31, %v315
  %vm456 = vcmp.eq.s32.totalorder %v30, %v318
  %vm457 = vcmp.eq.s32.totalorder %v31, %v318
  %vm458 = vcmp.eq.s32.totalorder %v30, %v321
  %vm459 = vcmp.eq.s32.totalorder %v31, %v321
  %vm460 = vcmp.eq.s32.totalorder %v30, %v324
  %vm461 = vcmp.eq.s32.totalorder %v31, %v324
  %vm462 = vcmp.eq.s32.totalorder %v30, %v327
  %vm463 = vcmp.eq.s32.totalorder %v31, %v327
  %vm464 = vcmp.eq.s32.totalorder %v30, %v330
  %vm465 = vcmp.eq.s32.totalorder %v31, %v330
  %vm466 = vcmp.eq.s32.totalorder %v30, %v333
  %vm467 = vcmp.eq.s32.totalorder %v31, %v333
  %vm468 = vcmp.eq.s32.totalorder %v30, %v336
  %vm469 = vcmp.eq.s32.totalorder %v31, %v336
  %vm470 = vcmp.eq.s32.totalorder %v30, %v339
  %vm471 = vcmp.eq.s32.totalorder %v31, %v339
  %vm472 = vcmp.eq.s32.totalorder %v30, %v342
  %vm473 = vcmp.eq.s32.totalorder %v31, %v342
  %vm474 = vcmp.eq.s32.totalorder %v30, %v345
  %vm475 = vcmp.eq.s32.totalorder %v31, %v345
  %vm476 = vcmp.eq.s32.totalorder %v30, %v348
  %vm477 = vcmp.eq.s32.totalorder %v31, %v348
  %vm478 = vcmp.eq.s32.totalorder %v30, %v351
  %vm479 = vcmp.eq.s32.totalorder %v31, %v351
  %v480 = vadd.s32 %v96, 128
  %v481 = vadd.s32 %v97, 128
  %v482 = vadd.s32 %v98, 128
  %v483 = vadd.s32 %v99, 128
  %v484 = vadd.s32 %v100, 128
  %v485 = vadd.s32 %v101, 128
  %v486 = vadd.s32 %v102, 128
  %v487 = vadd.s32 %v103, 128
  %v488 = vadd.s32 %v104, 128
  %v489 = vadd.s32 %v105, 128
  %v490 = vadd.s32 %v106, 128
  %v491 = vadd.s32 %v107, 128
  %v492 = vadd.s32 %v108, 128
  %v493 = vadd.s32 %v109, 128
  %v494 = vadd.s32 %v110, 128
  %v495 = vadd.s32 %v111, 128
  %v496 = vadd.s32 %v112, 128
  %v497 = vadd.s32 %v113, 128
  %v498 = vadd.s32 %v114, 128
  %v499 = vadd.s32 %v115, 128
  %v500 = vadd.s32 %v116, 128
  %v501 = vadd.s32 %v117, 128
  %v502 = vadd.s32 %v118, 128
  %v503 = vadd.s32 %v119, 128
  %v504 = vadd.s32 %v120, 128
  %v505 = vadd.s32 %v121, 128
  %v506 = vadd.s32 %v122, 128
  %v507 = vadd.s32 %v123, 128
  %v508 = vadd.s32 %v124, 128
  %v509 = vadd.s32 %v125, 128
  %v510 = vadd.s32 %v126, 128
  %v511 = vadd.s32 %v127, 128
  %v512 = vadd.s32 %v128, 128
  %v513 = vadd.s32 %v129, 128
  %v514 = vadd.s32 %v130, 128
  %v515 = vadd.s32 %v131, 128
  %v516 = vadd.s32 %v132, 128
  %v517 = vadd.s32 %v133, 128
  %v518 = vadd.s32 %v134, 128
  %v519 = vadd.s32 %v135, 128
  %v520 = vadd.s32 %v136, 128
  %v521 = vadd.s32 %v137, 128
  %v522 = vadd.s32 %v138, 128
  %v523 = vadd.s32 %v139, 128
  %v524 = vadd.s32 %v140, 128
  %v525 = vadd.s32 %v141, 128
  %v526 = vadd.s32 %v142, 128
  %v527 = vadd.s32 %v143, 128
  %v528 = vadd.s32 %v144, 128
  %v529 = vadd.s32 %v145, 128
  %v530 = vadd.s32 %v146, 128
  %v531 = vadd.s32 %v147, 128
  %v532 = vadd.s32 %v148, 128
  %v533 = vadd.s32 %v149, 128
  %v534 = vadd.s32 %v150, 128
  %v535 = vadd.s32 %v151, 128
  %v536 = vadd.s32 %v152, 128
  %v537 = vadd.s32 %v153, 128
  %v538 = vadd.s32 %v154, 128
  %v539 = vadd.s32 %v155, 128
  %v540 = vadd.s32 %v156, 128
  %v541 = vadd.s32 %v157, 128
  %v542 = vadd.s32 %v158, 128
  %v543 = vadd.s32 %v159, 128
  %544 = vset.pattern.permute.xlu0 0
  %545 = vperm.xlu0 %544, %v480
  %v546 = vpop.permute.xlu0 %545
  %547 = vset.pattern.permute.xlu0 0
  %548 = vperm.xlu0 %547, %v481
  %v549 = vpop.permute.xlu0 %548
  %550 = vset.pattern.permute.xlu0 0
  %551 = vperm.xlu0 %550, %v482
  %v552 = vpop.permute.xlu0 %551
  %553 = vset.pattern.permute.xlu0 0
  %554 = vperm.xlu0 %553, %v483
  %v555 = vpop.permute.xlu0 %554
  %556 = vset.pattern.permute.xlu0 0
  %557 = vperm.xlu0 %556, %v484
  %v558 = vpop.permute.xlu0 %557
  %559 = vset.pattern.permute.xlu0 0
  %560 = vperm.xlu0 %559, %v485
  %v561 = vpop.permute.xlu0 %560
  %562 = vset.pattern.permute.xlu0 0
  %563 = vperm.xlu0 %562, %v486
  %v564 = vpop.permute.xlu0 %563
  %565 = vset.pattern.permute.xlu0 0
  %566 = vperm.xlu0 %565, %v487
  %v567 = vpop.permute.xlu0 %566
  %568 = vset.pattern.permute.xlu0 0
  %569 = vperm.xlu0 %568, %v488
  %v570 = vpop.permute.xlu0 %569
  %571 = vset.pattern.permute.xlu0 0
  %572 = vperm.xlu0 %571, %v489
  %v573 = vpop.permute.xlu0 %572
  %574 = vset.pattern.permute.xlu0 0
  %575 = vperm.xlu0 %574, %v490
  %v576 = vpop.permute.xlu0 %575
  %577 = vset.pattern.permute.xlu0 0
  %578 = vperm.xlu0 %577, %v491
  %v579 = vpop.permute.xlu0 %578
  %580 = vset.pattern.permute.xlu0 0
  %581 = vperm.xlu0 %580, %v492
  %v582 = vpop.permute.xlu0 %581
  %583 = vset.pattern.permute.xlu0 0
  %584 = vperm.xlu0 %583, %v493
  %v585 = vpop.permute.xlu0 %584
  %586 = vset.pattern.permute.xlu0 0
  %587 = vperm.xlu0 %586, %v494
  %v588 = vpop.permute.xlu0 %587
  %589 = vset.pattern.permute.xlu0 0
  %590 = vperm.xlu0 %589, %v495
  %v591 = vpop.permute.xlu0 %590
  %592 = vset.pattern.permute.xlu0 0
  %593 = vperm.xlu0 %592, %v496
  %v594 = vpop.permute.xlu0 %593
  %595 = vset.pattern.permute.xlu0 0
  %596 = vperm.xlu0 %595, %v497
  %v597 = vpop.permute.xlu0 %596
  %598 = vset.pattern.permute.xlu0 0
  %599 = vperm.xlu0 %598, %v498
  %v600 = vpop.permute.xlu0 %599
  %601 = vset.pattern.permute.xlu0 0
  %602 = vperm.xlu0 %601, %v499
  %v603 = vpop.permute.xlu0 %602
  %604 = vset.pattern.permute.xlu0 0
  %605 = vperm.xlu0 %604, %v500
  %v606 = vpop.permute.xlu0 %605
  %607 = vset.pattern.permute.xlu0 0
  %608 = vperm.xlu0 %607, %v501
  %v609 = vpop.permute.xlu0 %608
  %610 = vset.pattern.permute.xlu0 0
  %611 = vperm.xlu0 %610, %v502
  %v612 = vpop.permute.xlu0 %611
  %613 = vset.pattern.permute.xlu0 0
  %614 = vperm.xlu0 %613, %v503
  %v615 = vpop.permute.xlu0 %614
  %616 = vset.pattern.permute.xlu0 0
  %617 = vperm.xlu0 %616, %v504
  %v618 = vpop.permute.xlu0 %617
  %619 = vset.pattern.permute.xlu0 0
  %620 = vperm.xlu0 %619, %v505
  %v621 = vpop.permute.xlu0 %620
  %622 = vset.pattern.permute.xlu0 0
  %623 = vperm.xlu0 %622, %v506
  %v624 = vpop.permute.xlu0 %623
  %625 = vset.pattern.permute.xlu0 0
  %626 = vperm.xlu0 %625, %v507
  %v627 = vpop.permute.xlu0 %626
  %628 = vset.pattern.permute.xlu0 0
  %629 = vperm.xlu0 %628, %v508
  %v630 = vpop.permute.xlu0 %629
  %631 = vset.pattern.permute.xlu0 0
  %632 = vperm.xlu0 %631, %v509
  %v633 = vpop.permute.xlu0 %632
  %634 = vset.pattern.permute.xlu0 0
  %635 = vperm.xlu0 %634, %v510
  %v636 = vpop.permute.xlu0 %635
  %637 = vset.pattern.permute.xlu0 0
  %638 = vperm.xlu0 %637, %v511
  %v639 = vpop.permute.xlu0 %638
  %640 = vset.pattern.permute.xlu0 0
  %641 = vperm.xlu0 %640, %v512
  %v642 = vpop.permute.xlu0 %641
  %643 = vset.pattern.permute.xlu0 0
  %644 = vperm.xlu0 %643, %v513
  %v645 = vpop.permute.xlu0 %644
  %646 = vset.pattern.permute.xlu0 0
  %647 = vperm.xlu0 %646, %v514
  %v648 = vpop.permute.xlu0 %647
  %649 = vset.pattern.permute.xlu0 0
  %650 = vperm.xlu0 %649, %v515
  %v651 = vpop.permute.xlu0 %650
  %652 = vset.pattern.permute.xlu0 0
  %653 = vperm.xlu0 %652, %v516
  %v654 = vpop.permute.xlu0 %653
  %655 = vset.pattern.permute.xlu0 0
  %656 = vperm.xlu0 %655, %v517
  %v657 = vpop.permute.xlu0 %656
  %658 = vset.pattern.permute.xlu0 0
  %659 = vperm.xlu0 %658, %v518
  %v660 = vpop.permute.xlu0 %659
  %661 = vset.pattern.permute.xlu0 0
  %662 = vperm.xlu0 %661, %v519
  %v663 = vpop.permute.xlu0 %662
  %664 = vset.pattern.permute.xlu0 0
  %665 = vperm.xlu0 %664, %v520
  %v666 = vpop.permute.xlu0 %665
  %667 = vset.pattern.permute.xlu0 0
  %668 = vperm.xlu0 %667, %v521
  %v669 = vpop.permute.xlu0 %668
  %670 = vset.pattern.permute.xlu0 0
  %671 = vperm.xlu0 %670, %v522
  %v672 = vpop.permute.xlu0 %671
  %673 = vset.pattern.permute.xlu0 0
  %674 = vperm.xlu0 %673, %v523
  %v675 = vpop.permute.xlu0 %674
  %676 = vset.pattern.permute.xlu0 0
  %677 = vperm.xlu0 %676, %v524
  %v678 = vpop.permute.xlu0 %677
  %679 = vset.pattern.permute.xlu0 0
  %680 = vperm.xlu0 %679, %v525
  %v681 = vpop.permute.xlu0 %680
  %682 = vset.pattern.permute.xlu0 0
  %683 = vperm.xlu0 %682, %v526
  %v684 = vpop.permute.xlu0 %683
  %685 = vset.pattern.permute.xlu0 0
  %686 = vperm.xlu0 %685, %v527
  %v687 = vpop.permute.xlu0 %686
  %688 = vset.pattern.permute.xlu0 0
  %689 = vperm.xlu0 %688, %v528
  %v690 = vpop.permute.xlu0 %689
  %691 = vset.pattern.permute.xlu0 0
  %692 = vperm.xlu0 %691, %v529
  %v693 = vpop.permute.xlu0 %692
  %694 = vset.pattern.permute.xlu0 0
  %695 = vperm.xlu0 %694, %v530
  %v696 = vpop.permute.xlu0 %695
  %697 = vset.pattern.permute.xlu0 0
  %698 = vperm.xlu0 %697, %v531
  %v699 = vpop.permute.xlu0 %698
  %700 = vset.pattern.permute.xlu0 0
  %701 = vperm.xlu0 %700, %v532
  %v702 = vpop.permute.xlu0 %701
  %703 = vset.pattern.permute.xlu0 0
  %704 = vperm.xlu0 %703, %v533
  %v705 = vpop.permute.xlu0 %704
  %706 = vset.pattern.permute.xlu0 0
  %707 = vperm.xlu0 %706, %v534
  %v708 = vpop.permute.xlu0 %707
  %709 = vset.pattern.permute.xlu0 0
  %710 = vperm.xlu0 %709, %v535
  %v711 = vpop.permute.xlu0 %710
  %712 = vset.pattern.permute.xlu0 0
  %713 = vperm.xlu0 %712, %v536
  %v714 = vpop.permute.xlu0 %713
  %715 = vset.pattern.permute.xlu0 0
  %716 = vperm.xlu0 %715, %v537
  %v717 = vpop.permute.xlu0 %716
  %718 = vset.pattern.permute.xlu0 0
  %719 = vperm.xlu0 %718, %v538
  %v720 = vpop.permute.xlu0 %719
  %721 = vset.pattern.permute.xlu0 0
  %722 = vperm.xlu0 %721, %v539
  %v723 = vpop.permute.xlu0 %722
  %724 = vset.pattern.permute.xlu0 0
  %725 = vperm.xlu0 %724, %v540
  %v726 = vpop.permute.xlu0 %725
  %727 = vset.pattern.permute.xlu0 0
  %728 = vperm.xlu0 %727, %v541
  %v729 = vpop.permute.xlu0 %728
  %730 = vset.pattern.permute.xlu0 0
  %731 = vperm.xlu0 %730, %v542
  %v732 = vpop.permute.xlu0 %731
  %733 = vset.pattern.permute.xlu0 0
  %734 = vperm.xlu0 %733, %v543
  %v735 = vpop.permute.xlu0 %734
  %vm736 = vcmp.eq.s32.totalorder %v30, %v546
  %vm737 = vcmp.eq.s32.totalorder %v31, %v546
  %vm738 = vcmp.eq.s32.totalorder %v30, %v549
  %vm739 = vcmp.eq.s32.totalorder %v31, %v549
  %vm740 = vcmp.eq.s32.totalorder %v30, %v552
  %vm741 = vcmp.eq.s32.totalorder %v31, %v552
  %vm742 = vcmp.eq.s32.totalorder %v30, %v555
  %vm743 = vcmp.eq.s32.totalorder %v31, %v555
  %vm744 = vcmp.eq.s32.totalorder %v30, %v558
  %vm745 = vcmp.eq.s32.totalorder %v31, %v558
  %vm746 = vcmp.eq.s32.totalorder %v30, %v561
  %vm747 = vcmp.eq.s32.totalorder %v31, %v561
  %vm748 = vcmp.eq.s32.totalorder %v30, %v564
  %vm749 = vcmp.eq.s32.totalorder %v31, %v564
  %vm750 = vcmp.eq.s32.totalorder %v30, %v567
  %vm751 = vcmp.eq.s32.totalorder %v31, %v567
  %vm752 = vcmp.eq.s32.totalorder %v30, %v570
  %vm753 = vcmp.eq.s32.totalorder %v31, %v570
  %vm754 = vcmp.eq.s32.totalorder %v30, %v573
  %vm755 = vcmp.eq.s32.totalorder %v31, %v573
  %vm756 = vcmp.eq.s32.totalorder %v30, %v576
  %vm757 = vcmp.eq.s32.totalorder %v31, %v576
  %vm758 = vcmp.eq.s32.totalorder %v30, %v579
  %vm759 = vcmp.eq.s32.totalorder %v31, %v579
  %vm760 = vcmp.eq.s32.totalorder %v30, %v582
  %vm761 = vcmp.eq.s32.totalorder %v31, %v582
  %vm762 = vcmp.eq.s32.totalorder %v30, %v585
  %vm763 = vcmp.eq.s32.totalorder %v31, %v585
  %vm764 = vcmp.eq.s32.totalorder %v30, %v588
  %vm765 = vcmp.eq.s32.totalorder %v31, %v588
  %vm766 = vcmp.eq.s32.totalorder %v30, %v591
  %vm767 = vcmp.eq.s32.totalorder %v31, %v591
  %vm768 = vcmp.eq.s32.totalorder %v30, %v594
  %vm769 = vcmp.eq.s32.totalorder %v31, %v594
  %vm770 = vcmp.eq.s32.totalorder %v30, %v597
  %vm771 = vcmp.eq.s32.totalorder %v31, %v597
  %vm772 = vcmp.eq.s32.totalorder %v30, %v600
  %vm773 = vcmp.eq.s32.totalorder %v31, %v600
  %vm774 = vcmp.eq.s32.totalorder %v30, %v603
  %vm775 = vcmp.eq.s32.totalorder %v31, %v603
  %vm776 = vcmp.eq.s32.totalorder %v30, %v606
  %vm777 = vcmp.eq.s32.totalorder %v31, %v606
  %vm778 = vcmp.eq.s32.totalorder %v30, %v609
  %vm779 = vcmp.eq.s32.totalorder %v31, %v609
  %vm780 = vcmp.eq.s32.totalorder %v30, %v612
  %vm781 = vcmp.eq.s32.totalorder %v31, %v612
  %vm782 = vcmp.eq.s32.totalorder %v30, %v615
  %vm783 = vcmp.eq.s32.totalorder %v31, %v615
  %vm784 = vcmp.eq.s32.totalorder %v30, %v618
  %vm785 = vcmp.eq.s32.totalorder %v31, %v618
  %vm786 = vcmp.eq.s32.totalorder %v30, %v621
  %vm787 = vcmp.eq.s32.totalorder %v31, %v621
  %vm788 = vcmp.eq.s32.totalorder %v30, %v624
  %vm789 = vcmp.eq.s32.totalorder %v31, %v624
  %vm790 = vcmp.eq.s32.totalorder %v30, %v627
  %vm791 = vcmp.eq.s32.totalorder %v31, %v627
  %vm792 = vcmp.eq.s32.totalorder %v30, %v630
  %vm793 = vcmp.eq.s32.totalorder %v31, %v630
  %vm794 = vcmp.eq.s32.totalorder %v30, %v633
  %vm795 = vcmp.eq.s32.totalorder %v31, %v633
  %vm796 = vcmp.eq.s32.totalorder %v30, %v636
  %vm797 = vcmp.eq.s32.totalorder %v31, %v636
  %vm798 = vcmp.eq.s32.totalorder %v30, %v639
  %vm799 = vcmp.eq.s32.totalorder %v31, %v639
  %vm800 = vcmp.eq.s32.totalorder %v30, %v642
  %vm801 = vcmp.eq.s32.totalorder %v31, %v642
  %vm802 = vcmp.eq.s32.totalorder %v30, %v645
  %vm803 = vcmp.eq.s32.totalorder %v31, %v645
  %vm804 = vcmp.eq.s32.totalorder %v30, %v648
  %vm805 = vcmp.eq.s32.totalorder %v31, %v648
  %vm806 = vcmp.eq.s32.totalorder %v30, %v651
  %vm807 = vcmp.eq.s32.totalorder %v31, %v651
  %vm808 = vcmp.eq.s32.totalorder %v30, %v654
  %vm809 = vcmp.eq.s32.totalorder %v31, %v654
  %vm810 = vcmp.eq.s32.totalorder %v30, %v657
  %vm811 = vcmp.eq.s32.totalorder %v31, %v657
  %vm812 = vcmp.eq.s32.totalorder %v30, %v660
  %vm813 = vcmp.eq.s32.totalorder %v31, %v660
  %vm814 = vcmp.eq.s32.totalorder %v30, %v663
  %vm815 = vcmp.eq.s32.totalorder %v31, %v663
  %vm816 = vcmp.eq.s32.totalorder %v30, %v666
  %vm817 = vcmp.eq.s32.totalorder %v31, %v666
  %vm818 = vcmp.eq.s32.totalorder %v30, %v669
  %vm819 = vcmp.eq.s32.totalorder %v31, %v669
  %vm820 = vcmp.eq.s32.totalorder %v30, %v672
  %vm821 = vcmp.eq.s32.totalorder %v31, %v672
  %vm822 = vcmp.eq.s32.totalorder %v30, %v675
  %vm823 = vcmp.eq.s32.totalorder %v31, %v675
  %vm824 = vcmp.eq.s32.totalorder %v30, %v678
  %vm825 = vcmp.eq.s32.totalorder %v31, %v678
  %vm826 = vcmp.eq.s32.totalorder %v30, %v681
  %vm827 = vcmp.eq.s32.totalorder %v31, %v681
  %vm828 = vcmp.eq.s32.totalorder %v30, %v684
  %vm829 = vcmp.eq.s32.totalorder %v31, %v684
  %vm830 = vcmp.eq.s32.totalorder %v30, %v687
  %vm831 = vcmp.eq.s32.totalorder %v31, %v687
  %vm832 = vcmp.eq.s32.totalorder %v30, %v690
  %vm833 = vcmp.eq.s32.totalorder %v31, %v690
  %vm834 = vcmp.eq.s32.totalorder %v30, %v693
  %vm835 = vcmp.eq.s32.totalorder %v31, %v693
  %vm836 = vcmp.eq.s32.totalorder %v30, %v696
  %vm837 = vcmp.eq.s32.totalorder %v31, %v696
  %vm838 = vcmp.eq.s32.totalorder %v30, %v699
  %vm839 = vcmp.eq.s32.totalorder %v31, %v699
  %vm840 = vcmp.eq.s32.totalorder %v30, %v702
  %vm841 = vcmp.eq.s32.totalorder %v31, %v702
  %vm842 = vcmp.eq.s32.totalorder %v30, %v705
  %vm843 = vcmp.eq.s32.totalorder %v31, %v705
  %vm844 = vcmp.eq.s32.totalorder %v30, %v708
  %vm845 = vcmp.eq.s32.totalorder %v31, %v708
  %vm846 = vcmp.eq.s32.totalorder %v30, %v711
  %vm847 = vcmp.eq.s32.totalorder %v31, %v711
  %vm848 = vcmp.eq.s32.totalorder %v30, %v714
  %vm849 = vcmp.eq.s32.totalorder %v31, %v714
  %vm850 = vcmp.eq.s32.totalorder %v30, %v717
  %vm851 = vcmp.eq.s32.totalorder %v31, %v717
  %vm852 = vcmp.eq.s32.totalorder %v30, %v720
  %vm853 = vcmp.eq.s32.totalorder %v31, %v720
  %vm854 = vcmp.eq.s32.totalorder %v30, %v723
  %vm855 = vcmp.eq.s32.totalorder %v31, %v723
  %vm856 = vcmp.eq.s32.totalorder %v30, %v726
  %vm857 = vcmp.eq.s32.totalorder %v31, %v726
  %vm858 = vcmp.eq.s32.totalorder %v30, %v729
  %vm859 = vcmp.eq.s32.totalorder %v31, %v729
  %vm860 = vcmp.eq.s32.totalorder %v30, %v732
  %vm861 = vcmp.eq.s32.totalorder %v31, %v732
  %vm862 = vcmp.eq.s32.totalorder %v30, %v735
  %vm863 = vcmp.eq.s32.totalorder %v31, %v735
  %vm864 = vmor %vm352, %vm736
  %vm865 = vmor %vm353, %vm737
  %vm866 = vmor %vm354, %vm738
  %vm867 = vmor %vm355, %vm739
  %vm868 = vmor %vm356, %vm740
  %vm869 = vmor %vm357, %vm741
  %vm870 = vmor %vm358, %vm742
  %vm871 = vmor %vm359, %vm743
  %vm872 = vmor %vm360, %vm744
  %vm873 = vmor %vm361, %vm745
  %vm874 = vmor %vm362, %vm746
  %vm875 = vmor %vm363, %vm747
  %vm876 = vmor %vm364, %vm748
  %vm877 = vmor %vm365, %vm749
  %vm878 = vmor %vm366, %vm750
  %vm879 = vmor %vm367, %vm751
  %vm880 = vmor %vm368, %vm752
  %vm881 = vmor %vm369, %vm753
  %vm882 = vmor %vm370, %vm754
  %vm883 = vmor %vm371, %vm755
  %vm884 = vmor %vm372, %vm756
  %vm885 = vmor %vm373, %vm757
  %vm886 = vmor %vm374, %vm758
  %vm887 = vmor %vm375, %vm759
  %vm888 = vmor %vm376, %vm760
  %vm889 = vmor %vm377, %vm761
  %vm890 = vmor %vm378, %vm762
  %vm891 = vmor %vm379, %vm763
  %vm892 = vmor %vm380, %vm764
  %vm893 = vmor %vm381, %vm765
  %vm894 = vmor %vm382, %vm766
  %vm895 = vmor %vm383, %vm767
  %vm896 = vmor %vm384, %vm768
  %vm897 = vmor %vm385, %vm769
  %vm898 = vmor %vm386, %vm770
  %vm899 = vmor %vm387, %vm771
  %vm900 = vmor %vm388, %vm772
  %vm901 = vmor %vm389, %vm773
  %vm902 = vmor %vm390, %vm774
  %vm903 = vmor %vm391, %vm775
  %vm904 = vmor %vm392, %vm776
  %vm905 = vmor %vm393, %vm777
  %vm906 = vmor %vm394, %vm778
  %vm907 = vmor %vm395, %vm779
  %vm908 = vmor %vm396, %vm780
  %vm909 = vmor %vm397, %vm781
  %vm910 = vmor %vm398, %vm782
  %vm911 = vmor %vm399, %vm783
  %vm912 = vmor %vm400, %vm784
  %vm913 = vmor %vm401, %vm785
  %vm914 = vmor %vm402, %vm786
  %vm915 = vmor %vm403, %vm787
  %vm916 = vmor %vm404, %vm788
  %vm917 = vmor %vm405, %vm789
  %vm918 = vmor %vm406, %vm790
  %vm919 = vmor %vm407, %vm791
  %vm920 = vmor %vm408, %vm792
  %vm921 = vmor %vm409, %vm793
  %vm922 = vmor %vm410, %vm794
  %vm923 = vmor %vm411, %vm795
  %vm924 = vmor %vm412, %vm796
  %vm925 = vmor %vm413, %vm797
  %vm926 = vmor %vm414, %vm798
  %vm927 = vmor %vm415, %vm799
  %vm928 = vmor %vm416, %vm800
  %vm929 = vmor %vm417, %vm801
  %vm930 = vmor %vm418, %vm802
  %vm931 = vmor %vm419, %vm803
  %vm932 = vmor %vm420, %vm804
  %vm933 = vmor %vm421, %vm805
  %vm934 = vmor %vm422, %vm806
  %vm935 = vmor %vm423, %vm807
  %vm936 = vmor %vm424, %vm808
  %vm937 = vmor %vm425, %vm809
  %vm938 = vmor %vm426, %vm810
  %vm939 = vmor %vm427, %vm811
  %vm940 = vmor %vm428, %vm812
  %vm941 = vmor %vm429, %vm813
  %vm942 = vmor %vm430, %vm814
  %vm943 = vmor %vm431, %vm815
  %vm944 = vmor %vm432, %vm816
  %vm945 = vmor %vm433, %vm817
  %vm946 = vmor %vm434, %vm818
  %vm947 = vmor %vm435, %vm819
  %vm948 = vmor %vm436, %vm820
  %vm949 = vmor %vm437, %vm821
  %vm950 = vmor %vm438, %vm822
  %vm951 = vmor %vm439, %vm823
  %vm952 = vmor %vm440, %vm824
  %vm953 = vmor %vm441, %vm825
  %vm954 = vmor %vm442, %vm826
  %vm955 = vmor %vm443, %vm827
  %vm956 = vmor %vm444, %vm828
  %vm957 = vmor %vm445, %vm829
  %vm958 = vmor %vm446, %vm830
  %vm959 = vmor %vm447, %vm831
  %vm960 = vmor %vm448, %vm832
  %vm961 = vmor %vm449, %vm833
  %vm962 = vmor %vm450, %vm834
  %vm963 = vmor %vm451, %vm835
  %vm964 = vmor %vm452, %vm836
  %vm965 = vmor %vm453, %vm837
  %vm966 = vmor %vm454, %vm838
  %vm967 = vmor %vm455, %vm839
  %vm968 = vmor %vm456, %vm840
  %vm969 = vmor %vm457, %vm841
  %vm970 = vmor %vm458, %vm842
  %vm971 = vmor %vm459, %vm843
  %vm972 = vmor %vm460, %vm844
  %vm973 = vmor %vm461, %vm845
  %vm974 = vmor %vm462, %vm846
  %vm975 = vmor %vm463, %vm847
  %vm976 = vmor %vm464, %vm848
  %vm977 = vmor %vm465, %vm849
  %vm978 = vmor %vm466, %vm850
  %vm979 = vmor %vm467, %vm851
  %vm980 = vmor %vm468, %vm852
  %vm981 = vmor %vm469, %vm853
  %vm982 = vmor %vm470, %vm854
  %vm983 = vmor %vm471, %vm855
  %vm984 = vmor %vm472, %vm856
  %vm985 = vmor %vm473, %vm857
  %vm986 = vmor %vm474, %vm858
  %vm987 = vmor %vm475, %vm859
  %vm988 = vmor %vm476, %vm860
  %vm989 = vmor %vm477, %vm861
  %vm990 = vmor %vm478, %vm862
  %vm991 = vmor %vm479, %vm863
  %v992 = vsel %vm864, 1, 0
  %v993 = vsel %vm865, 1, 0
  %v994 = vsel %vm866, 1, 0
  %v995 = vsel %vm867, 1, 0
  %v996 = vsel %vm868, 1, 0
  %v997 = vsel %vm869, 1, 0
  %v998 = vsel %vm870, 1, 0
  %v999 = vsel %vm871, 1, 0
  %v1000 = vsel %vm872, 1, 0
  %v1001 = vsel %vm873, 1, 0
  %v1002 = vsel %vm874, 1, 0
  %v1003 = vsel %vm875, 1, 0
  %v1004 = vsel %vm876, 1, 0
  %v1005 = vsel %vm877, 1, 0
  %v1006 = vsel %vm878, 1, 0
  %v1007 = vsel %vm879, 1, 0
  %v1008 = vsel %vm880, 1, 0
  %v1009 = vsel %vm881, 1, 0
  %v1010 = vsel %vm882, 1, 0
  %v1011 = vsel %vm883, 1, 0
  %v1012 = vsel %vm884, 1, 0
  %v1013 = vsel %vm885, 1, 0
  %v1014 = vsel %vm886, 1, 0
  %v1015 = vsel %vm887, 1, 0
  %v1016 = vsel %vm888, 1, 0
  %v1017 = vsel %vm889, 1, 0
  %v1018 = vsel %vm890, 1, 0
  %v1019 = vsel %vm891, 1, 0
  %v1020 = vsel %vm892, 1, 0
  %v1021 = vsel %vm893, 1, 0
  %v1022 = vsel %vm894, 1, 0
  %v1023 = vsel %vm895, 1, 0
  %v1024 = vsel %vm896, 1, 0
  %v1025 = vsel %vm897, 1, 0
  %v1026 = vsel %vm898, 1, 0
  %v1027 = vsel %vm899, 1, 0
  %v1028 = vsel %vm900, 1, 0
  %v1029 = vsel %vm901, 1, 0
  %v1030 = vsel %vm902, 1, 0
  %v1031 = vsel %vm903, 1, 0
  %v1032 = vsel %vm904, 1, 0
  %v1033 = vsel %vm905, 1, 0
  %v1034 = vsel %vm906, 1, 0
  %v1035 = vsel %vm907, 1, 0
  %v1036 = vsel %vm908, 1, 0
  %v1037 = vsel %vm909, 1, 0
  %v1038 = vsel %vm910, 1, 0
  %v1039 = vsel %vm911, 1, 0
  %v1040 = vsel %vm912, 1, 0
  %v1041 = vsel %vm913, 1, 0
  %v1042 = vsel %vm914, 1, 0
  %v1043 = vsel %vm915, 1, 0
  %v1044 = vsel %vm916, 1, 0
  %v1045 = vsel %vm917, 1, 0
  %v1046 = vsel %vm918, 1, 0
  %v1047 = vsel %vm919, 1, 0
  %v1048 = vsel %vm920, 1, 0
  %v1049 = vsel %vm921, 1, 0
  %v1050 = vsel %vm922, 1, 0
  %v1051 = vsel %vm923, 1, 0
  %v1052 = vsel %vm924, 1, 0
  %v1053 = vsel %vm925, 1, 0
  %v1054 = vsel %vm926, 1, 0
  %v1055 = vsel %vm927, 1, 0
  %v1056 = vsel %vm928, 1, 0
  %v1057 = vsel %vm929, 1, 0
  %v1058 = vsel %vm930, 1, 0
  %v1059 = vsel %vm931, 1, 0
  %v1060 = vsel %vm932, 1, 0
  %v1061 = vsel %vm933, 1, 0
  %v1062 = vsel %vm934, 1, 0
  %v1063 = vsel %vm935, 1, 0
  %v1064 = vsel %vm936, 1, 0
  %v1065 = vsel %vm937, 1, 0
  %v1066 = vsel %vm938, 1, 0
  %v1067 = vsel %vm939, 1, 0
  %v1068 = vsel %vm940, 1, 0
  %v1069 = vsel %vm941, 1, 0
  %v1070 = vsel %vm942, 1, 0
  %v1071 = vsel %vm943, 1, 0
  %v1072 = vsel %vm944, 1, 0
  %v1073 = vsel %vm945, 1, 0
  %v1074 = vsel %vm946, 1, 0
  %v1075 = vsel %vm947, 1, 0
  %v1076 = vsel %vm948, 1, 0
  %v1077 = vsel %vm949, 1, 0
  %v1078 = vsel %vm950, 1, 0
  %v1079 = vsel %vm951, 1, 0
  %v1080 = vsel %vm952, 1, 0
  %v1081 = vsel %vm953, 1, 0
  %v1082 = vsel %vm954, 1, 0
  %v1083 = vsel %vm955, 1, 0
  %v1084 = vsel %vm956, 1, 0
  %v1085 = vsel %vm957, 1, 0
  %v1086 = vsel %vm958, 1, 0
  %v1087 = vsel %vm959, 1, 0
  %v1088 = vsel %vm960, 1, 0
  %v1089 = vsel %vm961, 1, 0
  %v1090 = vsel %vm962, 1, 0
  %v1091 = vsel %vm963, 1, 0
  %v1092 = vsel %vm964, 1, 0
  %v1093 = vsel %vm965, 1, 0
  %v1094 = vsel %vm966, 1, 0
  %v1095 = vsel %vm967, 1, 0
  %v1096 = vsel %vm968, 1, 0
  %v1097 = vsel %vm969, 1, 0
  %v1098 = vsel %vm970, 1, 0
  %v1099 = vsel %vm971, 1, 0
  %v1100 = vsel %vm972, 1, 0
  %v1101 = vsel %vm973, 1, 0
  %v1102 = vsel %vm974, 1, 0
  %v1103 = vsel %vm975, 1, 0
  %v1104 = vsel %vm976, 1, 0
  %v1105 = vsel %vm977, 1, 0
  %v1106 = vsel %vm978, 1, 0
  %v1107 = vsel %vm979, 1, 0
  %v1108 = vsel %vm980, 1, 0
  %v1109 = vsel %vm981, 1, 0
  %v1110 = vsel %vm982, 1, 0
  %v1111 = vsel %vm983, 1, 0
  %v1112 = vsel %vm984, 1, 0
  %v1113 = vsel %vm985, 1, 0
  %v1114 = vsel %vm986, 1, 0
  %v1115 = vsel %vm987, 1, 0
  %v1116 = vsel %vm988, 1, 0
  %v1117 = vsel %vm989, 1, 0
  %v1118 = vsel %vm990, 1, 0
  %v1119 = vsel %vm991, 1, 0
  %v1120 = vcvt.s32.f32 %v992
  %v1121 = vcvt.s32.f32 %v993
  %v1122 = vcvt.s32.f32 %v994
  %v1123 = vcvt.s32.f32 %v995
  %v1124 = vcvt.s32.f32 %v996
  %v1125 = vcvt.s32.f32 %v997
  %v1126 = vcvt.s32.f32 %v998
  %v1127 = vcvt.s32.f32 %v999
  %v1128 = vcvt.s32.f32 %v1000
  %v1129 = vcvt.s32.f32 %v1001
  %v1130 = vcvt.s32.f32 %v1002
  %v1131 = vcvt.s32.f32 %v1003
  %v1132 = vcvt.s32.f32 %v1004
  %v1133 = vcvt.s32.f32 %v1005
  %v1134 = vcvt.s32.f32 %v1006
  %v1135 = vcvt.s32.f32 %v1007
  %v1136 = vcvt.s32.f32 %v1008
  %v1137 = vcvt.s32.f32 %v1009
  %v1138 = vcvt.s32.f32 %v1010
  %v1139 = vcvt.s32.f32 %v1011
  %v1140 = vcvt.s32.f32 %v1012
  %v1141 = vcvt.s32.f32 %v1013
  %v1142 = vcvt.s32.f32 %v1014
  %v1143 = vcvt.s32.f32 %v1015
  %v1144 = vcvt.s32.f32 %v1016
  %v1145 = vcvt.s32.f32 %v1017
  %v1146 = vcvt.s32.f32 %v1018
  %v1147 = vcvt.s32.f32 %v1019
  %v1148 = vcvt.s32.f32 %v1020
  %v1149 = vcvt.s32.f32 %v1021
  %v1150 = vcvt.s32.f32 %v1022
  %v1151 = vcvt.s32.f32 %v1023
  %v1152 = vcvt.s32.f32 %v1024
  %v1153 = vcvt.s32.f32 %v1025
  %v1154 = vcvt.s32.f32 %v1026
  %v1155 = vcvt.s32.f32 %v1027
  %v1156 = vcvt.s32.f32 %v1028
  %v1157 = vcvt.s32.f32 %v1029
  %v1158 = vcvt.s32.f32 %v1030
  %v1159 = vcvt.s32.f32 %v1031
  %v1160 = vcvt.s32.f32 %v1032
  %v1161 = vcvt.s32.f32 %v1033
  %v1162 = vcvt.s32.f32 %v1034
  %v1163 = vcvt.s32.f32 %v1035
  %v1164 = vcvt.s32.f32 %v1036
  %v1165 = vcvt.s32.f32 %v1037
  %v1166 = vcvt.s32.f32 %v1038
  %v1167 = vcvt.s32.f32 %v1039
  %v1168 = vcvt.s32.f32 %v1040
  %v1169 = vcvt.s32.f32 %v1041
  %v1170 = vcvt.s32.f32 %v1042
  %v1171 = vcvt.s32.f32 %v1043
  %v1172 = vcvt.s32.f32 %v1044
  %v1173 = vcvt.s32.f32 %v1045
  %v1174 = vcvt.s32.f32 %v1046
  %v1175 = vcvt.s32.f32 %v1047
  %v1176 = vcvt.s32.f32 %v1048
  %v1177 = vcvt.s32.f32 %v1049
  %v1178 = vcvt.s32.f32 %v1050
  %v1179 = vcvt.s32.f32 %v1051
  %v1180 = vcvt.s32.f32 %v1052
  %v1181 = vcvt.s32.f32 %v1053
  %v1182 = vcvt.s32.f32 %v1054
  %v1183 = vcvt.s32.f32 %v1055
  %v1184 = vcvt.s32.f32 %v1056
  %v1185 = vcvt.s32.f32 %v1057
  %v1186 = vcvt.s32.f32 %v1058
  %v1187 = vcvt.s32.f32 %v1059
  %v1188 = vcvt.s32.f32 %v1060
  %v1189 = vcvt.s32.f32 %v1061
  %v1190 = vcvt.s32.f32 %v1062
  %v1191 = vcvt.s32.f32 %v1063
  %v1192 = vcvt.s32.f32 %v1064
  %v1193 = vcvt.s32.f32 %v1065
  %v1194 = vcvt.s32.f32 %v1066
  %v1195 = vcvt.s32.f32 %v1067
  %v1196 = vcvt.s32.f32 %v1068
  %v1197 = vcvt.s32.f32 %v1069
  %v1198 = vcvt.s32.f32 %v1070
  %v1199 = vcvt.s32.f32 %v1071
  %v1200 = vcvt.s32.f32 %v1072
  %v1201 = vcvt.s32.f32 %v1073
  %v1202 = vcvt.s32.f32 %v1074
  %v1203 = vcvt.s32.f32 %v1075
  %v1204 = vcvt.s32.f32 %v1076
  %v1205 = vcvt.s32.f32 %v1077
  %v1206 = vcvt.s32.f32 %v1078
  %v1207 = vcvt.s32.f32 %v1079
  %v1208 = vcvt.s32.f32 %v1080
  %v1209 = vcvt.s32.f32 %v1081
  %v1210 = vcvt.s32.f32 %v1082
  %v1211 = vcvt.s32.f32 %v1083
  %v1212 = vcvt.s32.f32 %v1084
  %v1213 = vcvt.s32.f32 %v1085
  %v1214 = vcvt.s32.f32 %v1086
  %v1215 = vcvt.s32.f32 %v1087
  %v1216 = vcvt.s32.f32 %v1088
  %v1217 = vcvt.s32.f32 %v1089
  %v1218 = vcvt.s32.f32 %v1090
  %v1219 = vcvt.s32.f32 %v1091
  %v1220 = vcvt.s32.f32 %v1092
  %v1221 = vcvt.s32.f32 %v1093
  %v1222 = vcvt.s32.f32 %v1094
  %v1223 = vcvt.s32.f32 %v1095
  %v1224 = vcvt.s32.f32 %v1096
  %v1225 = vcvt.s32.f32 %v1097
  %v1226 = vcvt.s32.f32 %v1098
  %v1227 = vcvt.s32.f32 %v1099
  %v1228 = vcvt.s32.f32 %v1100
  %v1229 = vcvt.s32.f32 %v1101
  %v1230 = vcvt.s32.f32 %v1102
  %v1231 = vcvt.s32.f32 %v1103
  %v1232 = vcvt.s32.f32 %v1104
  %v1233 = vcvt.s32.f32 %v1105
  %v1234 = vcvt.s32.f32 %v1106
  %v1235 = vcvt.s32.f32 %v1107
  %v1236 = vcvt.s32.f32 %v1108
  %v1237 = vcvt.s32.f32 %v1109
  %v1238 = vcvt.s32.f32 %v1110
  %v1239 = vcvt.s32.f32 %v1111
  %v1240 = vcvt.s32.f32 %v1112
  %v1241 = vcvt.s32.f32 %v1113
  %v1242 = vcvt.s32.f32 %v1114
  %v1243 = vcvt.s32.f32 %v1115
  %v1244 = vcvt.s32.f32 %v1116
  %v1245 = vcvt.s32.f32 %v1117
  %v1246 = vcvt.s32.f32 %v1118
  %v1247 = vcvt.s32.f32 %v1119
  %v1248 = vld [vmem:[%s3] sm:$0xff]
  %v1249 = vld [vmem:[%s3 + $0x8] sm:$0xff]
  %v1250 = vld [vmem:[%s3 + $0x10] sm:$0xff]
  %v1251 = vld [vmem:[%s3 + $0x18] sm:$0xff]
  %v1252 = vld [vmem:[%s3 + $0x20] sm:$0xff]
  %v1253 = vld [vmem:[%s3 + $0x28] sm:$0xff]
  %v1254 = vld [vmem:[%s3 + $0x30] sm:$0xff]
  %v1255 = vld [vmem:[%s3 + $0x38] sm:$0xff]
  %v1256 = vld [vmem:[%s3 + $0x40] sm:$0xff]
  %v1257 = vld [vmem:[%s3 + $0x48] sm:$0xff]
  %v1258 = vld [vmem:[%s3 + $0x50] sm:$0xff]
  %v1259 = vld [vmem:[%s3 + $0x58] sm:$0xff]
  %v1260 = vld [vmem:[%s3 + $0x60] sm:$0xff]
  %v1261 = vld [vmem:[%s3 + $0x68] sm:$0xff]
  %v1262 = vld [vmem:[%s3 + $0x70] sm:$0xff]
  %v1263 = vld [vmem:[%s3 + $0x78] sm:$0xff]
  %v1264 = vld [vmem:[%s3 + $0x80] sm:$0xff]
  %v1265 = vld [vmem:[%s3 + $0x88] sm:$0xff]
  %v1266 = vld [vmem:[%s3 + $0x90] sm:$0xff]
  %v1267 = vld [vmem:[%s3 + $0x98] sm:$0xff]
  %v1268 = vld [vmem:[%s3 + $0xa0] sm:$0xff]
  %v1269 = vld [vmem:[%s3 + $0xa8] sm:$0xff]
  %v1270 = vld [vmem:[%s3 + $0xb0] sm:$0xff]
  %v1271 = vld [vmem:[%s3 + $0xb8] sm:$0xff]
  %v1272 = vld [vmem:[%s3 + $0xc0] sm:$0xff]
  %v1273 = vld [vmem:[%s3 + $0xc8] sm:$0xff]
  %v1274 = vld [vmem:[%s3 + $0xd0] sm:$0xff]
  %v1275 = vld [vmem:[%s3 + $0xd8] sm:$0xff]
  %v1276 = vld [vmem:[%s3 + $0xe0] sm:$0xff]
  %v1277 = vld [vmem:[%s3 + $0xe8] sm:$0xff]
  %v1278 = vld [vmem:[%s3 + $0xf0] sm:$0xff]
  %v1279 = vld [vmem:[%s3 + $0xf8] sm:$0xff]
  %v1280 = vld [vmem:[%s2] sm:$0xff]
  %v1281 = vld [vmem:[%s2 + $0x8] sm:$0xff]
  %v1282 = vld [vmem:[%s2 + $0x10] sm:$0xff]
  %v1283 = vld [vmem:[%s2 + $0x18] sm:$0xff]
  %v1284 = vld [vmem:[%s2 + $0x20] sm:$0xff]
  %v1285 = vld [vmem:[%s2 + $0x28] sm:$0xff]
  %v1286 = vld [vmem:[%s2 + $0x30] sm:$0xff]
  %v1287 = vld [vmem:[%s2 + $0x38] sm:$0xff]
  %v1288 = vld [vmem:[%s2 + $0x40] sm:$0xff]
  %v1289 = vld [vmem:[%s2 + $0x48] sm:$0xff]
  %v1290 = vld [vmem:[%s2 + $0x50] sm:$0xff]
  %v1291 = vld [vmem:[%s2 + $0x58] sm:$0xff]
  %v1292 = vld [vmem:[%s2 + $0x60] sm:$0xff]
  %v1293 = vld [vmem:[%s2 + $0x68] sm:$0xff]
  %v1294 = vld [vmem:[%s2 + $0x70] sm:$0xff]
  %v1295 = vld [vmem:[%s2 + $0x78] sm:$0xff]
  %v1296 = vld [vmem:[%s2 + $0x80] sm:$0xff]
  %v1297 = vld [vmem:[%s2 + $0x88] sm:$0xff]
  %v1298 = vld [vmem:[%s2 + $0x90] sm:$0xff]
  %v1299 = vld [vmem:[%s2 + $0x98] sm:$0xff]
  %v1300 = vld [vmem:[%s2 + $0xa0] sm:$0xff]
  %v1301 = vld [vmem:[%s2 + $0xa8] sm:$0xff]
  %v1302 = vld [vmem:[%s2 + $0xb0] sm:$0xff]
  %v1303 = vld [vmem:[%s2 + $0xb8] sm:$0xff]
  %v1304 = vld [vmem:[%s2 + $0xc0] sm:$0xff]
  %v1305 = vld [vmem:[%s2 + $0xc8] sm:$0xff]
  %v1306 = vld [vmem:[%s2 + $0xd0] sm:$0xff]
  %v1307 = vld [vmem:[%s2 + $0xd8] sm:$0xff]
  %v1308 = vld [vmem:[%s2 + $0xe0] sm:$0xff]
  %v1309 = vld [vmem:[%s2 + $0xe8] sm:$0xff]
  %v1310 = vld [vmem:[%s2 + $0xf0] sm:$0xff]
  %v1311 = vld [vmem:[%s2 + $0xf8] sm:$0xff]
  %v1312 = vld [vmem:[%s2 + $0x100] sm:$0xff]
  %v1313 = vld [vmem:[%s2 + $0x108] sm:$0xff]
  %v1314 = vld [vmem:[%s2 + $0x110] sm:$0xff]
  %v1315 = vld [vmem:[%s2 + $0x118] sm:$0xff]
  %v1316 = vld [vmem:[%s2 + $0x120] sm:$0xff]
  %v1317 = vld [vmem:[%s2 + $0x128] sm:$0xff]
  %v1318 = vld [vmem:[%s2 + $0x130] sm:$0xff]
  %v1319 = vld [vmem:[%s2 + $0x138] sm:$0xff]
  %v1320 = vld [vmem:[%s2 + $0x140] sm:$0xff]
  %v1321 = vld [vmem:[%s2 + $0x148] sm:$0xff]
  %v1322 = vld [vmem:[%s2 + $0x150] sm:$0xff]
  %v1323 = vld [vmem:[%s2 + $0x158] sm:$0xff]
  %v1324 = vld [vmem:[%s2 + $0x160] sm:$0xff]
  %v1325 = vld [vmem:[%s2 + $0x168] sm:$0xff]
  %v1326 = vld [vmem:[%s2 + $0x170] sm:$0xff]
  %v1327 = vld [vmem:[%s2 + $0x178] sm:$0xff]
  %v1328 = vld [vmem:[%s2 + $0x180] sm:$0xff]
  %v1329 = vld [vmem:[%s2 + $0x188] sm:$0xff]
  %v1330 = vld [vmem:[%s2 + $0x190] sm:$0xff]
  %v1331 = vld [vmem:[%s2 + $0x198] sm:$0xff]
  %v1332 = vld [vmem:[%s2 + $0x1a0] sm:$0xff]
  %v1333 = vld [vmem:[%s2 + $0x1a8] sm:$0xff]
  %v1334 = vld [vmem:[%s2 + $0x1b0] sm:$0xff]
  %v1335 = vld [vmem:[%s2 + $0x1b8] sm:$0xff]
  %v1336 = vld [vmem:[%s2 + $0x1c0] sm:$0xff]
  %v1337 = vld [vmem:[%s2 + $0x1c8] sm:$0xff]
  %v1338 = vld [vmem:[%s2 + $0x1d0] sm:$0xff]
  %v1339 = vld [vmem:[%s2 + $0x1d8] sm:$0xff]
  %v1340 = vld [vmem:[%s2 + $0x1e0] sm:$0xff]
  %v1341 = vld [vmem:[%s2 + $0x1e8] sm:$0xff]
  %v1342 = vld [vmem:[%s2 + $0x1f0] sm:$0xff]
  %v1343 = vld [vmem:[%s2 + $0x1f8] sm:$0xff]
  %v1344 = vld [vmem:[%s4] sm:$0xff]
  %v1345 = vld [vmem:[%s4 + $0x8] sm:$0xff]
  %v1346 = vld [vmem:[%s5] sm:$0x1]
  %v1348 = vlaneseq
  %v1349 = vshrl.u32 %v1348, 7
  %v1350 = vsub.s32 0, %v1349
  %v1351 = vrot.slane %v1346, %v1350
  %vm1353 = vcmask 130048
  %v1355 = vsel %vm1353, %v1280, 0
  %v1358 = vsel %vm1353, %v1281, 0
  %v1361 = vsel %vm1353, %v1282, 0
  %v1364 = vsel %vm1353, %v1283, 0
  %v1367 = vsel %vm1353, %v1284, 0
  %v1370 = vsel %vm1353, %v1285, 0
  %v1373 = vsel %vm1353, %v1286, 0
  %v1376 = vsel %vm1353, %v1287, 0
  %v1379 = vsel %vm1353, %v1288, 0
  %v1382 = vsel %vm1353, %v1289, 0
  %v1385 = vsel %vm1353, %v1290, 0
  %v1388 = vsel %vm1353, %v1291, 0
  %v1391 = vsel %vm1353, %v1292, 0
  %v1394 = vsel %vm1353, %v1293, 0
  %v1397 = vsel %vm1353, %v1294, 0
  %v1400 = vsel %vm1353, %v1295, 0
  %v1403 = vsel %vm1353, %v1296, 0
  %v1406 = vsel %vm1353, %v1297, 0
  %v1409 = vsel %vm1353, %v1298, 0
  %v1412 = vsel %vm1353, %v1299, 0
  %v1415 = vsel %vm1353, %v1300, 0
  %v1418 = vsel %vm1353, %v1301, 0
  %v1421 = vsel %vm1353, %v1302, 0
  %v1424 = vsel %vm1353, %v1303, 0
  %v1427 = vsel %vm1353, %v1304, 0
  %v1430 = vsel %vm1353, %v1305, 0
  %v1433 = vsel %vm1353, %v1306, 0
  %v1436 = vsel %vm1353, %v1307, 0
  %v1439 = vsel %vm1353, %v1308, 0
  %v1442 = vsel %vm1353, %v1309, 0
  %v1445 = vsel %vm1353, %v1310, 0
  %v1448 = vsel %vm1353, %v1311, 0
  %v1451 = vsel %vm1353, %v1312, 0
  %v1454 = vsel %vm1353, %v1313, 0
  %v1457 = vsel %vm1353, %v1314, 0
  %v1460 = vsel %vm1353, %v1315, 0
  %v1463 = vsel %vm1353, %v1316, 0
  %v1466 = vsel %vm1353, %v1317, 0
  %v1469 = vsel %vm1353, %v1318, 0
  %v1472 = vsel %vm1353, %v1319, 0
  %v1475 = vsel %vm1353, %v1320, 0
  %v1478 = vsel %vm1353, %v1321, 0
  %v1481 = vsel %vm1353, %v1322, 0
  %v1484 = vsel %vm1353, %v1323, 0
  %v1487 = vsel %vm1353, %v1324, 0
  %v1490 = vsel %vm1353, %v1325, 0
  %v1493 = vsel %vm1353, %v1326, 0
  %v1496 = vsel %vm1353, %v1327, 0
  %v1499 = vsel %vm1353, %v1328, 0
  %v1502 = vsel %vm1353, %v1329, 0
  %v1505 = vsel %vm1353, %v1330, 0
  %v1508 = vsel %vm1353, %v1331, 0
  %v1511 = vsel %vm1353, %v1332, 0
  %v1514 = vsel %vm1353, %v1333, 0
  %v1517 = vsel %vm1353, %v1334, 0
  %v1520 = vsel %vm1353, %v1335, 0
  %v1523 = vsel %vm1353, %v1336, 0
  %v1526 = vsel %vm1353, %v1337, 0
  %v1529 = vsel %vm1353, %v1338, 0
  %v1532 = vsel %vm1353, %v1339, 0
  %v1535 = vsel %vm1353, %v1340, 0
  %v1538 = vsel %vm1353, %v1341, 0
  %v1541 = vsel %vm1353, %v1342, 0
  %v1544 = vsel %vm1353, %v1343, 0
  %1546 = vmatprep.subr.mxu0 0.0
  %1547 = vmatpush1.msra.mxu0 %v1344
  %1548 = vmatprep.subr.mxu0 0.0
  %1549 = vmatpush1.msra.mxu0 %v1345
  %1550 = vmatprep.subr.mxu0 0.0
  %1551 = vmatpush1.msra.mxu0 0.0
  %1552 = vmatprep.subr.mxu0 0.0
  %1553 = vmatpush1.msra.mxu0 0.0
  %1554 = vmatprep.subr.mxu0 0.0
  %1555 = vmatpush1.msra.mxu0 0.0
  %1556 = vmatprep.subr.mxu0 0.0
  %1557 = vmatpush1.msra.mxu0 0.0
  %1558 = vmatprep.subr.mxu0 0.0
  %1559 = vmatpush1.msra.mxu0 0.0
  %1560 = vmatprep.subr.mxu0 0.0
  %1561 = vmatpush1.msra.mxu0 0.0
  %1562 = vmatprep.subr.mxu0 0.0
  %1563 = vmatpush1.msra.mxu0 0.0
  %1564 = vmatprep.subr.mxu0 0.0
  %1565 = vmatpush1.msra.mxu0 0.0
  %1566 = vmatprep.subr.mxu0 0.0
  %1567 = vmatpush1.msra.mxu0 0.0
  %1568 = vmatprep.subr.mxu0 0.0
  %1569 = vmatpush1.msra.mxu0 0.0
  %1570 = vmatprep.subr.mxu0 0.0
  %1571 = vmatpush1.msra.mxu0 0.0
  %1572 = vmatprep.subr.mxu0 0.0
  %1573 = vmatpush1.msra.mxu0 0.0
  %1574 = vmatprep.subr.mxu0 0.0
  %1575 = vmatpush1.msra.mxu0 0.0
  %1576 = vmatprep.subr.mxu0 0.0
  %1577 = vmatpush1.msra.mxu0 0.0
  %1578 = vmatprep.subr.mxu0 0.0
  %1579 = vmatpush1.msra.mxu0 0.0
  %1580 = vmatprep.subr.mxu0 0.0
  %1581 = vmatpush1.msra.mxu0 0.0
  %1582 = vmatprep.subr.mxu0 0.0
  %1583 = vmatpush1.msra.mxu0 0.0
  %1584 = vmatprep.subr.mxu0 0.0
  %1585 = vmatpush1.msra.mxu0 0.0
  %1586 = vmatprep.subr.mxu0 0.0
  %1587 = vmatpush1.msra.mxu0 0.0
  %1588 = vmatprep.subr.mxu0 0.0
  %1589 = vmatpush1.msra.mxu0 0.0
  %1590 = vmatprep.subr.mxu0 0.0
  %1591 = vmatpush1.msra.mxu0 0.0
  %1592 = vmatprep.subr.mxu0 0.0
  %1593 = vmatpush1.msra.mxu0 0.0
  %1594 = vmatprep.subr.mxu0 0.0
  %1595 = vmatpush1.msra.mxu0 0.0
  %1596 = vmatprep.subr.mxu0 0.0
  %1597 = vmatpush1.msra.mxu0 0.0
  %1598 = vmatprep.subr.mxu0 0.0
  %1599 = vmatpush1.msra.mxu0 0.0
  %1600 = vmatprep.subr.mxu0 0.0
  %1601 = vmatpush1.msra.mxu0 0.0
  %1602 = vmatprep.subr.mxu0 0.0
  %1603 = vmatpush1.msra.mxu0 0.0
  %1604 = vmatprep.subr.mxu0 0.0
  %1605 = vmatpush1.msra.mxu0 0.0
  %1606 = vmatprep.subr.mxu0 0.0
  %1607 = vmatpush1.msra.mxu0 0.0
  %1608 = vmatprep.subr.mxu0 0.0
  %1609 = vmatpush1.msra.mxu0 0.0
  %1610 = vmatprep.mubr.f32.mxu0 0.0
  %1611 = vmatmul.mubr.f32.gmra.mrb[0].mxu0 %v1355
  %v1612 = vpop.f32.mrb[0].mxu0
  %v1613 = vadd.f32 %v1351, %v1612
  %v1614 = vpop.f32.mrb[0].mxu0
  %1615 = vmatprep.mubr.f32.mxu0 0.0
  %1616 = vmatmul.mubr.f32.gmra.mrb[0].mxu0 %v1358
  %v1617 = vpop.f32.mrb[0].mxu0
  %v1618 = vadd.f32 %v1351, %v1617
  %v1619 = vpop.f32.mrb[0].mxu0
  %1620 = vmatprep.mubr.f32.mxu0 0.0
  %1621 = vmatmul.mubr.f32.gmra.mrb[0].mxu0 %v1361
  %v1622 = vpop.f32.mrb[0].mxu0
  %v1623 = vadd.f32 %v1351, %v1622
  %v1624 = vpop.f32.mrb[0].mxu0
  %1625 = vmatprep.mubr.f32.mxu0 0.0
  %1626 = vmatmul.mubr.f32.gmra.mrb[0].mxu0 %v1364
  %v1627 = vpop.f32.mrb[0].mxu0
  %v1628 = vadd.f32 %v1351, %v1627
  %v1629 = vpop.f32.mrb[0].mxu0
  %1630 = vmatprep.mubr.f32.mxu0 0.0
  %1631 = vmatmul.mubr.f32.gmra.mrb[0].mxu0 %v1367
  %v1632 = vpop.f32.mrb[0].mxu0
  %v1633 = vadd.f32 %v1351, %v1632
  %v1634 = vpop.f32.mrb[0].mxu0
  %1635 = vmatprep.mubr.f32.mxu0 0.0
  %1636 = vmatmul.mubr.f32.gmra.mrb[0].mxu0 %v1370
  %v1637 = vpop.f32.mrb[0].mxu0
  %v1638 = vadd.f32 %v1351, %v1637
  %v1639 = vpop.f32.mrb[0].mxu0
  %1640 = vmatprep.mubr.f32.mxu0 0.0
  %1641 = vmatmul.mubr.f32.gmra.mrb[0].mxu0 %v1373
  %v1642 = vpop.f32.mrb[0].mxu0
  %v1643 = vadd.f32 %v1351, %v1642
  %v1644 = vpop.f32.mrb[0].mxu0
  %1645 = vmatprep.mubr.f32.mxu0 0.0
  %1646 = vmatmul.mubr.f32.gmra.mrb[0].mxu0 %v1376
  %v1647 = vpop.f32.mrb[0].mxu0
  %v1648 = vadd.f32 %v1351, %v1647
  %v1649 = vpop.f32.mrb[0].mxu0
  %1650 = vmatprep.mubr.f32.mxu0 0.0
  %1651 = vmatmul.mubr.f32.gmra.mrb[0].mxu0 %v1379
  %v1652 = vpop.f32.mrb[0].mxu0
  %v1653 = vadd.f32 %v1351, %v1652
  %v1654 = vpop.f32.mrb[0].mxu0
  %1655 = vmatprep.mubr.f32.mxu0 0.0
  %1656 = vmatmul.mubr.f32.gmra.mrb[0].mxu0 %v1382
  %v1657 = vpop.f32.mrb[0].mxu0
  %v1658 = vadd.f32 %v1351, %v1657
  %v1659 = vpop.f32.mrb[0].mxu0
  %1660 = vmatprep.mubr.f32.mxu0 0.0
  %1661 = vmatmul.mubr.f32.gmra.mrb[0].mxu0 %v1385
  %v1662 = vpop.f32.mrb[0].mxu0
  %v1663 = vadd.f32 %v1351, %v1662
  %v1664 = vpop.f32.mrb[0].mxu0
  %1665 = vmatprep.mubr.f32.mxu0 0.0
  %1666 = vmatmul.mubr.f32.gmra.mrb[0].mxu0 %v1388
  %v1667 = vpop.f32.mrb[0].mxu0
  %v1668 = vadd.f32 %v1351, %v1667
  %v1669 = vpop.f32.mrb[0].mxu0
  %1670 = vmatprep.mubr.f32.mxu0 0.0
  %1671 = vmatmul.mubr.f32.gmra.mrb[0].mxu0 %v1391
  %v1672 = vpop.f32.mrb[0].mxu0
  %v1673 = vadd.f32 %v1351, %v1672
  %v1674 = vpop.f32.mrb[0].mxu0
  %1675 = vmatprep.mubr.f32.mxu0 0.0
  %1676 = vmatmul.mubr.f32.gmra.mrb[0].mxu0 %v1394
  %v1677 = vpop.f32.mrb[0].mxu0
  %v1678 = vadd.f32 %v1351, %v1677
  %v1679 = vpop.f32.mrb[0].mxu0
  %1680 = vmatprep.mubr.f32.mxu0 0.0
  %1681 = vmatmul.mubr.f32.gmra.mrb[0].mxu0 %v1397
  %v1682 = vpop.f32.mrb[0].mxu0
  %v1683 = vadd.f32 %v1351, %v1682
  %v1684 = vpop.f32.mrb[0].mxu0
  %1685 = vmatprep.mubr.f32.mxu0 0.0
  %1686 = vmatmul.mubr.f32.gmra.mrb[0].mxu0 %v1400
  %v1687 = vpop.f32.mrb[0].mxu0
  %v1688 = vadd.f32 %v1351, %v1687
  %v1689 = vpop.f32.mrb[0].mxu0
  %1690 = vmatprep.mubr.f32.mxu0 0.0
  %1691 = vmatmul.mubr.f32.gmra.mrb[0].mxu0 %v1403
  %v1692 = vpop.f32.mrb[0].mxu0
  %v1693 = vadd.f32 %v1351, %v1692
  %v1694 = vpop.f32.mrb[0].mxu0
  %1695 = vmatprep.mubr.f32.mxu0 0.0
  %1696 = vmatmul.mubr.f32.gmra.mrb[0].mxu0 %v1406
  %v1697 = vpop.f32.mrb[0].mxu0
  %v1698 = vadd.f32 %v1351, %v1697
  %v1699 = vpop.f32.mrb[0].mxu0
  %1700 = vmatprep.mubr.f32.mxu0 0.0
  %1701 = vmatmul.mubr.f32.gmra.mrb[0].mxu0 %v1409
  %v1702 = vpop.f32.mrb[0].mxu0
  %v1703 = vadd.f32 %v1351, %v1702
  %v1704 = vpop.f32.mrb[0].mxu0
  %1705 = vmatprep.mubr.f32.mxu0 0.0
  %1706 = vmatmul.mubr.f32.gmra.mrb[0].mxu0 %v1412
  %v1707 = vpop.f32.mrb[0].mxu0
  %v1708 = vadd.f32 %v1351, %v1707
  %v1709 = vpop.f32.mrb[0].mxu0
  %1710 = vmatprep.mubr.f32.mxu0 0.0
  %1711 = vmatmul.mubr.f32.gmra.mrb[0].mxu0 %v1415
  %v1712 = vpop.f32.mrb[0].mxu0
  %v1713 = vadd.f32 %v1351, %v1712
  %v1714 = vpop.f32.mrb[0].mxu0
  %1715 = vmatprep.mubr.f32.mxu0 0.0
  %1716 = vmatmul.mubr.f32.gmra.mrb[0].mxu0 %v1418
  %v1717 = vpop.f32.mrb[0].mxu0
  %v1718 = vadd.f32 %v1351, %v1717
  %v1719 = vpop.f32.mrb[0].mxu0
  %1720 = vmatprep.mubr.f32.mxu0 0.0
  %1721 = vmatmul.mubr.f32.gmra.mrb[0].mxu0 %v1421
  %v1722 = vpop.f32.mrb[0].mxu0
  %v1723 = vadd.f32 %v1351, %v1722
  %v1724 = vpop.f32.mrb[0].mxu0
  %1725 = vmatprep.mubr.f32.mxu0 0.0
  %1726 = vmatmul.mubr.f32.gmra.mrb[0].mxu0 %v1424
  %v1727 = vpop.f32.mrb[0].mxu0
  %v1728 = vadd.f32 %v1351, %v1727
  %v1729 = vpop.f32.mrb[0].mxu0
  %1730 = vmatprep.mubr.f32.mxu0 0.0
  %1731 = vmatmul.mubr.f32.gmra.mrb[0].mxu0 %v1427
  %v1732 = vpop.f32.mrb[0].mxu0
  %v1733 = vadd.f32 %v1351, %v1732
  %v1734 = vpop.f32.mrb[0].mxu0
  %1735 = vmatprep.mubr.f32.mxu0 0.0
  %1736 = vmatmul.mubr.f32.gmra.mrb[0].mxu0 %v1430
  %v1737 = vpop.f32.mrb[0].mxu0
  %v1738 = vadd.f32 %v1351, %v1737
  %v1739 = vpop.f32.mrb[0].mxu0
  %1740 = vmatprep.mubr.f32.mxu0 0.0
  %1741 = vmatmul.mubr.f32.gmra.mrb[0].mxu0 %v1433
  %v1742 = vpop.f32.mrb[0].mxu0
  %v1743 = vadd.f32 %v1351, %v1742
  %v1744 = vpop.f32.mrb[0].mxu0
  %1745 = vmatprep.mubr.f32.mxu0 0.0
  %1746 = vmatmul.mubr.f32.gmra.mrb[0].mxu0 %v1436
  %v1747 = vpop.f32.mrb[0].mxu0
  %v1748 = vadd.f32 %v1351, %v1747
  %v1749 = vpop.f32.mrb[0].mxu0
  %1750 = vmatprep.mubr.f32.mxu0 0.0
  %1751 = vmatmul.mubr.f32.gmra.mrb[0].mxu0 %v1439
  %v1752 = vpop.f32.mrb[0].mxu0
  %v1753 = vadd.f32 %v1351, %v1752
  %v1754 = vpop.f32.mrb[0].mxu0
  %1755 = vmatprep.mubr.f32.mxu0 0.0
  %1756 = vmatmul.mubr.f32.gmra.mrb[0].mxu0 %v1442
  %v1757 = vpop.f32.mrb[0].mxu0
  %v1758 = vadd.f32 %v1351, %v1757
  %v1759 = vpop.f32.mrb[0].mxu0
  %1760 = vmatprep.mubr.f32.mxu0 0.0
  %1761 = vmatmul.mubr.f32.gmra.mrb[0].mxu0 %v1445
  %v1762 = vpop.f32.mrb[0].mxu0
  %v1763 = vadd.f32 %v1351, %v1762
  %v1764 = vpop.f32.mrb[0].mxu0
  %1765 = vmatprep.mubr.f32.mxu0 0.0
  %1766 = vmatmul.mubr.f32.gmra.mrb[0].mxu0 %v1448
  %v1767 = vpop.f32.mrb[0].mxu0
  %v1768 = vadd.f32 %v1351, %v1767
  %v1769 = vpop.f32.mrb[0].mxu0
  %1770 = vmatprep.mubr.f32.mxu0 0.0
  %1771 = vmatmul.mubr.f32.gmra.mrb[0].mxu0 %v1451
  %v1772 = vpop.f32.mrb[0].mxu0
  %v1773 = vadd.f32 %v1351, %v1772
  %v1774 = vpop.f32.mrb[0].mxu0
  %1775 = vmatprep.mubr.f32.mxu0 0.0
  %1776 = vmatmul.mubr.f32.gmra.mrb[0].mxu0 %v1454
  %v1777 = vpop.f32.mrb[0].mxu0
  %v1778 = vadd.f32 %v1351, %v1777
  %v1779 = vpop.f32.mrb[0].mxu0
  %1780 = vmatprep.mubr.f32.mxu0 0.0
  %1781 = vmatmul.mubr.f32.gmra.mrb[0].mxu0 %v1457
  %v1782 = vpop.f32.mrb[0].mxu0
  %v1783 = vadd.f32 %v1351, %v1782
  %v1784 = vpop.f32.mrb[0].mxu0
  %1785 = vmatprep.mubr.f32.mxu0 0.0
  %1786 = vmatmul.mubr.f32.gmra.mrb[0].mxu0 %v1460
  %v1787 = vpop.f32.mrb[0].mxu0
  %v1788 = vadd.f32 %v1351, %v1787
  %v1789 = vpop.f32.mrb[0].mxu0
  %1790 = vmatprep.mubr.f32.mxu0 0.0
  %1791 = vmatmul.mubr.f32.gmra.mrb[0].mxu0 %v1463
  %v1792 = vpop.f32.mrb[0].mxu0
  %v1793 = vadd.f32 %v1351, %v1792
  %v1794 = vpop.f32.mrb[0].mxu0
  %1795 = vmatprep.mubr.f32.mxu0 0.0
  %1796 = vmatmul.mubr.f32.gmra.mrb[0].mxu0 %v1466
  %v1797 = vpop.f32.mrb[0].mxu0
  %v1798 = vadd.f32 %v1351, %v1797
  %v1799 = vpop.f32.mrb[0].mxu0
  %1800 = vmatprep.mubr.f32.mxu0 0.0
  %1801 = vmatmul.mubr.f32.gmra.mrb[0].mxu0 %v1469
  %v1802 = vpop.f32.mrb[0].mxu0
  %v1803 = vadd.f32 %v1351, %v1802
  %v1804 = vpop.f32.mrb[0].mxu0
  %1805 = vmatprep.mubr.f32.mxu0 0.0
  %1806 = vmatmul.mubr.f32.gmra.mrb[0].mxu0 %v1472
  %v1807 = vpop.f32.mrb[0].mxu0
  %v1808 = vadd.f32 %v1351, %v1807
  %v1809 = vpop.f32.mrb[0].mxu0
  %1810 = vmatprep.mubr.f32.mxu0 0.0
  %1811 = vmatmul.mubr.f32.gmra.mrb[0].mxu0 %v1475
  %v1812 = vpop.f32.mrb[0].mxu0
  %v1813 = vadd.f32 %v1351, %v1812
  %v1814 = vpop.f32.mrb[0].mxu0
  %1815 = vmatprep.mubr.f32.mxu0 0.0
  %1816 = vmatmul.mubr.f32.gmra.mrb[0].mxu0 %v1478
  %v1817 = vpop.f32.mrb[0].mxu0
  %v1818 = vadd.f32 %v1351, %v1817
  %v1819 = vpop.f32.mrb[0].mxu0
  %1820 = vmatprep.mubr.f32.mxu0 0.0
  %1821 = vmatmul.mubr.f32.gmra.mrb[0].mxu0 %v1481
  %v1822 = vpop.f32.mrb[0].mxu0
  %v1823 = vadd.f32 %v1351, %v1822
  %v1824 = vpop.f32.mrb[0].mxu0
  %1825 = vmatprep.mubr.f32.mxu0 0.0
  %1826 = vmatmul.mubr.f32.gmra.mrb[0].mxu0 %v1484
  %v1827 = vpop.f32.mrb[0].mxu0
  %v1828 = vadd.f32 %v1351, %v1827
  %v1829 = vpop.f32.mrb[0].mxu0
  %1830 = vmatprep.mubr.f32.mxu0 0.0
  %1831 = vmatmul.mubr.f32.gmra.mrb[0].mxu0 %v1487
  %v1832 = vpop.f32.mrb[0].mxu0
  %v1833 = vadd.f32 %v1351, %v1832
  %v1834 = vpop.f32.mrb[0].mxu0
  %1835 = vmatprep.mubr.f32.mxu0 0.0
  %1836 = vmatmul.mubr.f32.gmra.mrb[0].mxu0 %v1490
  %v1837 = vpop.f32.mrb[0].mxu0
  %v1838 = vadd.f32 %v1351, %v1837
  %v1839 = vpop.f32.mrb[0].mxu0
  %1840 = vmatprep.mubr.f32.mxu0 0.0
  %1841 = vmatmul.mubr.f32.gmra.mrb[0].mxu0 %v1493
  %v1842 = vpop.f32.mrb[0].mxu0
  %v1843 = vadd.f32 %v1351, %v1842
  %v1844 = vpop.f32.mrb[0].mxu0
  %1845 = vmatprep.mubr.f32.mxu0 0.0
  %1846 = vmatmul.mubr.f32.gmra.mrb[0].mxu0 %v1496
  %v1847 = vpop.f32.mrb[0].mxu0
  %v1848 = vadd.f32 %v1351, %v1847
  %v1849 = vpop.f32.mrb[0].mxu0
  %1850 = vmatprep.mubr.f32.mxu0 0.0
  %1851 = vmatmul.mubr.f32.gmra.mrb[0].mxu0 %v1499
  %v1852 = vpop.f32.mrb[0].mxu0
  %v1853 = vadd.f32 %v1351, %v1852
  %v1854 = vpop.f32.mrb[0].mxu0
  %1855 = vmatprep.mubr.f32.mxu0 0.0
  %1856 = vmatmul.mubr.f32.gmra.mrb[0].mxu0 %v1502
  %v1857 = vpop.f32.mrb[0].mxu0
  %v1858 = vadd.f32 %v1351, %v1857
  %v1859 = vpop.f32.mrb[0].mxu0
  %1860 = vmatprep.mubr.f32.mxu0 0.0
  %1861 = vmatmul.mubr.f32.gmra.mrb[0].mxu0 %v1505
  %v1862 = vpop.f32.mrb[0].mxu0
  %v1863 = vadd.f32 %v1351, %v1862
  %v1864 = vpop.f32.mrb[0].mxu0
  %1865 = vmatprep.mubr.f32.mxu0 0.0
  %1866 = vmatmul.mubr.f32.gmra.mrb[0].mxu0 %v1508
  %v1867 = vpop.f32.mrb[0].mxu0
  %v1868 = vadd.f32 %v1351, %v1867
  %v1869 = vpop.f32.mrb[0].mxu0
  %1870 = vmatprep.mubr.f32.mxu0 0.0
  %1871 = vmatmul.mubr.f32.gmra.mrb[0].mxu0 %v1511
  %v1872 = vpop.f32.mrb[0].mxu0
  %v1873 = vadd.f32 %v1351, %v1872
  %v1874 = vpop.f32.mrb[0].mxu0
  %1875 = vmatprep.mubr.f32.mxu0 0.0
  %1876 = vmatmul.mubr.f32.gmra.mrb[0].mxu0 %v1514
  %v1877 = vpop.f32.mrb[0].mxu0
  %v1878 = vadd.f32 %v1351, %v1877
  %v1879 = vpop.f32.mrb[0].mxu0
  %1880 = vmatprep.mubr.f32.mxu0 0.0
  %1881 = vmatmul.mubr.f32.gmra.mrb[0].mxu0 %v1517
  %v1882 = vpop.f32.mrb[0].mxu0
  %v1883 = vadd.f32 %v1351, %v1882
  %v1884 = vpop.f32.mrb[0].mxu0
  %1885 = vmatprep.mubr.f32.mxu0 0.0
  %1886 = vmatmul.mubr.f32.gmra.mrb[0].mxu0 %v1520
  %v1887 = vpop.f32.mrb[0].mxu0
  %v1888 = vadd.f32 %v1351, %v1887
  %v1889 = vpop.f32.mrb[0].mxu0
  %1890 = vmatprep.mubr.f32.mxu0 0.0
  %1891 = vmatmul.mubr.f32.gmra.mrb[0].mxu0 %v1523
  %v1892 = vpop.f32.mrb[0].mxu0
  %v1893 = vadd.f32 %v1351, %v1892
  %v1894 = vpop.f32.mrb[0].mxu0
  %1895 = vmatprep.mubr.f32.mxu0 0.0
  %1896 = vmatmul.mubr.f32.gmra.mrb[0].mxu0 %v1526
  %v1897 = vpop.f32.mrb[0].mxu0
  %v1898 = vadd.f32 %v1351, %v1897
  %v1899 = vpop.f32.mrb[0].mxu0
  %1900 = vmatprep.mubr.f32.mxu0 0.0
  %1901 = vmatmul.mubr.f32.gmra.mrb[0].mxu0 %v1529
  %v1902 = vpop.f32.mrb[0].mxu0
  %v1903 = vadd.f32 %v1351, %v1902
  %v1904 = vpop.f32.mrb[0].mxu0
  %1905 = vmatprep.mubr.f32.mxu0 0.0
  %1906 = vmatmul.mubr.f32.gmra.mrb[0].mxu0 %v1532
  %v1907 = vpop.f32.mrb[0].mxu0
  %v1908 = vadd.f32 %v1351, %v1907
  %v1909 = vpop.f32.mrb[0].mxu0
  %1910 = vmatprep.mubr.f32.mxu0 0.0
  %1911 = vmatmul.mubr.f32.gmra.mrb[0].mxu0 %v1535
  %v1912 = vpop.f32.mrb[0].mxu0
  %v1913 = vadd.f32 %v1351, %v1912
  %v1914 = vpop.f32.mrb[0].mxu0
  %1915 = vmatprep.mubr.f32.mxu0 0.0
  %1916 = vmatmul.mubr.f32.gmra.mrb[0].mxu0 %v1538
  %v1917 = vpop.f32.mrb[0].mxu0
  %v1918 = vadd.f32 %v1351, %v1917
  %v1919 = vpop.f32.mrb[0].mxu0
  %1920 = vmatprep.mubr.f32.mxu0 0.0
  %1921 = vmatmul.mubr.f32.gmra.mrb[0].mxu0 %v1541
  %v1922 = vpop.f32.mrb[0].mxu0
  %v1923 = vadd.f32 %v1351, %v1922
  %v1924 = vpop.f32.mrb[0].mxu0
  %1925 = vmatprep.mubr.f32.mxu0 0.0
  %1926 = vmatmul.mubr.f32.gmra.mrb[0].mxu0 %v1544
  %v1927 = vpop.f32.mrb[0].mxu0
  %v1928 = vadd.f32 %v1351, %v1927
  %v1929 = vpop.f32.mrb[0].mxu0
  %1930 = vdwg.mxu0
  %v1931 = vxor.u32 %v1613, 2147483648
  %v1932 = vxor.u32 %v1618, 2147483648
  %v1933 = vxor.u32 %v1623, 2147483648
  %v1934 = vxor.u32 %v1628, 2147483648
  %v1935 = vxor.u32 %v1633, 2147483648
  %v1936 = vxor.u32 %v1638, 2147483648
  %v1937 = vxor.u32 %v1643, 2147483648
  %v1938 = vxor.u32 %v1648, 2147483648
  %v1939 = vxor.u32 %v1653, 2147483648
  %v1940 = vxor.u32 %v1658, 2147483648
  %v1941 = vxor.u32 %v1663, 2147483648
  %v1942 = vxor.u32 %v1668, 2147483648
  %v1943 = vxor.u32 %v1673, 2147483648
  %v1944 = vxor.u32 %v1678, 2147483648
  %v1945 = vxor.u32 %v1683, 2147483648
  %v1946 = vxor.u32 %v1688, 2147483648
  %v1947 = vxor.u32 %v1693, 2147483648
  %v1948 = vxor.u32 %v1698, 2147483648
  %v1949 = vxor.u32 %v1703, 2147483648
  %v1950 = vxor.u32 %v1708, 2147483648
  %v1951 = vxor.u32 %v1713, 2147483648
  %v1952 = vxor.u32 %v1718, 2147483648
  %v1953 = vxor.u32 %v1723, 2147483648
  %v1954 = vxor.u32 %v1728, 2147483648
  %v1955 = vxor.u32 %v1733, 2147483648
  %v1956 = vxor.u32 %v1738, 2147483648
  %v1957 = vxor.u32 %v1743, 2147483648
  %v1958 = vxor.u32 %v1748, 2147483648
  %v1959 = vxor.u32 %v1753, 2147483648
  %v1960 = vxor.u32 %v1758, 2147483648
  %v1961 = vxor.u32 %v1763, 2147483648
  %v1962 = vxor.u32 %v1768, 2147483648
  %v1963 = vxor.u32 %v1773, 2147483648
  %v1964 = vxor.u32 %v1778, 2147483648
  %v1965 = vxor.u32 %v1783, 2147483648
  %v1966 = vxor.u32 %v1788, 2147483648
  %v1967 = vxor.u32 %v1793, 2147483648
  %v1968 = vxor.u32 %v1798, 2147483648
  %v1969 = vxor.u32 %v1803, 2147483648
  %v1970 = vxor.u32 %v1808, 2147483648
  %v1971 = vxor.u32 %v1813, 2147483648
  %v1972 = vxor.u32 %v1818, 2147483648
  %v1973 = vxor.u32 %v1823, 2147483648
  %v1974 = vxor.u32 %v1828, 2147483648
  %v1975 = vxor.u32 %v1833, 2147483648
  %v1976 = vxor.u32 %v1838, 2147483648
  %v1977 = vxor.u32 %v1843, 2147483648
  %v1978 = vxor.u32 %v1848, 2147483648
  %v1979 = vxor.u32 %v1853, 2147483648
  %v1980 = vxor.u32 %v1858, 2147483648
  %v1981 = vxor.u32 %v1863, 2147483648
  %v1982 = vxor.u32 %v1868, 2147483648
  %v1983 = vxor.u32 %v1873, 2147483648
  %v1984 = vxor.u32 %v1878, 2147483648
  %v1985 = vxor.u32 %v1883, 2147483648
  %v1986 = vxor.u32 %v1888, 2147483648
  %v1987 = vxor.u32 %v1893, 2147483648
  %v1988 = vxor.u32 %v1898, 2147483648
  %v1989 = vxor.u32 %v1903, 2147483648
  %v1990 = vxor.u32 %v1908, 2147483648
  %v1991 = vxor.u32 %v1913, 2147483648
  %v1992 = vxor.u32 %v1918, 2147483648
  %v1993 = vxor.u32 %v1923, 2147483648
  %v1994 = vxor.u32 %v1928, 2147483648
  %v1995 = vmul.f32 %v1931, 1.442695
  %v1996 = vpow.pop %v1995
  %v1997 = vmul.f32 %v1932, 1.442695
  %v1998 = vpow.pop %v1997
  %v1999 = vmul.f32 %v1933, 1.442695
  %v2000 = vpow.pop %v1999
  %v2001 = vmul.f32 %v1934, 1.442695
  %v2002 = vpow.pop %v2001
  %v2003 = vmul.f32 %v1935, 1.442695
  %v2004 = vpow.pop %v2003
  %v2005 = vmul.f32 %v1936, 1.442695
  %v2006 = vpow.pop %v2005
  %v2007 = vmul.f32 %v1937, 1.442695
  %v2008 = vpow.pop %v2007
  %v2009 = vmul.f32 %v1938, 1.442695
  %v2010 = vpow.pop %v2009
  %v2011 = vmul.f32 %v1939, 1.442695
  %v2012 = vpow.pop %v2011
  %v2013 = vmul.f32 %v1940, 1.442695
  %v2014 = vpow.pop %v2013
  %v2015 = vmul.f32 %v1941, 1.442695
  %v2016 = vpow.pop %v2015
  %v2017 = vmul.f32 %v1942, 1.442695
  %v2018 = vpow.pop %v2017
  %v2019 = vmul.f32 %v1943, 1.442695
  %v2020 = vpow.pop %v2019
  %v2021 = vmul.f32 %v1944, 1.442695
  %v2022 = vpow.pop %v2021
  %v2023 = vmul.f32 %v1945, 1.442695
  %v2024 = vpow.pop %v2023
  %v2025 = vmul.f32 %v1946, 1.442695
  %v2026 = vpow.pop %v2025
  %v2027 = vmul.f32 %v1947, 1.442695
  %v2028 = vpow.pop %v2027
  %v2029 = vmul.f32 %v1948, 1.442695
  %v2030 = vpow.pop %v2029
  %v2031 = vmul.f32 %v1949, 1.442695
  %v2032 = vpow.pop %v2031
  %v2033 = vmul.f32 %v1950, 1.442695
  %v2034 = vpow.pop %v2033
  %v2035 = vmul.f32 %v1951, 1.442695
  %v2036 = vpow.pop %v2035
  %v2037 = vmul.f32 %v1952, 1.442695
  %v2038 = vpow.pop %v2037
  %v2039 = vmul.f32 %v1953, 1.442695
  %v2040 = vpow.pop %v2039
  %v2041 = vmul.f32 %v1954, 1.442695
  %v2042 = vpow.pop %v2041
  %v2043 = vmul.f32 %v1955, 1.442695
  %v2044 = vpow.pop %v2043
  %v2045 = vmul.f32 %v1956, 1.442695
  %v2046 = vpow.pop %v2045
  %v2047 = vmul.f32 %v1957, 1.442695
  %v2048 = vpow.pop %v2047
  %v2049 = vmul.f32 %v1958, 1.442695
  %v2050 = vpow.pop %v2049
  %v2051 = vmul.f32 %v1959, 1.442695
  %v2052 = vpow.pop %v2051
  %v2053 = vmul.f32 %v1960, 1.442695
  %v2054 = vpow.pop %v2053
  %v2055 = vmul.f32 %v1961, 1.442695
  %v2056 = vpow.pop %v2055
  %v2057 = vmul.f32 %v1962, 1.442695
  %v2058 = vpow.pop %v2057
  %v2059 = vmul.f32 %v1963, 1.442695
  %v2060 = vpow.pop %v2059
  %v2061 = vmul.f32 %v1964, 1.442695
  %v2062 = vpow.pop %v2061
  %v2063 = vmul.f32 %v1965, 1.442695
  %v2064 = vpow.pop %v2063
  %v2065 = vmul.f32 %v1966, 1.442695
  %v2066 = vpow.pop %v2065
  %v2067 = vmul.f32 %v1967, 1.442695
  %v2068 = vpow.pop %v2067
  %v2069 = vmul.f32 %v1968, 1.442695
  %v2070 = vpow.pop %v2069
  %v2071 = vmul.f32 %v1969, 1.442695
  %v2072 = vpow.pop %v2071
  %v2073 = vmul.f32 %v1970, 1.442695
  %v2074 = vpow.pop %v2073
  %v2075 = vmul.f32 %v1971, 1.442695
  %v2076 = vpow.pop %v2075
  %v2077 = vmul.f32 %v1972, 1.442695
  %v2078 = vpow.pop %v2077
  %v2079 = vmul.f32 %v1973, 1.442695
  %v2080 = vpow.pop %v2079
  %v2081 = vmul.f32 %v1974, 1.442695
  %v2082 = vpow.pop %v2081
  %v2083 = vmul.f32 %v1975, 1.442695
  %v2084 = vpow.pop %v2083
  %v2085 = vmul.f32 %v1976, 1.442695
  %v2086 = vpow.pop %v2085
  %v2087 = vmul.f32 %v1977, 1.442695
  %v2088 = vpow.pop %v2087
  %v2089 = vmul.f32 %v1978, 1.442695
  %v2090 = vpow.pop %v2089
  %v2091 = vmul.f32 %v1979, 1.442695
  %v2092 = vpow.pop %v2091
  %v2093 = vmul.f32 %v1980, 1.442695
  %v2094 = vpow.pop %v2093
  %v2095 = vmul.f32 %v1981, 1.442695
  %v2096 = vpow.pop %v2095
  %v2097 = vmul.f32 %v1982, 1.442695
  %v2098 = vpow.pop %v2097
  %v2099 = vmul.f32 %v1983, 1.442695
  %v2100 = vpow.pop %v2099
  %v2101 = vmul.f32 %v1984, 1.442695
  %v2102 = vpow.pop %v2101
  %v2103 = vmul.f32 %v1985, 1.442695
  %v2104 = vpow.pop %v2103
  %v2105 = vmul.f32 %v1986, 1.442695
  %v2106 = vpow.pop %v2105
  %v2107 = vmul.f32 %v1987, 1.442695
  %v2108 = vpow.pop %v2107
  %v2109 = vmul.f32 %v1988, 1.442695
  %v2110 = vpow.pop %v2109
  %v2111 = vmul.f32 %v1989, 1.442695
  %v2112 = vpow.pop %v2111
  %v2113 = vmul.f32 %v1990, 1.442695
  %v2114 = vpow.pop %v2113
  %v2115 = vmul.f32 %v1991, 1.442695
  %v2116 = vpow.pop %v2115
  %v2117 = vmul.f32 %v1992, 1.442695
  %v2118 = vpow.pop %v2117
  %v2119 = vmul.f32 %v1993, 1.442695
  %v2120 = vpow.pop %v2119
  %v2121 = vmul.f32 %v1994, 1.442695
  %v2122 = vpow.pop %v2121
  %v2123 = vadd.f32 %v1996, 1.0
  %v2124 = vadd.f32 %v1998, 1.0
  %v2125 = vadd.f32 %v2000, 1.0
  %v2126 = vadd.f32 %v2002, 1.0
  %v2127 = vadd.f32 %v2004, 1.0
  %v2128 = vadd.f32 %v2006, 1.0
  %v2129 = vadd.f32 %v2008, 1.0
  %v2130 = vadd.f32 %v2010, 1.0
  %v2131 = vadd.f32 %v2012, 1.0
  %v2132 = vadd.f32 %v2014, 1.0
  %v2133 = vadd.f32 %v2016, 1.0
  %v2134 = vadd.f32 %v2018, 1.0
  %v2135 = vadd.f32 %v2020, 1.0
  %v2136 = vadd.f32 %v2022, 1.0
  %v2137 = vadd.f32 %v2024, 1.0
  %v2138 = vadd.f32 %v2026, 1.0
  %v2139 = vadd.f32 %v2028, 1.0
  %v2140 = vadd.f32 %v2030, 1.0
  %v2141 = vadd.f32 %v2032, 1.0
  %v2142 = vadd.f32 %v2034, 1.0
  %v2143 = vadd.f32 %v2036, 1.0
  %v2144 = vadd.f32 %v2038, 1.0
  %v2145 = vadd.f32 %v2040, 1.0
  %v2146 = vadd.f32 %v2042, 1.0
  %v2147 = vadd.f32 %v2044, 1.0
  %v2148 = vadd.f32 %v2046, 1.0
  %v2149 = vadd.f32 %v2048, 1.0
  %v2150 = vadd.f32 %v2050, 1.0
  %v2151 = vadd.f32 %v2052, 1.0
  %v2152 = vadd.f32 %v2054, 1.0
  %v2153 = vadd.f32 %v2056, 1.0
  %v2154 = vadd.f32 %v2058, 1.0
  %v2155 = vadd.f32 %v2060, 1.0
  %v2156 = vadd.f32 %v2062, 1.0
  %v2157 = vadd.f32 %v2064, 1.0
  %v2158 = vadd.f32 %v2066, 1.0
  %v2159 = vadd.f32 %v2068, 1.0
  %v2160 = vadd.f32 %v2070, 1.0
  %v2161 = vadd.f32 %v2072, 1.0
  %v2162 = vadd.f32 %v2074, 1.0
  %v2163 = vadd.f32 %v2076, 1.0
  %v2164 = vadd.f32 %v2078, 1.0
  %v2165 = vadd.f32 %v2080, 1.0
  %v2166 = vadd.f32 %v2082, 1.0
  %v2167 = vadd.f32 %v2084, 1.0
  %v2168 = vadd.f32 %v2086, 1.0
  %v2169 = vadd.f32 %v2088, 1.0
  %v2170 = vadd.f32 %v2090, 1.0
  %v2171 = vadd.f32 %v2092, 1.0
  %v2172 = vadd.f32 %v2094, 1.0
  %v2173 = vadd.f32 %v2096, 1.0
  %v2174 = vadd.f32 %v2098, 1.0
  %v2175 = vadd.f32 %v2100, 1.0
  %v2176 = vadd.f32 %v2102, 1.0
  %v2177 = vadd.f32 %v2104, 1.0
  %v2178 = vadd.f32 %v2106, 1.0
  %v2179 = vadd.f32 %v2108, 1.0
  %v2180 = vadd.f32 %v2110, 1.0
  %v2181 = vadd.f32 %v2112, 1.0
  %v2182 = vadd.f32 %v2114, 1.0
  %v2183 = vadd.f32 %v2116, 1.0
  %v2184 = vadd.f32 %v2118, 1.0
  %v2185 = vadd.f32 %v2120, 1.0
  %v2186 = vadd.f32 %v2122, 1.0
  %v2187 = vrcp.pop %v2123
  %v2188 = vmul.f32 1.0, %v2187
  %v2189 = vrcp.pop %v2124
  %v2190 = vmul.f32 1.0, %v2189
  %v2191 = vrcp.pop %v2125
  %v2192 = vmul.f32 1.0, %v2191
  %v2193 = vrcp.pop %v2126
  %v2194 = vmul.f32 1.0, %v2193
  %v2195 = vrcp.pop %v2127
  %v2196 = vmul.f32 1.0, %v2195
  %v2197 = vrcp.pop %v2128
  %v2198 = vmul.f32 1.0, %v2197
  %v2199 = vrcp.pop %v2129
  %v2200 = vmul.f32 1.0, %v2199
  %v2201 = vrcp.pop %v2130
  %v2202 = vmul.f32 1.0, %v2201
  %v2203 = vrcp.pop %v2131
  %v2204 = vmul.f32 1.0, %v2203
  %v2205 = vrcp.pop %v2132
  %v2206 = vmul.f32 1.0, %v2205
  %v2207 = vrcp.pop %v2133
  %v2208 = vmul.f32 1.0, %v2207
  %v2209 = vrcp.pop %v2134
  %v2210 = vmul.f32 1.0, %v2209
  %v2211 = vrcp.pop %v2135
  %v2212 = vmul.f32 1.0, %v2211
  %v2213 = vrcp.pop %v2136
  %v2214 = vmul.f32 1.0, %v2213
  %v2215 = vrcp.pop %v2137
  %v2216 = vmul.f32 1.0, %v2215
  %v2217 = vrcp.pop %v2138
  %v2218 = vmul.f32 1.0, %v2217
  %v2219 = vrcp.pop %v2139
  %v2220 = vmul.f32 1.0, %v2219
  %v2221 = vrcp.pop %v2140
  %v2222 = vmul.f32 1.0, %v2221
  %v2223 = vrcp.pop %v2141
  %v2224 = vmul.f32 1.0, %v2223
  %v2225 = vrcp.pop %v2142
  %v2226 = vmul.f32 1.0, %v2225
  %v2227 = vrcp.pop %v2143
  %v2228 = vmul.f32 1.0, %v2227
  %v2229 = vrcp.pop %v2144
  %v2230 = vmul.f32 1.0, %v2229
  %v2231 = vrcp.pop %v2145
  %v2232 = vmul.f32 1.0, %v2231
  %v2233 = vrcp.pop %v2146
  %v2234 = vmul.f32 1.0, %v2233
  %v2235 = vrcp.pop %v2147
  %v2236 = vmul.f32 1.0, %v2235
  %v2237 = vrcp.pop %v2148
  %v2238 = vmul.f32 1.0, %v2237
  %v2239 = vrcp.pop %v2149
  %v2240 = vmul.f32 1.0, %v2239
  %v2241 = vrcp.pop %v2150
  %v2242 = vmul.f32 1.0, %v2241
  %v2243 = vrcp.pop %v2151
  %v2244 = vmul.f32 1.0, %v2243
  %v2245 = vrcp.pop %v2152
  %v2246 = vmul.f32 1.0, %v2245
  %v2247 = vrcp.pop %v2153
  %v2248 = vmul.f32 1.0, %v2247
  %v2249 = vrcp.pop %v2154
  %v2250 = vmul.f32 1.0, %v2249
  %v2251 = vrcp.pop %v2155
  %v2252 = vmul.f32 1.0, %v2251
  %v2253 = vrcp.pop %v2156
  %v2254 = vmul.f32 1.0, %v2253
  %v2255 = vrcp.pop %v2157
  %v2256 = vmul.f32 1.0, %v2255
  %v2257 = vrcp.pop %v2158
  %v2258 = vmul.f32 1.0, %v2257
  %v2259 = vrcp.pop %v2159
  %v2260 = vmul.f32 1.0, %v2259
  %v2261 = vrcp.pop %v2160
  %v2262 = vmul.f32 1.0, %v2261
  %v2263 = vrcp.pop %v2161
  %v2264 = vmul.f32 1.0, %v2263
  %v2265 = vrcp.pop %v2162
  %v2266 = vmul.f32 1.0, %v2265
  %v2267 = vrcp.pop %v2163
  %v2268 = vmul.f32 1.0, %v2267
  %v2269 = vrcp.pop %v2164
  %v2270 = vmul.f32 1.0, %v2269
  %v2271 = vrcp.pop %v2165
  %v2272 = vmul.f32 1.0, %v2271
  %v2273 = vrcp.pop %v2166
  %v2274 = vmul.f32 1.0, %v2273
  %v2275 = vrcp.pop %v2167
  %v2276 = vmul.f32 1.0, %v2275
  %v2277 = vrcp.pop %v2168
  %v2278 = vmul.f32 1.0, %v2277
  %v2279 = vrcp.pop %v2169
  %v2280 = vmul.f32 1.0, %v2279
  %v2281 = vrcp.pop %v2170
  %v2282 = vmul.f32 1.0, %v2281
  %v2283 = vrcp.pop %v2171
  %v2284 = vmul.f32 1.0, %v2283
  %v2285 = vrcp.pop %v2172
  %v2286 = vmul.f32 1.0, %v2285
  %v2287 = vrcp.pop %v2173
  %v2288 = vmul.f32 1.0, %v2287
  %v2289 = vrcp.pop %v2174
  %v2290 = vmul.f32 1.0, %v2289
  %v2291 = vrcp.pop %v2175
  %v2292 = vmul.f32 1.0, %v2291
  %v2293 = vrcp.pop %v2176
  %v2294 = vmul.f32 1.0, %v2293
  %v2295 = vrcp.pop %v2177
  %v2296 = vmul.f32 1.0, %v2295
  %v2297 = vrcp.pop %v2178
  %v2298 = vmul.f32 1.0, %v2297
  %v2299 = vrcp.pop %v2179
  %v2300 = vmul.f32 1.0, %v2299
  %v2301 = vrcp.pop %v2180
  %v2302 = vmul.f32 1.0, %v2301
  %v2303 = vrcp.pop %v2181
  %v2304 = vmul.f32 1.0, %v2303
  %v2305 = vrcp.pop %v2182
  %v2306 = vmul.f32 1.0, %v2305
  %v2307 = vrcp.pop %v2183
  %v2308 = vmul.f32 1.0, %v2307
  %v2309 = vrcp.pop %v2184
  %v2310 = vmul.f32 1.0, %v2309
  %v2311 = vrcp.pop %v2185
  %v2312 = vmul.f32 1.0, %v2311
  %v2313 = vrcp.pop %v2186
  %v2314 = vmul.f32 1.0, %v2313
  %v2315 = vmul.f32 %v1613, %v2188
  %v2316 = vmul.f32 %v1618, %v2190
  %v2317 = vmul.f32 %v1623, %v2192
  %v2318 = vmul.f32 %v1628, %v2194
  %v2319 = vmul.f32 %v1633, %v2196
  %v2320 = vmul.f32 %v1638, %v2198
  %v2321 = vmul.f32 %v1643, %v2200
  %v2322 = vmul.f32 %v1648, %v2202
  %v2323 = vmul.f32 %v1653, %v2204
  %v2324 = vmul.f32 %v1658, %v2206
  %v2325 = vmul.f32 %v1663, %v2208
  %v2326 = vmul.f32 %v1668, %v2210
  %v2327 = vmul.f32 %v1673, %v2212
  %v2328 = vmul.f32 %v1678, %v2214
  %v2329 = vmul.f32 %v1683, %v2216
  %v2330 = vmul.f32 %v1688, %v2218
  %v2331 = vmul.f32 %v1693, %v2220
  %v2332 = vmul.f32 %v1698, %v2222
  %v2333 = vmul.f32 %v1703, %v2224
  %v2334 = vmul.f32 %v1708, %v2226
  %v2335 = vmul.f32 %v1713, %v2228
  %v2336 = vmul.f32 %v1718, %v2230
  %v2337 = vmul.f32 %v1723, %v2232
  %v2338 = vmul.f32 %v1728, %v2234
  %v2339 = vmul.f32 %v1733, %v2236
  %v2340 = vmul.f32 %v1738, %v2238
  %v2341 = vmul.f32 %v1743, %v2240
  %v2342 = vmul.f32 %v1748, %v2242
  %v2343 = vmul.f32 %v1753, %v2244
  %v2344 = vmul.f32 %v1758, %v2246
  %v2345 = vmul.f32 %v1763, %v2248
  %v2346 = vmul.f32 %v1768, %v2250
  %v2347 = vmul.f32 %v1773, %v2252
  %v2348 = vmul.f32 %v1778, %v2254
  %v2349 = vmul.f32 %v1783, %v2256
  %v2350 = vmul.f32 %v1788, %v2258
  %v2351 = vmul.f32 %v1793, %v2260
  %v2352 = vmul.f32 %v1798, %v2262
  %v2353 = vmul.f32 %v1803, %v2264
  %v2354 = vmul.f32 %v1808, %v2266
  %v2355 = vmul.f32 %v1813, %v2268
  %v2356 = vmul.f32 %v1818, %v2270
  %v2357 = vmul.f32 %v1823, %v2272
  %v2358 = vmul.f32 %v1828, %v2274
  %v2359 = vmul.f32 %v1833, %v2276
  %v2360 = vmul.f32 %v1838, %v2278
  %v2361 = vmul.f32 %v1843, %v2280
  %v2362 = vmul.f32 %v1848, %v2282
  %v2363 = vmul.f32 %v1853, %v2284
  %v2364 = vmul.f32 %v1858, %v2286
  %v2365 = vmul.f32 %v1863, %v2288
  %v2366 = vmul.f32 %v1868, %v2290
  %v2367 = vmul.f32 %v1873, %v2292
  %v2368 = vmul.f32 %v1878, %v2294
  %v2369 = vmul.f32 %v1883, %v2296
  %v2370 = vmul.f32 %v1888, %v2298
  %v2371 = vmul.f32 %v1893, %v2300
  %v2372 = vmul.f32 %v1898, %v2302
  %v2373 = vmul.f32 %v1903, %v2304
  %v2374 = vmul.f32 %v1908, %v2306
  %v2375 = vmul.f32 %v1913, %v2308
  %v2376 = vmul.f32 %v1918, %v2310
  %v2377 = vmul.f32 %v1923, %v2312
  %v2378 = vmul.f32 %v1928, %v2314
  %v2379 = vld [vmem:[%s6] sm:$0xff]
  %v2380 = vld [vmem:[%s6 + $0x8] sm:$0xff]
  %v2381 = vld [vmem:[%s6 + $0x10] sm:$0xff]
  %v2382 = vld [vmem:[%s6 + $0x18] sm:$0xff]
  %vm2383 = vcmask 261120
  %v2385 = vsel %vm2383, %v2315, 0
  %v2388 = vsel %vm2383, %v2316, 0
  %v2391 = vsel %vm2383, %v2317, 0
  %v2394 = vsel %vm2383, %v2318, 0
  %v2397 = vsel %vm2383, %v2319, 0
  %v2400 = vsel %vm2383, %v2320, 0
  %v2403 = vsel %vm2383, %v2321, 0
  %v2406 = vsel %vm2383, %v2322, 0
  %v2409 = vsel %vm2383, %v2323, 0
  %v2412 = vsel %vm2383, %v2324, 0
  %v2415 = vsel %vm2383, %v2325, 0
  %v2418 = vsel %vm2383, %v2326, 0
  %v2421 = vsel %vm2383, %v2327, 0
  %v2424 = vsel %vm2383, %v2328, 0
  %v2427 = vsel %vm2383, %v2329, 0
  %v2430 = vsel %vm2383, %v2330, 0
  %v2433 = vsel %vm2383, %v2331, 0
  %v2436 = vsel %vm2383, %v2332, 0
  %v2439 = vsel %vm2383, %v2333, 0
  %v2442 = vsel %vm2383, %v2334, 0
  %v2445 = vsel %vm2383, %v2335, 0
  %v2448 = vsel %vm2383, %v2336, 0
  %v2451 = vsel %vm2383, %v2337, 0
  %v2454 = vsel %vm2383, %v2338, 0
  %v2457 = vsel %vm2383, %v2339, 0
  %v2460 = vsel %vm2383, %v2340, 0
  %v2463 = vsel %vm2383, %v2341, 0
  %v2466 = vsel %vm2383, %v2342, 0
  %v2469 = vsel %vm2383, %v2343, 0
  %v2472 = vsel %vm2383, %v2344, 0
  %v2475 = vsel %vm2383, %v2345, 0
  %v2478 = vsel %vm2383, %v2346, 0
  %v2481 = vsel %vm2383, %v2347, 0
  %v2484 = vsel %vm2383, %v2348, 0
  %v2487 = vsel %vm2383, %v2349, 0
  %v2490 = vsel %vm2383, %v2350, 0
  %v2493 = vsel %vm2383, %v2351, 0
  %v2496 = vsel %vm2383, %v2352, 0
  %v2499 = vsel %vm2383, %v2353, 0
  %v2502 = vsel %vm2383, %v2354, 0
  %v2505 = vsel %vm2383, %v2355, 0
  %v2508 = vsel %vm2383, %v2356, 0
  %v2511 = vsel %vm2383, %v2357, 0
  %v2514 = vsel %vm2383, %v2358, 0
  %v2517 = vsel %vm2383, %v2359, 0
  %v2520 = vsel %vm2383, %v2360, 0
  %v2523 = vsel %vm2383, %v2361, 0
  %v2526 = vsel %vm2383, %v2362, 0
  %v2529 = vsel %vm2383, %v2363, 0
  %v2532 = vsel %vm2383, %v2364, 0
  %v2535 = vsel %vm2383, %v2365, 0
  %v2538 = vsel %vm2383, %v2366, 0
  %v2541 = vsel %vm2383, %v2367, 0
  %v2544 = vsel %vm2383, %v2368, 0
  %v2547 = vsel %vm2383, %v2369, 0
  %v2550 = vsel %vm2383, %v2370, 0
  %v2553 = vsel %vm2383, %v2371, 0
  %v2556 = vsel %vm2383, %v2372, 0
  %v2559 = vsel %vm2383, %v2373, 0
  %v2562 = vsel %vm2383, %v2374, 0
  %v2565 = vsel %vm2383, %v2375, 0
  %v2568 = vsel %vm2383, %v2376, 0
  %v2571 = vsel %vm2383, %v2377, 0
  %v2574 = vsel %vm2383, %v2378, 0
  %2576 = vmatprep.subr.mxu0 0.0
  %2577 = vmatpush1.msra.mxu0 %v2379
  %2578 = vmatprep.subr.mxu0 0.0
  %2579 = vmatpush1.msra.mxu0 %v2380
  %2580 = vmatprep.subr.mxu0 0.0
  %2581 = vmatpush1.msra.mxu0 %v2381
  %2582 = vmatprep.subr.mxu0 0.0
  %2583 = vmatpush1.msra.mxu0 %v2382
  %2584 = vmatprep.subr.mxu0 0.0
  %2585 = vmatpush1.msra.mxu0 0.0
  %2586 = vmatprep.subr.mxu0 0.0
  %2587 = vmatpush1.msra.mxu0 0.0
  %2588 = vmatprep.subr.mxu0 0.0
  %2589 = vmatpush1.msra.mxu0 0.0
  %2590 = vmatprep.subr.mxu0 0.0
  %2591 = vmatpush1.msra.mxu0 0.0
  %2592 = vmatprep.subr.mxu0 0.0
  %2593 = vmatpush1.msra.mxu0 0.0
  %2594 = vmatprep.subr.mxu0 0.0
  %2595 = vmatpush1.msra.mxu0 0.0
  %2596 = vmatprep.subr.mxu0 0.0
  %2597 = vmatpush1.msra.mxu0 0.0
  %2598 = vmatprep.subr.mxu0 0.0
  %2599 = vmatpush1.msra.mxu0 0.0
  %2600 = vmatprep.subr.mxu0 0.0
  %2601 = vmatpush1.msra.mxu0 0.0
  %2602 = vmatprep.subr.mxu0 0.0
  %2603 = vmatpush1.msra.mxu0 0.0
  %2604 = vmatprep.subr.mxu0 0.0
  %2605 = vmatpush1.msra.mxu0 0.0
  %2606 = vmatprep.subr.mxu0 0.0
  %2607 = vmatpush1.msra.mxu0 0.0
  %2608 = vmatprep.subr.mxu0 0.0
  %2609 = vmatpush1.msra.mxu0 0.0
  %2610 = vmatprep.subr.mxu0 0.0
  %2611 = vmatpush1.msra.mxu0 0.0
  %2612 = vmatprep.subr.mxu0 0.0
  %2613 = vmatpush1.msra.mxu0 0.0
  %2614 = vmatprep.subr.mxu0 0.0
  %2615 = vmatpush1.msra.mxu0 0.0
  %2616 = vmatprep.subr.mxu0 0.0
  %2617 = vmatpush1.msra.mxu0 0.0
  %2618 = vmatprep.subr.mxu0 0.0
  %2619 = vmatpush1.msra.mxu0 0.0
  %2620 = vmatprep.subr.mxu0 0.0
  %2621 = vmatpush1.msra.mxu0 0.0
  %2622 = vmatprep.subr.mxu0 0.0
  %2623 = vmatpush1.msra.mxu0 0.0
  %2624 = vmatprep.subr.mxu0 0.0
  %2625 = vmatpush1.msra.mxu0 0.0
  %2626 = vmatprep.subr.mxu0 0.0
  %2627 = vmatpush1.msra.mxu0 0.0
  %2628 = vmatprep.subr.mxu0 0.0
  %2629 = vmatpush1.msra.mxu0 0.0
  %2630 = vmatprep.subr.mxu0 0.0
  %2631 = vmatpush1.msra.mxu0 0.0
  %2632 = vmatprep.subr.mxu0 0.0
  %2633 = vmatpush1.msra.mxu0 0.0
  %2634 = vmatprep.subr.mxu0 0.0
  %2635 = vmatpush1.msra.mxu0 0.0
  %2636 = vmatprep.subr.mxu0 0.0
  %2637 = vmatpush1.msra.mxu0 0.0
  %2638 = vmatprep.subr.mxu0 0.0
  %2639 = vmatpush1.msra.mxu0 0.0
  %2640 = vmatprep.mubr.f32.mxu0 0.0
  %2641 = vmatmul.mubr.f32.gmra.mrb[0].mxu0 %v2385
  %v2642 = vpop.f32.mrb[0].mxu0
  %v2643 = vadd.f32 0.0, %v2642
  %v2644 = vpop.f32.mrb[0].mxu0
  %2645 = vmatprep.mubr.f32.mxu0 0.0
  %2646 = vmatmul.mubr.f32.gmra.mrb[0].mxu0 %v2388
  %v2647 = vpop.f32.mrb[0].mxu0
  %v2648 = vadd.f32 0.0, %v2647
  %v2649 = vpop.f32.mrb[0].mxu0
  %2650 = vmatprep.mubr.f32.mxu0 0.0
  %2651 = vmatmul.mubr.f32.gmra.mrb[0].mxu0 %v2391
  %v2652 = vpop.f32.mrb[0].mxu0
  %v2653 = vadd.f32 0.0, %v2652
  %v2654 = vpop.f32.mrb[0].mxu0
  %2655 = vmatprep.mubr.f32.mxu0 0.0
  %2656 = vmatmul.mubr.f32.gmra.mrb[0].mxu0 %v2394
  %v2657 = vpop.f32.mrb[0].mxu0
  %v2658 = vadd.f32 0.0, %v2657
  %v2659 = vpop.f32.mrb[0].mxu0
  %2660 = vmatprep.mubr.f32.mxu0 0.0
  %2661 = vmatmul.mubr.f32.gmra.mrb[0].mxu0 %v2397
  %v2662 = vpop.f32.mrb[0].mxu0
  %v2663 = vadd.f32 0.0, %v2662
  %v2664 = vpop.f32.mrb[0].mxu0
  %2665 = vmatprep.mubr.f32.mxu0 0.0
  %2666 = vmatmul.mubr.f32.gmra.mrb[0].mxu0 %v2400
  %v2667 = vpop.f32.mrb[0].mxu0
  %v2668 = vadd.f32 0.0, %v2667
  %v2669 = vpop.f32.mrb[0].mxu0
  %2670 = vmatprep.mubr.f32.mxu0 0.0
  %2671 = vmatmul.mubr.f32.gmra.mrb[0].mxu0 %v2403
  %v2672 = vpop.f32.mrb[0].mxu0
  %v2673 = vadd.f32 0.0, %v2672
  %v2674 = vpop.f32.mrb[0].mxu0
  %2675 = vmatprep.mubr.f32.mxu0 0.0
  %2676 = vmatmul.mubr.f32.gmra.mrb[0].mxu0 %v2406
  %v2677 = vpop.f32.mrb[0].mxu0
  %v2678 = vadd.f32 0.0, %v2677
  %v2679 = vpop.f32.mrb[0].mxu0
  %2680 = vmatprep.mubr.f32.mxu0 0.0
  %2681 = vmatmul.mubr.f32.gmra.mrb[0].mxu0 %v2409
  %v2682 = vpop.f32.mrb[0].mxu0
  %v2683 = vadd.f32 0.0, %v2682
  %v2684 = vpop.f32.mrb[0].mxu0
  %2685 = vmatprep.mubr.f32.mxu0 0.0
  %2686 = vmatmul.mubr.f32.gmra.mrb[0].mxu0 %v2412
  %v2687 = vpop.f32.mrb[0].mxu0
  %v2688 = vadd.f32 0.0, %v2687
  %v2689 = vpop.f32.mrb[0].mxu0
  %2690 = vmatprep.mubr.f32.mxu0 0.0
  %2691 = vmatmul.mubr.f32.gmra.mrb[0].mxu0 %v2415
  %v2692 = vpop.f32.mrb[0].mxu0
  %v2693 = vadd.f32 0.0, %v2692
  %v2694 = vpop.f32.mrb[0].mxu0
  %2695 = vmatprep.mubr.f32.mxu0 0.0
  %2696 = vmatmul.mubr.f32.gmra.mrb[0].mxu0 %v2418
  %v2697 = vpop.f32.mrb[0].mxu0
  %v2698 = vadd.f32 0.0, %v2697
  %v2699 = vpop.f32.mrb[0].mxu0
  %2700 = vmatprep.mubr.f32.mxu0 0.0
  %2701 = vmatmul.mubr.f32.gmra.mrb[0].mxu0 %v2421
  %v2702 = vpop.f32.mrb[0].mxu0
  %v2703 = vadd.f32 0.0, %v2702
  %v2704 = vpop.f32.mrb[0].mxu0
  %2705 = vmatprep.mubr.f32.mxu0 0.0
  %2706 = vmatmul.mubr.f32.gmra.mrb[0].mxu0 %v2424
  %v2707 = vpop.f32.mrb[0].mxu0
  %v2708 = vadd.f32 0.0, %v2707
  %v2709 = vpop.f32.mrb[0].mxu0
  %2710 = vmatprep.mubr.f32.mxu0 0.0
  %2711 = vmatmul.mubr.f32.gmra.mrb[0].mxu0 %v2427
  %v2712 = vpop.f32.mrb[0].mxu0
  %v2713 = vadd.f32 0.0, %v2712
  %v2714 = vpop.f32.mrb[0].mxu0
  %2715 = vmatprep.mubr.f32.mxu0 0.0
  %2716 = vmatmul.mubr.f32.gmra.mrb[0].mxu0 %v2430
  %v2717 = vpop.f32.mrb[0].mxu0
  %v2718 = vadd.f32 0.0, %v2717
  %v2719 = vpop.f32.mrb[0].mxu0
  %2720 = vmatprep.mubr.f32.mxu0 0.0
  %2721 = vmatmul.mubr.f32.gmra.mrb[0].mxu0 %v2433
  %v2722 = vpop.f32.mrb[0].mxu0
  %v2723 = vadd.f32 0.0, %v2722
  %v2724 = vpop.f32.mrb[0].mxu0
  %2725 = vmatprep.mubr.f32.mxu0 0.0
  %2726 = vmatmul.mubr.f32.gmra.mrb[0].mxu0 %v2436
  %v2727 = vpop.f32.mrb[0].mxu0
  %v2728 = vadd.f32 0.0, %v2727
  %v2729 = vpop.f32.mrb[0].mxu0
  %2730 = vmatprep.mubr.f32.mxu0 0.0
  %2731 = vmatmul.mubr.f32.gmra.mrb[0].mxu0 %v2439
  %v2732 = vpop.f32.mrb[0].mxu0
  %v2733 = vadd.f32 0.0, %v2732
  %v2734 = vpop.f32.mrb[0].mxu0
  %2735 = vmatprep.mubr.f32.mxu0 0.0
  %2736 = vmatmul.mubr.f32.gmra.mrb[0].mxu0 %v2442
  %v2737 = vpop.f32.mrb[0].mxu0
  %v2738 = vadd.f32 0.0, %v2737
  %v2739 = vpop.f32.mrb[0].mxu0
  %2740 = vmatprep.mubr.f32.mxu0 0.0
  %2741 = vmatmul.mubr.f32.gmra.mrb[0].mxu0 %v2445
  %v2742 = vpop.f32.mrb[0].mxu0
  %v2743 = vadd.f32 0.0, %v2742
  %v2744 = vpop.f32.mrb[0].mxu0
  %2745 = vmatprep.mubr.f32.mxu0 0.0
  %2746 = vmatmul.mubr.f32.gmra.mrb[0].mxu0 %v2448
  %v2747 = vpop.f32.mrb[0].mxu0
  %v2748 = vadd.f32 0.0, %v2747
  %v2749 = vpop.f32.mrb[0].mxu0
  %2750 = vmatprep.mubr.f32.mxu0 0.0
  %2751 = vmatmul.mubr.f32.gmra.mrb[0].mxu0 %v2451
  %v2752 = vpop.f32.mrb[0].mxu0
  %v2753 = vadd.f32 0.0, %v2752
  %v2754 = vpop.f32.mrb[0].mxu0
  %2755 = vmatprep.mubr.f32.mxu0 0.0
  %2756 = vmatmul.mubr.f32.gmra.mrb[0].mxu0 %v2454
  %v2757 = vpop.f32.mrb[0].mxu0
  %v2758 = vadd.f32 0.0, %v2757
  %v2759 = vpop.f32.mrb[0].mxu0
  %2760 = vmatprep.mubr.f32.mxu0 0.0
  %2761 = vmatmul.mubr.f32.gmra.mrb[0].mxu0 %v2457
  %v2762 = vpop.f32.mrb[0].mxu0
  %v2763 = vadd.f32 0.0, %v2762
  %v2764 = vpop.f32.mrb[0].mxu0
  %2765 = vmatprep.mubr.f32.mxu0 0.0
  %2766 = vmatmul.mubr.f32.gmra.mrb[0].mxu0 %v2460
  %v2767 = vpop.f32.mrb[0].mxu0
  %v2768 = vadd.f32 0.0, %v2767
  %v2769 = vpop.f32.mrb[0].mxu0
  %2770 = vmatprep.mubr.f32.mxu0 0.0
  %2771 = vmatmul.mubr.f32.gmra.mrb[0].mxu0 %v2463
  %v2772 = vpop.f32.mrb[0].mxu0
  %v2773 = vadd.f32 0.0, %v2772
  %v2774 = vpop.f32.mrb[0].mxu0
  %2775 = vmatprep.mubr.f32.mxu0 0.0
  %2776 = vmatmul.mubr.f32.gmra.mrb[0].mxu0 %v2466
  %v2777 = vpop.f32.mrb[0].mxu0
  %v2778 = vadd.f32 0.0, %v2777
  %v2779 = vpop.f32.mrb[0].mxu0
  %2780 = vmatprep.mubr.f32.mxu0 0.0
  %2781 = vmatmul.mubr.f32.gmra.mrb[0].mxu0 %v2469
  %v2782 = vpop.f32.mrb[0].mxu0
  %v2783 = vadd.f32 0.0, %v2782
  %v2784 = vpop.f32.mrb[0].mxu0
  %2785 = vmatprep.mubr.f32.mxu0 0.0
  %2786 = vmatmul.mubr.f32.gmra.mrb[0].mxu0 %v2472
  %v2787 = vpop.f32.mrb[0].mxu0
  %v2788 = vadd.f32 0.0, %v2787
  %v2789 = vpop.f32.mrb[0].mxu0
  %2790 = vmatprep.mubr.f32.mxu0 0.0
  %2791 = vmatmul.mubr.f32.gmra.mrb[0].mxu0 %v2475
  %v2792 = vpop.f32.mrb[0].mxu0
  %v2793 = vadd.f32 0.0, %v2792
  %v2794 = vpop.f32.mrb[0].mxu0
  %2795 = vmatprep.mubr.f32.mxu0 0.0
  %2796 = vmatmul.mubr.f32.gmra.mrb[0].mxu0 %v2478
  %v2797 = vpop.f32.mrb[0].mxu0
  %v2798 = vadd.f32 0.0, %v2797
  %v2799 = vpop.f32.mrb[0].mxu0
  %2800 = vmatprep.mubr.f32.mxu0 0.0
  %2801 = vmatmul.mubr.f32.gmra.mrb[0].mxu0 %v2481
  %v2802 = vpop.f32.mrb[0].mxu0
  %v2803 = vadd.f32 0.0, %v2802
  %v2804 = vpop.f32.mrb[0].mxu0
  %2805 = vmatprep.mubr.f32.mxu0 0.0
  %2806 = vmatmul.mubr.f32.gmra.mrb[0].mxu0 %v2484
  %v2807 = vpop.f32.mrb[0].mxu0
  %v2808 = vadd.f32 0.0, %v2807
  %v2809 = vpop.f32.mrb[0].mxu0
  %2810 = vmatprep.mubr.f32.mxu0 0.0
  %2811 = vmatmul.mubr.f32.gmra.mrb[0].mxu0 %v2487
  %v2812 = vpop.f32.mrb[0].mxu0
  %v2813 = vadd.f32 0.0, %v2812
  %v2814 = vpop.f32.mrb[0].mxu0
  %2815 = vmatprep.mubr.f32.mxu0 0.0
  %2816 = vmatmul.mubr.f32.gmra.mrb[0].mxu0 %v2490
  %v2817 = vpop.f32.mrb[0].mxu0
  %v2818 = vadd.f32 0.0, %v2817
  %v2819 = vpop.f32.mrb[0].mxu0
  %2820 = vmatprep.mubr.f32.mxu0 0.0
  %2821 = vmatmul.mubr.f32.gmra.mrb[0].mxu0 %v2493
  %v2822 = vpop.f32.mrb[0].mxu0
  %v2823 = vadd.f32 0.0, %v2822
  %v2824 = vpop.f32.mrb[0].mxu0
  %2825 = vmatprep.mubr.f32.mxu0 0.0
  %2826 = vmatmul.mubr.f32.gmra.mrb[0].mxu0 %v2496
  %v2827 = vpop.f32.mrb[0].mxu0
  %v2828 = vadd.f32 0.0, %v2827
  %v2829 = vpop.f32.mrb[0].mxu0
  %2830 = vmatprep.mubr.f32.mxu0 0.0
  %2831 = vmatmul.mubr.f32.gmra.mrb[0].mxu0 %v2499
  %v2832 = vpop.f32.mrb[0].mxu0
  %v2833 = vadd.f32 0.0, %v2832
  %v2834 = vpop.f32.mrb[0].mxu0
  %2835 = vmatprep.mubr.f32.mxu0 0.0
  %2836 = vmatmul.mubr.f32.gmra.mrb[0].mxu0 %v2502
  %v2837 = vpop.f32.mrb[0].mxu0
  %v2838 = vadd.f32 0.0, %v2837
  %v2839 = vpop.f32.mrb[0].mxu0
  %2840 = vmatprep.mubr.f32.mxu0 0.0
  %2841 = vmatmul.mubr.f32.gmra.mrb[0].mxu0 %v2505
  %v2842 = vpop.f32.mrb[0].mxu0
  %v2843 = vadd.f32 0.0, %v2842
  %v2844 = vpop.f32.mrb[0].mxu0
  %2845 = vmatprep.mubr.f32.mxu0 0.0
  %2846 = vmatmul.mubr.f32.gmra.mrb[0].mxu0 %v2508
  %v2847 = vpop.f32.mrb[0].mxu0
  %v2848 = vadd.f32 0.0, %v2847
  %v2849 = vpop.f32.mrb[0].mxu0
  %2850 = vmatprep.mubr.f32.mxu0 0.0
  %2851 = vmatmul.mubr.f32.gmra.mrb[0].mxu0 %v2511
  %v2852 = vpop.f32.mrb[0].mxu0
  %v2853 = vadd.f32 0.0, %v2852
  %v2854 = vpop.f32.mrb[0].mxu0
  %2855 = vmatprep.mubr.f32.mxu0 0.0
  %2856 = vmatmul.mubr.f32.gmra.mrb[0].mxu0 %v2514
  %v2857 = vpop.f32.mrb[0].mxu0
  %v2858 = vadd.f32 0.0, %v2857
  %v2859 = vpop.f32.mrb[0].mxu0
  %2860 = vmatprep.mubr.f32.mxu0 0.0
  %2861 = vmatmul.mubr.f32.gmra.mrb[0].mxu0 %v2517
  %v2862 = vpop.f32.mrb[0].mxu0
  %v2863 = vadd.f32 0.0, %v2862
  %v2864 = vpop.f32.mrb[0].mxu0
  %2865 = vmatprep.mubr.f32.mxu0 0.0
  %2866 = vmatmul.mubr.f32.gmra.mrb[0].mxu0 %v2520
  %v2867 = vpop.f32.mrb[0].mxu0
  %v2868 = vadd.f32 0.0, %v2867
  %v2869 = vpop.f32.mrb[0].mxu0
  %2870 = vmatprep.mubr.f32.mxu0 0.0
  %2871 = vmatmul.mubr.f32.gmra.mrb[0].mxu0 %v2523
  %v2872 = vpop.f32.mrb[0].mxu0
  %v2873 = vadd.f32 0.0, %v2872
  %v2874 = vpop.f32.mrb[0].mxu0
  %2875 = vmatprep.mubr.f32.mxu0 0.0
  %2876 = vmatmul.mubr.f32.gmra.mrb[0].mxu0 %v2526
  %v2877 = vpop.f32.mrb[0].mxu0
  %v2878 = vadd.f32 0.0, %v2877
  %v2879 = vpop.f32.mrb[0].mxu0
  %2880 = vmatprep.mubr.f32.mxu0 0.0
  %2881 = vmatmul.mubr.f32.gmra.mrb[0].mxu0 %v2529
  %v2882 = vpop.f32.mrb[0].mxu0
  %v2883 = vadd.f32 0.0, %v2882
  %v2884 = vpop.f32.mrb[0].mxu0
  %2885 = vmatprep.mubr.f32.mxu0 0.0
  %2886 = vmatmul.mubr.f32.gmra.mrb[0].mxu0 %v2532
  %v2887 = vpop.f32.mrb[0].mxu0
  %v2888 = vadd.f32 0.0, %v2887
  %v2889 = vpop.f32.mrb[0].mxu0
  %2890 = vmatprep.mubr.f32.mxu0 0.0
  %2891 = vmatmul.mubr.f32.gmra.mrb[0].mxu0 %v2535
  %v2892 = vpop.f32.mrb[0].mxu0
  %v2893 = vadd.f32 0.0, %v2892
  %v2894 = vpop.f32.mrb[0].mxu0
  %2895 = vmatprep.mubr.f32.mxu0 0.0
  %2896 = vmatmul.mubr.f32.gmra.mrb[0].mxu0 %v2538
  %v2897 = vpop.f32.mrb[0].mxu0
  %v2898 = vadd.f32 0.0, %v2897
  %v2899 = vpop.f32.mrb[0].mxu0
  %2900 = vmatprep.mubr.f32.mxu0 0.0
  %2901 = vmatmul.mubr.f32.gmra.mrb[0].mxu0 %v2541
  %v2902 = vpop.f32.mrb[0].mxu0
  %v2903 = vadd.f32 0.0, %v2902
  %v2904 = vpop.f32.mrb[0].mxu0
  %2905 = vmatprep.mubr.f32.mxu0 0.0
  %2906 = vmatmul.mubr.f32.gmra.mrb[0].mxu0 %v2544
  %v2907 = vpop.f32.mrb[0].mxu0
  %v2908 = vadd.f32 0.0, %v2907
  %v2909 = vpop.f32.mrb[0].mxu0
  %2910 = vmatprep.mubr.f32.mxu0 0.0
  %2911 = vmatmul.mubr.f32.gmra.mrb[0].mxu0 %v2547
  %v2912 = vpop.f32.mrb[0].mxu0
  %v2913 = vadd.f32 0.0, %v2912
  %v2914 = vpop.f32.mrb[0].mxu0
  %2915 = vmatprep.mubr.f32.mxu0 0.0
  %2916 = vmatmul.mubr.f32.gmra.mrb[0].mxu0 %v2550
  %v2917 = vpop.f32.mrb[0].mxu0
  %v2918 = vadd.f32 0.0, %v2917
  %v2919 = vpop.f32.mrb[0].mxu0
  %2920 = vmatprep.mubr.f32.mxu0 0.0
  %2921 = vmatmul.mubr.f32.gmra.mrb[0].mxu0 %v2553
  %v2922 = vpop.f32.mrb[0].mxu0
  %v2923 = vadd.f32 0.0, %v2922
  %v2924 = vpop.f32.mrb[0].mxu0
  %2925 = vmatprep.mubr.f32.mxu0 0.0
  %2926 = vmatmul.mubr.f32.gmra.mrb[0].mxu0 %v2556
  %v2927 = vpop.f32.mrb[0].mxu0
  %v2928 = vadd.f32 0.0, %v2927
  %v2929 = vpop.f32.mrb[0].mxu0
  %2930 = vmatprep.mubr.f32.mxu0 0.0
  %2931 = vmatmul.mubr.f32.gmra.mrb[0].mxu0 %v2559
  %v2932 = vpop.f32.mrb[0].mxu0
  %v2933 = vadd.f32 0.0, %v2932
  %v2934 = vpop.f32.mrb[0].mxu0
  %2935 = vmatprep.mubr.f32.mxu0 0.0
  %2936 = vmatmul.mubr.f32.gmra.mrb[0].mxu0 %v2562
  %v2937 = vpop.f32.mrb[0].mxu0
  %v2938 = vadd.f32 0.0, %v2937
  %v2939 = vpop.f32.mrb[0].mxu0
  %2940 = vmatprep.mubr.f32.mxu0 0.0
  %2941 = vmatmul.mubr.f32.gmra.mrb[0].mxu0 %v2565
  %v2942 = vpop.f32.mrb[0].mxu0
  %v2943 = vadd.f32 0.0, %v2942
  %v2944 = vpop.f32.mrb[0].mxu0
  %2945 = vmatprep.mubr.f32.mxu0 0.0
  %2946 = vmatmul.mubr.f32.gmra.mrb[0].mxu0 %v2568
  %v2947 = vpop.f32.mrb[0].mxu0
  %v2948 = vadd.f32 0.0, %v2947
  %v2949 = vpop.f32.mrb[0].mxu0
  %2950 = vmatprep.mubr.f32.mxu0 0.0
  %2951 = vmatmul.mubr.f32.gmra.mrb[0].mxu0 %v2571
  %v2952 = vpop.f32.mrb[0].mxu0
  %v2953 = vadd.f32 0.0, %v2952
  %v2954 = vpop.f32.mrb[0].mxu0
  %2955 = vmatprep.mubr.f32.mxu0 0.0
  %2956 = vmatmul.mubr.f32.gmra.mrb[0].mxu0 %v2574
  %v2957 = vpop.f32.mrb[0].mxu0
  %v2958 = vadd.f32 0.0, %v2957
  %v2959 = vpop.f32.mrb[0].mxu0
  %2960 = vdwg.mxu0
  %2961 = vmatprep.subr.mxu0 0.0
  %2962 = vmatpush1.msra.mxu0 %v1248
  %2963 = vmatprep.subr.mxu0 0.0
  %2964 = vmatpush1.msra.mxu0 %v1249
  %2965 = vmatprep.subr.mxu0 0.0
  %2966 = vmatpush1.msra.mxu0 %v1250
  %2967 = vmatprep.subr.mxu0 0.0
  %2968 = vmatpush1.msra.mxu0 %v1251
  %2969 = vmatprep.subr.mxu0 0.0
  %2970 = vmatpush1.msra.mxu0 %v1252
  %2971 = vmatprep.subr.mxu0 0.0
  %2972 = vmatpush1.msra.mxu0 %v1253
  %2973 = vmatprep.subr.mxu0 0.0
  %2974 = vmatpush1.msra.mxu0 %v1254
  %2975 = vmatprep.subr.mxu0 0.0
  %2976 = vmatpush1.msra.mxu0 %v1255
  %2977 = vmatprep.subr.mxu0 0.0
  %2978 = vmatpush1.msra.mxu0 %v1256
  %2979 = vmatprep.subr.mxu0 0.0
  %2980 = vmatpush1.msra.mxu0 %v1257
  %2981 = vmatprep.subr.mxu0 0.0
  %2982 = vmatpush1.msra.mxu0 %v1258
  %2983 = vmatprep.subr.mxu0 0.0
  %2984 = vmatpush1.msra.mxu0 %v1259
  %2985 = vmatprep.subr.mxu0 0.0
  %2986 = vmatpush1.msra.mxu0 %v1260
  %2987 = vmatprep.subr.mxu0 0.0
  %2988 = vmatpush1.msra.mxu0 %v1261
  %2989 = vmatprep.subr.mxu0 0.0
  %2990 = vmatpush1.msra.mxu0 %v1262
  %2991 = vmatprep.subr.mxu0 0.0
  %2992 = vmatpush1.msra.mxu0 %v1263
  %2993 = vmatprep.subr.mxu0 0.0
  %2994 = vmatpush1.msra.mxu0 %v1264
  %2995 = vmatprep.subr.mxu0 0.0
  %2996 = vmatpush1.msra.mxu0 %v1265
  %2997 = vmatprep.subr.mxu0 0.0
  %2998 = vmatpush1.msra.mxu0 %v1266
  %2999 = vmatprep.subr.mxu0 0.0
  %3000 = vmatpush1.msra.mxu0 %v1267
  %3001 = vmatprep.subr.mxu0 0.0
  %3002 = vmatpush1.msra.mxu0 %v1268
  %3003 = vmatprep.subr.mxu0 0.0
  %3004 = vmatpush1.msra.mxu0 %v1269
  %3005 = vmatprep.subr.mxu0 0.0
  %3006 = vmatpush1.msra.mxu0 %v1270
  %3007 = vmatprep.subr.mxu0 0.0
  %3008 = vmatpush1.msra.mxu0 %v1271
  %3009 = vmatprep.subr.mxu0 0.0
  %3010 = vmatpush1.msra.mxu0 %v1272
  %3011 = vmatprep.subr.mxu0 0.0
  %3012 = vmatpush1.msra.mxu0 %v1273
  %3013 = vmatprep.subr.mxu0 0.0
  %3014 = vmatpush1.msra.mxu0 %v1274
  %3015 = vmatprep.subr.mxu0 0.0
  %3016 = vmatpush1.msra.mxu0 %v1275
  %3017 = vmatprep.subr.mxu0 0.0
  %3018 = vmatpush1.msra.mxu0 %v1276
  %3019 = vmatprep.subr.mxu0 0.0
  %3020 = vmatpush1.msra.mxu0 %v1277
  %3021 = vmatprep.subr.mxu0 0.0
  %3022 = vmatpush1.msra.mxu0 %v1278
  %3023 = vmatprep.subr.mxu0 0.0
  %3024 = vmatpush1.msra.mxu0 %v1279
  %3025 = vmatprep.mubr.f32.mxu0 %v1121
  %3026 = vmatmul.mubr.f32.gmra.mrb[0].mxu0 %v1120
  %v3027 = vpop.f32.mrb[0].mxu0
  %v3028 = vadd.f32 %v2643, %v3027
  %v3029 = vpop.f32.mrb[0].mxu0
  %3030 = vmatprep.mubr.f32.mxu0 %v1123
  %3031 = vmatmul.mubr.f32.gmra.mrb[0].mxu0 %v1122
  %v3032 = vpop.f32.mrb[0].mxu0
  %v3033 = vadd.f32 %v2648, %v3032
  %v3034 = vpop.f32.mrb[0].mxu0
  %3035 = vmatprep.mubr.f32.mxu0 %v1125
  %3036 = vmatmul.mubr.f32.gmra.mrb[0].mxu0 %v1124
  %v3037 = vpop.f32.mrb[0].mxu0
  %v3038 = vadd.f32 %v2653, %v3037
  %v3039 = vpop.f32.mrb[0].mxu0
  %3040 = vmatprep.mubr.f32.mxu0 %v1127
  %3041 = vmatmul.mubr.f32.gmra.mrb[0].mxu0 %v1126
  %v3042 = vpop.f32.mrb[0].mxu0
  %v3043 = vadd.f32 %v2658, %v3042
  %v3044 = vpop.f32.mrb[0].mxu0
  %3045 = vmatprep.mubr.f32.mxu0 %v1129
  %3046 = vmatmul.mubr.f32.gmra.mrb[0].mxu0 %v1128
  %v3047 = vpop.f32.mrb[0].mxu0
  %v3048 = vadd.f32 %v2663, %v3047
  %v3049 = vpop.f32.mrb[0].mxu0
  %3050 = vmatprep.mubr.f32.mxu0 %v1131
  %3051 = vmatmul.mubr.f32.gmra.mrb[0].mxu0 %v1130
  %v3052 = vpop.f32.mrb[0].mxu0
  %v3053 = vadd.f32 %v2668, %v3052
  %v3054 = vpop.f32.mrb[0].mxu0
  %3055 = vmatprep.mubr.f32.mxu0 %v1133
  %3056 = vmatmul.mubr.f32.gmra.mrb[0].mxu0 %v1132
  %v3057 = vpop.f32.mrb[0].mxu0
  %v3058 = vadd.f32 %v2673, %v3057
  %v3059 = vpop.f32.mrb[0].mxu0
  %3060 = vmatprep.mubr.f32.mxu0 %v1135
  %3061 = vmatmul.mubr.f32.gmra.mrb[0].mxu0 %v1134
  %v3062 = vpop.f32.mrb[0].mxu0
  %v3063 = vadd.f32 %v2678, %v3062
  %v3064 = vpop.f32.mrb[0].mxu0
  %3065 = vmatprep.mubr.f32.mxu0 %v1137
  %3066 = vmatmul.mubr.f32.gmra.mrb[0].mxu0 %v1136
  %v3067 = vpop.f32.mrb[0].mxu0
  %v3068 = vadd.f32 %v2683, %v3067
  %v3069 = vpop.f32.mrb[0].mxu0
  %3070 = vmatprep.mubr.f32.mxu0 %v1139
  %3071 = vmatmul.mubr.f32.gmra.mrb[0].mxu0 %v1138
  %v3072 = vpop.f32.mrb[0].mxu0
  %v3073 = vadd.f32 %v2688, %v3072
  %v3074 = vpop.f32.mrb[0].mxu0
  %3075 = vmatprep.mubr.f32.mxu0 %v1141
  %3076 = vmatmul.mubr.f32.gmra.mrb[0].mxu0 %v1140
  %v3077 = vpop.f32.mrb[0].mxu0
  %v3078 = vadd.f32 %v2693, %v3077
  %v3079 = vpop.f32.mrb[0].mxu0
  %3080 = vmatprep.mubr.f32.mxu0 %v1143
  %3081 = vmatmul.mubr.f32.gmra.mrb[0].mxu0 %v1142
  %v3082 = vpop.f32.mrb[0].mxu0
  %v3083 = vadd.f32 %v2698, %v3082
  %v3084 = vpop.f32.mrb[0].mxu0
  %3085 = vmatprep.mubr.f32.mxu0 %v1145
  %3086 = vmatmul.mubr.f32.gmra.mrb[0].mxu0 %v1144
  %v3087 = vpop.f32.mrb[0].mxu0
  %v3088 = vadd.f32 %v2703, %v3087
  %v3089 = vpop.f32.mrb[0].mxu0
  %3090 = vmatprep.mubr.f32.mxu0 %v1147
  %3091 = vmatmul.mubr.f32.gmra.mrb[0].mxu0 %v1146
  %v3092 = vpop.f32.mrb[0].mxu0
  %v3093 = vadd.f32 %v2708, %v3092
  %v3094 = vpop.f32.mrb[0].mxu0
  %3095 = vmatprep.mubr.f32.mxu0 %v1149
  %3096 = vmatmul.mubr.f32.gmra.mrb[0].mxu0 %v1148
  %v3097 = vpop.f32.mrb[0].mxu0
  %v3098 = vadd.f32 %v2713, %v3097
  %v3099 = vpop.f32.mrb[0].mxu0
  %3100 = vmatprep.mubr.f32.mxu0 %v1151
  %3101 = vmatmul.mubr.f32.gmra.mrb[0].mxu0 %v1150
  %v3102 = vpop.f32.mrb[0].mxu0
  %v3103 = vadd.f32 %v2718, %v3102
  %v3104 = vpop.f32.mrb[0].mxu0
  %3105 = vmatprep.mubr.f32.mxu0 %v1153
  %3106 = vmatmul.mubr.f32.gmra.mrb[0].mxu0 %v1152
  %v3107 = vpop.f32.mrb[0].mxu0
  %v3108 = vadd.f32 %v2723, %v3107
  %v3109 = vpop.f32.mrb[0].mxu0
  %3110 = vmatprep.mubr.f32.mxu0 %v1155
  %3111 = vmatmul.mubr.f32.gmra.mrb[0].mxu0 %v1154
  %v3112 = vpop.f32.mrb[0].mxu0
  %v3113 = vadd.f32 %v2728, %v3112
  %v3114 = vpop.f32.mrb[0].mxu0
  %3115 = vmatprep.mubr.f32.mxu0 %v1157
  %3116 = vmatmul.mubr.f32.gmra.mrb[0].mxu0 %v1156
  %v3117 = vpop.f32.mrb[0].mxu0
  %v3118 = vadd.f32 %v2733, %v3117
  %v3119 = vpop.f32.mrb[0].mxu0
  %3120 = vmatprep.mubr.f32.mxu0 %v1159
  %3121 = vmatmul.mubr.f32.gmra.mrb[0].mxu0 %v1158
  %v3122 = vpop.f32.mrb[0].mxu0
  %v3123 = vadd.f32 %v2738, %v3122
  %v3124 = vpop.f32.mrb[0].mxu0
  %3125 = vmatprep.mubr.f32.mxu0 %v1161
  %3126 = vmatmul.mubr.f32.gmra.mrb[0].mxu0 %v1160
  %v3127 = vpop.f32.mrb[0].mxu0
  %v3128 = vadd.f32 %v2743, %v3127
  %v3129 = vpop.f32.mrb[0].mxu0
  %3130 = vmatprep.mubr.f32.mxu0 %v1163
  %3131 = vmatmul.mubr.f32.gmra.mrb[0].mxu0 %v1162
  %v3132 = vpop.f32.mrb[0].mxu0
  %v3133 = vadd.f32 %v2748, %v3132
  %v3134 = vpop.f32.mrb[0].mxu0
  %3135 = vmatprep.mubr.f32.mxu0 %v1165
  %3136 = vmatmul.mubr.f32.gmra.mrb[0].mxu0 %v1164
  %v3137 = vpop.f32.mrb[0].mxu0
  %v3138 = vadd.f32 %v2753, %v3137
  %v3139 = vpop.f32.mrb[0].mxu0
  %3140 = vmatprep.mubr.f32.mxu0 %v1167
  %3141 = vmatmul.mubr.f32.gmra.mrb[0].mxu0 %v1166
  %v3142 = vpop.f32.mrb[0].mxu0
  %v3143 = vadd.f32 %v2758, %v3142
  %v3144 = vpop.f32.mrb[0].mxu0
  %3145 = vmatprep.mubr.f32.mxu0 %v1169
  %3146 = vmatmul.mubr.f32.gmra.mrb[0].mxu0 %v1168
  %v3147 = vpop.f32.mrb[0].mxu0
  %v3148 = vadd.f32 %v2763, %v3147
  %v3149 = vpop.f32.mrb[0].mxu0
  %3150 = vmatprep.mubr.f32.mxu0 %v1171
  %3151 = vmatmul.mubr.f32.gmra.mrb[0].mxu0 %v1170
  %v3152 = vpop.f32.mrb[0].mxu0
  %v3153 = vadd.f32 %v2768, %v3152
  %v3154 = vpop.f32.mrb[0].mxu0
  %3155 = vmatprep.mubr.f32.mxu0 %v1173
  %3156 = vmatmul.mubr.f32.gmra.mrb[0].mxu0 %v1172
  %v3157 = vpop.f32.mrb[0].mxu0
  %v3158 = vadd.f32 %v2773, %v3157
  %v3159 = vpop.f32.mrb[0].mxu0
  %3160 = vmatprep.mubr.f32.mxu0 %v1175
  %3161 = vmatmul.mubr.f32.gmra.mrb[0].mxu0 %v1174
  %v3162 = vpop.f32.mrb[0].mxu0
  %v3163 = vadd.f32 %v2778, %v3162
  %v3164 = vpop.f32.mrb[0].mxu0
  %3165 = vmatprep.mubr.f32.mxu0 %v1177
  %3166 = vmatmul.mubr.f32.gmra.mrb[0].mxu0 %v1176
  %v3167 = vpop.f32.mrb[0].mxu0
  %v3168 = vadd.f32 %v2783, %v3167
  %v3169 = vpop.f32.mrb[0].mxu0
  %3170 = vmatprep.mubr.f32.mxu0 %v1179
  %3171 = vmatmul.mubr.f32.gmra.mrb[0].mxu0 %v1178
  %v3172 = vpop.f32.mrb[0].mxu0
  %v3173 = vadd.f32 %v2788, %v3172
  %v3174 = vpop.f32.mrb[0].mxu0
  %3175 = vmatprep.mubr.f32.mxu0 %v1181
  %3176 = vmatmul.mubr.f32.gmra.mrb[0].mxu0 %v1180
  %v3177 = vpop.f32.mrb[0].mxu0
  %v3178 = vadd.f32 %v2793, %v3177
  %v3179 = vpop.f32.mrb[0].mxu0
  %3180 = vmatprep.mubr.f32.mxu0 %v1183
  %3181 = vmatmul.mubr.f32.gmra.mrb[0].mxu0 %v1182
  %v3182 = vpop.f32.mrb[0].mxu0
  %v3183 = vadd.f32 %v2798, %v3182
  %v3184 = vpop.f32.mrb[0].mxu0
  %3185 = vmatprep.mubr.f32.mxu0 %v1185
  %3186 = vmatmul.mubr.f32.gmra.mrb[0].mxu0 %v1184
  %v3187 = vpop.f32.mrb[0].mxu0
  %v3188 = vadd.f32 %v2803, %v3187
  %v3189 = vpop.f32.mrb[0].mxu0
  %3190 = vmatprep.mubr.f32.mxu0 %v1187
  %3191 = vmatmul.mubr.f32.gmra.mrb[0].mxu0 %v1186
  %v3192 = vpop.f32.mrb[0].mxu0
  %v3193 = vadd.f32 %v2808, %v3192
  %v3194 = vpop.f32.mrb[0].mxu0
  %3195 = vmatprep.mubr.f32.mxu0 %v1189
  %3196 = vmatmul.mubr.f32.gmra.mrb[0].mxu0 %v1188
  %v3197 = vpop.f32.mrb[0].mxu0
  %v3198 = vadd.f32 %v2813, %v3197
  %v3199 = vpop.f32.mrb[0].mxu0
  %3200 = vmatprep.mubr.f32.mxu0 %v1191
  %3201 = vmatmul.mubr.f32.gmra.mrb[0].mxu0 %v1190
  %v3202 = vpop.f32.mrb[0].mxu0
  %v3203 = vadd.f32 %v2818, %v3202
  %v3204 = vpop.f32.mrb[0].mxu0
  %3205 = vmatprep.mubr.f32.mxu0 %v1193
  %3206 = vmatmul.mubr.f32.gmra.mrb[0].mxu0 %v1192
  %v3207 = vpop.f32.mrb[0].mxu0
  %v3208 = vadd.f32 %v2823, %v3207
  %v3209 = vpop.f32.mrb[0].mxu0
  %3210 = vmatprep.mubr.f32.mxu0 %v1195
  %3211 = vmatmul.mubr.f32.gmra.mrb[0].mxu0 %v1194
  %v3212 = vpop.f32.mrb[0].mxu0
  %v3213 = vadd.f32 %v2828, %v3212
  %v3214 = vpop.f32.mrb[0].mxu0
  %3215 = vmatprep.mubr.f32.mxu0 %v1197
  %3216 = vmatmul.mubr.f32.gmra.mrb[0].mxu0 %v1196
  %v3217 = vpop.f32.mrb[0].mxu0
  %v3218 = vadd.f32 %v2833, %v3217
  %v3219 = vpop.f32.mrb[0].mxu0
  %3220 = vmatprep.mubr.f32.mxu0 %v1199
  %3221 = vmatmul.mubr.f32.gmra.mrb[0].mxu0 %v1198
  %v3222 = vpop.f32.mrb[0].mxu0
  %v3223 = vadd.f32 %v2838, %v3222
  %v3224 = vpop.f32.mrb[0].mxu0
  %3225 = vmatprep.mubr.f32.mxu0 %v1201
  %3226 = vmatmul.mubr.f32.gmra.mrb[0].mxu0 %v1200
  %v3227 = vpop.f32.mrb[0].mxu0
  %v3228 = vadd.f32 %v2843, %v3227
  %v3229 = vpop.f32.mrb[0].mxu0
  %3230 = vmatprep.mubr.f32.mxu0 %v1203
  %3231 = vmatmul.mubr.f32.gmra.mrb[0].mxu0 %v1202
  %v3232 = vpop.f32.mrb[0].mxu0
  %v3233 = vadd.f32 %v2848, %v3232
  %v3234 = vpop.f32.mrb[0].mxu0
  %3235 = vmatprep.mubr.f32.mxu0 %v1205
  %3236 = vmatmul.mubr.f32.gmra.mrb[0].mxu0 %v1204
  %v3237 = vpop.f32.mrb[0].mxu0
  %v3238 = vadd.f32 %v2853, %v3237
  %v3239 = vpop.f32.mrb[0].mxu0
  %3240 = vmatprep.mubr.f32.mxu0 %v1207
  %3241 = vmatmul.mubr.f32.gmra.mrb[0].mxu0 %v1206
  %v3242 = vpop.f32.mrb[0].mxu0
  %v3243 = vadd.f32 %v2858, %v3242
  %v3244 = vpop.f32.mrb[0].mxu0
  %3245 = vmatprep.mubr.f32.mxu0 %v1209
  %3246 = vmatmul.mubr.f32.gmra.mrb[0].mxu0 %v1208
  %v3247 = vpop.f32.mrb[0].mxu0
  %v3248 = vadd.f32 %v2863, %v3247
  %v3249 = vpop.f32.mrb[0].mxu0
  %3250 = vmatprep.mubr.f32.mxu0 %v1211
  %3251 = vmatmul.mubr.f32.gmra.mrb[0].mxu0 %v1210
  %v3252 = vpop.f32.mrb[0].mxu0
  %v3253 = vadd.f32 %v2868, %v3252
  %v3254 = vpop.f32.mrb[0].mxu0
  %3255 = vmatprep.mubr.f32.mxu0 %v1213
  %3256 = vmatmul.mubr.f32.gmra.mrb[0].mxu0 %v1212
  %v3257 = vpop.f32.mrb[0].mxu0
  %v3258 = vadd.f32 %v2873, %v3257
  %v3259 = vpop.f32.mrb[0].mxu0
  %3260 = vmatprep.mubr.f32.mxu0 %v1215
  %3261 = vmatmul.mubr.f32.gmra.mrb[0].mxu0 %v1214
  %v3262 = vpop.f32.mrb[0].mxu0
  %v3263 = vadd.f32 %v2878, %v3262
  %v3264 = vpop.f32.mrb[0].mxu0
  %3265 = vmatprep.mubr.f32.mxu0 %v1217
  %3266 = vmatmul.mubr.f32.gmra.mrb[0].mxu0 %v1216
  %v3267 = vpop.f32.mrb[0].mxu0
  %v3268 = vadd.f32 %v2883, %v3267
  %v3269 = vpop.f32.mrb[0].mxu0
  %3270 = vmatprep.mubr.f32.mxu0 %v1219
  %3271 = vmatmul.mubr.f32.gmra.mrb[0].mxu0 %v1218
  %v3272 = vpop.f32.mrb[0].mxu0
  %v3273 = vadd.f32 %v2888, %v3272
  %v3274 = vpop.f32.mrb[0].mxu0
  %3275 = vmatprep.mubr.f32.mxu0 %v1221
  %3276 = vmatmul.mubr.f32.gmra.mrb[0].mxu0 %v1220
  %v3277 = vpop.f32.mrb[0].mxu0
  %v3278 = vadd.f32 %v2893, %v3277
  %v3279 = vpop.f32.mrb[0].mxu0
  %3280 = vmatprep.mubr.f32.mxu0 %v1223
  %3281 = vmatmul.mubr.f32.gmra.mrb[0].mxu0 %v1222
  %v3282 = vpop.f32.mrb[0].mxu0
  %v3283 = vadd.f32 %v2898, %v3282
  %v3284 = vpop.f32.mrb[0].mxu0
  %3285 = vmatprep.mubr.f32.mxu0 %v1225
  %3286 = vmatmul.mubr.f32.gmra.mrb[0].mxu0 %v1224
  %v3287 = vpop.f32.mrb[0].mxu0
  %v3288 = vadd.f32 %v2903, %v3287
  %v3289 = vpop.f32.mrb[0].mxu0
  %3290 = vmatprep.mubr.f32.mxu0 %v1227
  %3291 = vmatmul.mubr.f32.gmra.mrb[0].mxu0 %v1226
  %v3292 = vpop.f32.mrb[0].mxu0
  %v3293 = vadd.f32 %v2908, %v3292
  %v3294 = vpop.f32.mrb[0].mxu0
  %3295 = vmatprep.mubr.f32.mxu0 %v1229
  %3296 = vmatmul.mubr.f32.gmra.mrb[0].mxu0 %v1228
  %v3297 = vpop.f32.mrb[0].mxu0
  %v3298 = vadd.f32 %v2913, %v3297
  %v3299 = vpop.f32.mrb[0].mxu0
  %3300 = vmatprep.mubr.f32.mxu0 %v1231
  %3301 = vmatmul.mubr.f32.gmra.mrb[0].mxu0 %v1230
  %v3302 = vpop.f32.mrb[0].mxu0
  %v3303 = vadd.f32 %v2918, %v3302
  %v3304 = vpop.f32.mrb[0].mxu0
  %3305 = vmatprep.mubr.f32.mxu0 %v1233
  %3306 = vmatmul.mubr.f32.gmra.mrb[0].mxu0 %v1232
  %v3307 = vpop.f32.mrb[0].mxu0
  %v3308 = vadd.f32 %v2923, %v3307
  %v3309 = vpop.f32.mrb[0].mxu0
  %3310 = vmatprep.mubr.f32.mxu0 %v1235
  %3311 = vmatmul.mubr.f32.gmra.mrb[0].mxu0 %v1234
  %v3312 = vpop.f32.mrb[0].mxu0
  %v3313 = vadd.f32 %v2928, %v3312
  %v3314 = vpop.f32.mrb[0].mxu0
  %3315 = vmatprep.mubr.f32.mxu0 %v1237
  %3316 = vmatmul.mubr.f32.gmra.mrb[0].mxu0 %v1236
  %v3317 = vpop.f32.mrb[0].mxu0
  %v3318 = vadd.f32 %v2933, %v3317
  %v3319 = vpop.f32.mrb[0].mxu0
  %3320 = vmatprep.mubr.f32.mxu0 %v1239
  %3321 = vmatmul.mubr.f32.gmra.mrb[0].mxu0 %v1238
  %v3322 = vpop.f32.mrb[0].mxu0
  %v3323 = vadd.f32 %v2938, %v3322
  %v3324 = vpop.f32.mrb[0].mxu0
  %3325 = vmatprep.mubr.f32.mxu0 %v1241
  %3326 = vmatmul.mubr.f32.gmra.mrb[0].mxu0 %v1240
  %v3327 = vpop.f32.mrb[0].mxu0
  %v3328 = vadd.f32 %v2943, %v3327
  %v3329 = vpop.f32.mrb[0].mxu0
  %3330 = vmatprep.mubr.f32.mxu0 %v1243
  %3331 = vmatmul.mubr.f32.gmra.mrb[0].mxu0 %v1242
  %v3332 = vpop.f32.mrb[0].mxu0
  %v3333 = vadd.f32 %v2948, %v3332
  %v3334 = vpop.f32.mrb[0].mxu0
  %3335 = vmatprep.mubr.f32.mxu0 %v1245
  %3336 = vmatmul.mubr.f32.gmra.mrb[0].mxu0 %v1244
  %v3337 = vpop.f32.mrb[0].mxu0
  %v3338 = vadd.f32 %v2953, %v3337
  %v3339 = vpop.f32.mrb[0].mxu0
  %3340 = vmatprep.mubr.f32.mxu0 %v1247
  %3341 = vmatmul.mubr.f32.gmra.mrb[0].mxu0 %v1246
  %v3342 = vpop.f32.mrb[0].mxu0
  %v3343 = vadd.f32 %v2958, %v3342
  %v3344 = vpop.f32.mrb[0].mxu0
  %3345 = vdwg.mxu0
  %v3346 = vld [vmem:[%s7] sm:$0x1]
  %v3348 = vlaneseq
  %v3349 = vshrl.u32 %v3348, 7
  %v3350 = vsub.s32 0, %v3349
  %v3351 = vrot.slane %v3346, %v3350
  %v3353 = vadd.f32 %v3028, %v3351
  %v3354 = vadd.f32 %v3033, %v3351
  %v3355 = vadd.f32 %v3038, %v3351
  %v3356 = vadd.f32 %v3043, %v3351
  %v3357 = vadd.f32 %v3048, %v3351
  %v3358 = vadd.f32 %v3053, %v3351
  %v3359 = vadd.f32 %v3058, %v3351
  %v3360 = vadd.f32 %v3063, %v3351
  %v3361 = vadd.f32 %v3068, %v3351
  %v3362 = vadd.f32 %v3073, %v3351
  %v3363 = vadd.f32 %v3078, %v3351
  %v3364 = vadd.f32 %v3083, %v3351
  %v3365 = vadd.f32 %v3088, %v3351
  %v3366 = vadd.f32 %v3093, %v3351
  %v3367 = vadd.f32 %v3098, %v3351
  %v3368 = vadd.f32 %v3103, %v3351
  %v3369 = vadd.f32 %v3108, %v3351
  %v3370 = vadd.f32 %v3113, %v3351
  %v3371 = vadd.f32 %v3118, %v3351
  %v3372 = vadd.f32 %v3123, %v3351
  %v3373 = vadd.f32 %v3128, %v3351
  %v3374 = vadd.f32 %v3133, %v3351
  %v3375 = vadd.f32 %v3138, %v3351
  %v3376 = vadd.f32 %v3143, %v3351
  %v3377 = vadd.f32 %v3148, %v3351
  %v3378 = vadd.f32 %v3153, %v3351
  %v3379 = vadd.f32 %v3158, %v3351
  %v3380 = vadd.f32 %v3163, %v3351
  %v3381 = vadd.f32 %v3168, %v3351
  %v3382 = vadd.f32 %v3173, %v3351
  %v3383 = vadd.f32 %v3178, %v3351
  %v3384 = vadd.f32 %v3183, %v3351
  %v3385 = vadd.f32 %v3188, %v3351
  %v3386 = vadd.f32 %v3193, %v3351
  %v3387 = vadd.f32 %v3198, %v3351
  %v3388 = vadd.f32 %v3203, %v3351
  %v3389 = vadd.f32 %v3208, %v3351
  %v3390 = vadd.f32 %v3213, %v3351
  %v3391 = vadd.f32 %v3218, %v3351
  %v3392 = vadd.f32 %v3223, %v3351
  %v3393 = vadd.f32 %v3228, %v3351
  %v3394 = vadd.f32 %v3233, %v3351
  %v3395 = vadd.f32 %v3238, %v3351
  %v3396 = vadd.f32 %v3243, %v3351
  %v3397 = vadd.f32 %v3248, %v3351
  %v3398 = vadd.f32 %v3253, %v3351
  %v3399 = vadd.f32 %v3258, %v3351
  %v3400 = vadd.f32 %v3263, %v3351
  %v3401 = vadd.f32 %v3268, %v3351
  %v3402 = vadd.f32 %v3273, %v3351
  %v3403 = vadd.f32 %v3278, %v3351
  %v3404 = vadd.f32 %v3283, %v3351
  %v3405 = vadd.f32 %v3288, %v3351
  %v3406 = vadd.f32 %v3293, %v3351
  %v3407 = vadd.f32 %v3298, %v3351
  %v3408 = vadd.f32 %v3303, %v3351
  %v3409 = vadd.f32 %v3308, %v3351
  %v3410 = vadd.f32 %v3313, %v3351
  %v3411 = vadd.f32 %v3318, %v3351
  %v3412 = vadd.f32 %v3323, %v3351
  %v3413 = vadd.f32 %v3328, %v3351
  %v3414 = vadd.f32 %v3333, %v3351
  %v3415 = vadd.f32 %v3338, %v3351
  %v3416 = vadd.f32 %v3343, %v3351
  %v3417 = vxor.u32 %v3353, 2147483648
  %v3418 = vxor.u32 %v3354, 2147483648
  %v3419 = vxor.u32 %v3355, 2147483648
  %v3420 = vxor.u32 %v3356, 2147483648
  %v3421 = vxor.u32 %v3357, 2147483648
  %v3422 = vxor.u32 %v3358, 2147483648
  %v3423 = vxor.u32 %v3359, 2147483648
  %v3424 = vxor.u32 %v3360, 2147483648
  %v3425 = vxor.u32 %v3361, 2147483648
  %v3426 = vxor.u32 %v3362, 2147483648
  %v3427 = vxor.u32 %v3363, 2147483648
  %v3428 = vxor.u32 %v3364, 2147483648
  %v3429 = vxor.u32 %v3365, 2147483648
  %v3430 = vxor.u32 %v3366, 2147483648
  %v3431 = vxor.u32 %v3367, 2147483648
  %v3432 = vxor.u32 %v3368, 2147483648
  %v3433 = vxor.u32 %v3369, 2147483648
  %v3434 = vxor.u32 %v3370, 2147483648
  %v3435 = vxor.u32 %v3371, 2147483648
  %v3436 = vxor.u32 %v3372, 2147483648
  %v3437 = vxor.u32 %v3373, 2147483648
  %v3438 = vxor.u32 %v3374, 2147483648
  %v3439 = vxor.u32 %v3375, 2147483648
  %v3440 = vxor.u32 %v3376, 2147483648
  %v3441 = vxor.u32 %v3377, 2147483648
  %v3442 = vxor.u32 %v3378, 2147483648
  %v3443 = vxor.u32 %v3379, 2147483648
  %v3444 = vxor.u32 %v3380, 2147483648
  %v3445 = vxor.u32 %v3381, 2147483648
  %v3446 = vxor.u32 %v3382, 2147483648
  %v3447 = vxor.u32 %v3383, 2147483648
  %v3448 = vxor.u32 %v3384, 2147483648
  %v3449 = vxor.u32 %v3385, 2147483648
  %v3450 = vxor.u32 %v3386, 2147483648
  %v3451 = vxor.u32 %v3387, 2147483648
  %v3452 = vxor.u32 %v3388, 2147483648
  %v3453 = vxor.u32 %v3389, 2147483648
  %v3454 = vxor.u32 %v3390, 2147483648
  %v3455 = vxor.u32 %v3391, 2147483648
  %v3456 = vxor.u32 %v3392, 2147483648
  %v3457 = vxor.u32 %v3393, 2147483648
  %v3458 = vxor.u32 %v3394, 2147483648
  %v3459 = vxor.u32 %v3395, 2147483648
  %v3460 = vxor.u32 %v3396, 2147483648
  %v3461 = vxor.u32 %v3397, 2147483648
  %v3462 = vxor.u32 %v3398, 2147483648
  %v3463 = vxor.u32 %v3399, 2147483648
  %v3464 = vxor.u32 %v3400, 2147483648
  %v3465 = vxor.u32 %v3401, 2147483648
  %v3466 = vxor.u32 %v3402, 2147483648
  %v3467 = vxor.u32 %v3403, 2147483648
  %v3468 = vxor.u32 %v3404, 2147483648
  %v3469 = vxor.u32 %v3405, 2147483648
  %v3470 = vxor.u32 %v3406, 2147483648
  %v3471 = vxor.u32 %v3407, 2147483648
  %v3472 = vxor.u32 %v3408, 2147483648
  %v3473 = vxor.u32 %v3409, 2147483648
  %v3474 = vxor.u32 %v3410, 2147483648
  %v3475 = vxor.u32 %v3411, 2147483648
  %v3476 = vxor.u32 %v3412, 2147483648
  %v3477 = vxor.u32 %v3413, 2147483648
  %v3478 = vxor.u32 %v3414, 2147483648
  %v3479 = vxor.u32 %v3415, 2147483648
  %v3480 = vxor.u32 %v3416, 2147483648
  %v3481 = vmul.f32 %v3417, 1.442695
  %v3482 = vpow.pop %v3481
  %v3483 = vmul.f32 %v3418, 1.442695
  %v3484 = vpow.pop %v3483
  %v3485 = vmul.f32 %v3419, 1.442695
  %v3486 = vpow.pop %v3485
  %v3487 = vmul.f32 %v3420, 1.442695
  %v3488 = vpow.pop %v3487
  %v3489 = vmul.f32 %v3421, 1.442695
  %v3490 = vpow.pop %v3489
  %v3491 = vmul.f32 %v3422, 1.442695
  %v3492 = vpow.pop %v3491
  %v3493 = vmul.f32 %v3423, 1.442695
  %v3494 = vpow.pop %v3493
  %v3495 = vmul.f32 %v3424, 1.442695
  %v3496 = vpow.pop %v3495
  %v3497 = vmul.f32 %v3425, 1.442695
  %v3498 = vpow.pop %v3497
  %v3499 = vmul.f32 %v3426, 1.442695
  %v3500 = vpow.pop %v3499
  %v3501 = vmul.f32 %v3427, 1.442695
  %v3502 = vpow.pop %v3501
  %v3503 = vmul.f32 %v3428, 1.442695
  %v3504 = vpow.pop %v3503
  %v3505 = vmul.f32 %v3429, 1.442695
  %v3506 = vpow.pop %v3505
  %v3507 = vmul.f32 %v3430, 1.442695
  %v3508 = vpow.pop %v3507
  %v3509 = vmul.f32 %v3431, 1.442695
  %v3510 = vpow.pop %v3509
  %v3511 = vmul.f32 %v3432, 1.442695
  %v3512 = vpow.pop %v3511
  %v3513 = vmul.f32 %v3433, 1.442695
  %v3514 = vpow.pop %v3513
  %v3515 = vmul.f32 %v3434, 1.442695
  %v3516 = vpow.pop %v3515
  %v3517 = vmul.f32 %v3435, 1.442695
  %v3518 = vpow.pop %v3517
  %v3519 = vmul.f32 %v3436, 1.442695
  %v3520 = vpow.pop %v3519
  %v3521 = vmul.f32 %v3437, 1.442695
  %v3522 = vpow.pop %v3521
  %v3523 = vmul.f32 %v3438, 1.442695
  %v3524 = vpow.pop %v3523
  %v3525 = vmul.f32 %v3439, 1.442695
  %v3526 = vpow.pop %v3525
  %v3527 = vmul.f32 %v3440, 1.442695
  %v3528 = vpow.pop %v3527
  %v3529 = vmul.f32 %v3441, 1.442695
  %v3530 = vpow.pop %v3529
  %v3531 = vmul.f32 %v3442, 1.442695
  %v3532 = vpow.pop %v3531
  %v3533 = vmul.f32 %v3443, 1.442695
  %v3534 = vpow.pop %v3533
  %v3535 = vmul.f32 %v3444, 1.442695
  %v3536 = vpow.pop %v3535
  %v3537 = vmul.f32 %v3445, 1.442695
  %v3538 = vpow.pop %v3537
  %v3539 = vmul.f32 %v3446, 1.442695
  %v3540 = vpow.pop %v3539
  %v3541 = vmul.f32 %v3447, 1.442695
  %v3542 = vpow.pop %v3541
  %v3543 = vmul.f32 %v3448, 1.442695
  %v3544 = vpow.pop %v3543
  %v3545 = vmul.f32 %v3449, 1.442695
  %v3546 = vpow.pop %v3545
  %v3547 = vmul.f32 %v3450, 1.442695
  %v3548 = vpow.pop %v3547
  %v3549 = vmul.f32 %v3451, 1.442695
  %v3550 = vpow.pop %v3549
  %v3551 = vmul.f32 %v3452, 1.442695
  %v3552 = vpow.pop %v3551
  %v3553 = vmul.f32 %v3453, 1.442695
  %v3554 = vpow.pop %v3553
  %v3555 = vmul.f32 %v3454, 1.442695
  %v3556 = vpow.pop %v3555
  %v3557 = vmul.f32 %v3455, 1.442695
  %v3558 = vpow.pop %v3557
  %v3559 = vmul.f32 %v3456, 1.442695
  %v3560 = vpow.pop %v3559
  %v3561 = vmul.f32 %v3457, 1.442695
  %v3562 = vpow.pop %v3561
  %v3563 = vmul.f32 %v3458, 1.442695
  %v3564 = vpow.pop %v3563
  %v3565 = vmul.f32 %v3459, 1.442695
  %v3566 = vpow.pop %v3565
  %v3567 = vmul.f32 %v3460, 1.442695
  %v3568 = vpow.pop %v3567
  %v3569 = vmul.f32 %v3461, 1.442695
  %v3570 = vpow.pop %v3569
  %v3571 = vmul.f32 %v3462, 1.442695
  %v3572 = vpow.pop %v3571
  %v3573 = vmul.f32 %v3463, 1.442695
  %v3574 = vpow.pop %v3573
  %v3575 = vmul.f32 %v3464, 1.442695
  %v3576 = vpow.pop %v3575
  %v3577 = vmul.f32 %v3465, 1.442695
  %v3578 = vpow.pop %v3577
  %v3579 = vmul.f32 %v3466, 1.442695
  %v3580 = vpow.pop %v3579
  %v3581 = vmul.f32 %v3467, 1.442695
  %v3582 = vpow.pop %v3581
  %v3583 = vmul.f32 %v3468, 1.442695
  %v3584 = vpow.pop %v3583
  %v3585 = vmul.f32 %v3469, 1.442695
  %v3586 = vpow.pop %v3585
  %v3587 = vmul.f32 %v3470, 1.442695
  %v3588 = vpow.pop %v3587
  %v3589 = vmul.f32 %v3471, 1.442695
  %v3590 = vpow.pop %v3589
  %v3591 = vmul.f32 %v3472, 1.442695
  %v3592 = vpow.pop %v3591
  %v3593 = vmul.f32 %v3473, 1.442695
  %v3594 = vpow.pop %v3593
  %v3595 = vmul.f32 %v3474, 1.442695
  %v3596 = vpow.pop %v3595
  %v3597 = vmul.f32 %v3475, 1.442695
  %v3598 = vpow.pop %v3597
  %v3599 = vmul.f32 %v3476, 1.442695
  %v3600 = vpow.pop %v3599
  %v3601 = vmul.f32 %v3477, 1.442695
  %v3602 = vpow.pop %v3601
  %v3603 = vmul.f32 %v3478, 1.442695
  %v3604 = vpow.pop %v3603
  %v3605 = vmul.f32 %v3479, 1.442695
  %v3606 = vpow.pop %v3605
  %v3607 = vmul.f32 %v3480, 1.442695
  %v3608 = vpow.pop %v3607
  %v3609 = vadd.f32 %v3482, 1.0
  %v3610 = vadd.f32 %v3484, 1.0
  %v3611 = vadd.f32 %v3486, 1.0
  %v3612 = vadd.f32 %v3488, 1.0
  %v3613 = vadd.f32 %v3490, 1.0
  %v3614 = vadd.f32 %v3492, 1.0
  %v3615 = vadd.f32 %v3494, 1.0
  %v3616 = vadd.f32 %v3496, 1.0
  %v3617 = vadd.f32 %v3498, 1.0
  %v3618 = vadd.f32 %v3500, 1.0
  %v3619 = vadd.f32 %v3502, 1.0
  %v3620 = vadd.f32 %v3504, 1.0
  %v3621 = vadd.f32 %v3506, 1.0
  %v3622 = vadd.f32 %v3508, 1.0
  %v3623 = vadd.f32 %v3510, 1.0
  %v3624 = vadd.f32 %v3512, 1.0
  %v3625 = vadd.f32 %v3514, 1.0
  %v3626 = vadd.f32 %v3516, 1.0
  %v3627 = vadd.f32 %v3518, 1.0
  %v3628 = vadd.f32 %v3520, 1.0
  %v3629 = vadd.f32 %v3522, 1.0
  %v3630 = vadd.f32 %v3524, 1.0
  %v3631 = vadd.f32 %v3526, 1.0
  %v3632 = vadd.f32 %v3528, 1.0
  %v3633 = vadd.f32 %v3530, 1.0
  %v3634 = vadd.f32 %v3532, 1.0
  %v3635 = vadd.f32 %v3534, 1.0
  %v3636 = vadd.f32 %v3536, 1.0
  %v3637 = vadd.f32 %v3538, 1.0
  %v3638 = vadd.f32 %v3540, 1.0
  %v3639 = vadd.f32 %v3542, 1.0
  %v3640 = vadd.f32 %v3544, 1.0
  %v3641 = vadd.f32 %v3546, 1.0
  %v3642 = vadd.f32 %v3548, 1.0
  %v3643 = vadd.f32 %v3550, 1.0
  %v3644 = vadd.f32 %v3552, 1.0
  %v3645 = vadd.f32 %v3554, 1.0
  %v3646 = vadd.f32 %v3556, 1.0
  %v3647 = vadd.f32 %v3558, 1.0
  %v3648 = vadd.f32 %v3560, 1.0
  %v3649 = vadd.f32 %v3562, 1.0
  %v3650 = vadd.f32 %v3564, 1.0
  %v3651 = vadd.f32 %v3566, 1.0
  %v3652 = vadd.f32 %v3568, 1.0
  %v3653 = vadd.f32 %v3570, 1.0
  %v3654 = vadd.f32 %v3572, 1.0
  %v3655 = vadd.f32 %v3574, 1.0
  %v3656 = vadd.f32 %v3576, 1.0
  %v3657 = vadd.f32 %v3578, 1.0
  %v3658 = vadd.f32 %v3580, 1.0
  %v3659 = vadd.f32 %v3582, 1.0
  %v3660 = vadd.f32 %v3584, 1.0
  %v3661 = vadd.f32 %v3586, 1.0
  %v3662 = vadd.f32 %v3588, 1.0
  %v3663 = vadd.f32 %v3590, 1.0
  %v3664 = vadd.f32 %v3592, 1.0
  %v3665 = vadd.f32 %v3594, 1.0
  %v3666 = vadd.f32 %v3596, 1.0
  %v3667 = vadd.f32 %v3598, 1.0
  %v3668 = vadd.f32 %v3600, 1.0
  %v3669 = vadd.f32 %v3602, 1.0
  %v3670 = vadd.f32 %v3604, 1.0
  %v3671 = vadd.f32 %v3606, 1.0
  %v3672 = vadd.f32 %v3608, 1.0
  %v3673 = vrcp.pop %v3609
  %v3674 = vmul.f32 1.0, %v3673
  %v3675 = vrcp.pop %v3610
  %v3676 = vmul.f32 1.0, %v3675
  %v3677 = vrcp.pop %v3611
  %v3678 = vmul.f32 1.0, %v3677
  %v3679 = vrcp.pop %v3612
  %v3680 = vmul.f32 1.0, %v3679
  %v3681 = vrcp.pop %v3613
  %v3682 = vmul.f32 1.0, %v3681
  %v3683 = vrcp.pop %v3614
  %v3684 = vmul.f32 1.0, %v3683
  %v3685 = vrcp.pop %v3615
  %v3686 = vmul.f32 1.0, %v3685
  %v3687 = vrcp.pop %v3616
  %v3688 = vmul.f32 1.0, %v3687
  %v3689 = vrcp.pop %v3617
  %v3690 = vmul.f32 1.0, %v3689
  %v3691 = vrcp.pop %v3618
  %v3692 = vmul.f32 1.0, %v3691
  %v3693 = vrcp.pop %v3619
  %v3694 = vmul.f32 1.0, %v3693
  %v3695 = vrcp.pop %v3620
  %v3696 = vmul.f32 1.0, %v3695
  %v3697 = vrcp.pop %v3621
  %v3698 = vmul.f32 1.0, %v3697
  %v3699 = vrcp.pop %v3622
  %v3700 = vmul.f32 1.0, %v3699
  %v3701 = vrcp.pop %v3623
  %v3702 = vmul.f32 1.0, %v3701
  %v3703 = vrcp.pop %v3624
  %v3704 = vmul.f32 1.0, %v3703
  %v3705 = vrcp.pop %v3625
  %v3706 = vmul.f32 1.0, %v3705
  %v3707 = vrcp.pop %v3626
  %v3708 = vmul.f32 1.0, %v3707
  %v3709 = vrcp.pop %v3627
  %v3710 = vmul.f32 1.0, %v3709
  %v3711 = vrcp.pop %v3628
  %v3712 = vmul.f32 1.0, %v3711
  %v3713 = vrcp.pop %v3629
  %v3714 = vmul.f32 1.0, %v3713
  %v3715 = vrcp.pop %v3630
  %v3716 = vmul.f32 1.0, %v3715
  %v3717 = vrcp.pop %v3631
  %v3718 = vmul.f32 1.0, %v3717
  %v3719 = vrcp.pop %v3632
  %v3720 = vmul.f32 1.0, %v3719
  %v3721 = vrcp.pop %v3633
  %v3722 = vmul.f32 1.0, %v3721
  %v3723 = vrcp.pop %v3634
  %v3724 = vmul.f32 1.0, %v3723
  %v3725 = vrcp.pop %v3635
  %v3726 = vmul.f32 1.0, %v3725
  %v3727 = vrcp.pop %v3636
  %v3728 = vmul.f32 1.0, %v3727
  %v3729 = vrcp.pop %v3637
  %v3730 = vmul.f32 1.0, %v3729
  %v3731 = vrcp.pop %v3638
  %v3732 = vmul.f32 1.0, %v3731
  %v3733 = vrcp.pop %v3639
  %v3734 = vmul.f32 1.0, %v3733
  %v3735 = vrcp.pop %v3640
  %v3736 = vmul.f32 1.0, %v3735
  %v3737 = vrcp.pop %v3641
  %v3738 = vmul.f32 1.0, %v3737
  %v3739 = vrcp.pop %v3642
  %v3740 = vmul.f32 1.0, %v3739
  %v3741 = vrcp.pop %v3643
  %v3742 = vmul.f32 1.0, %v3741
  %v3743 = vrcp.pop %v3644
  %v3744 = vmul.f32 1.0, %v3743
  %v3745 = vrcp.pop %v3645
  %v3746 = vmul.f32 1.0, %v3745
  %v3747 = vrcp.pop %v3646
  %v3748 = vmul.f32 1.0, %v3747
  %v3749 = vrcp.pop %v3647
  %v3750 = vmul.f32 1.0, %v3749
  %v3751 = vrcp.pop %v3648
  %v3752 = vmul.f32 1.0, %v3751
  %v3753 = vrcp.pop %v3649
  %v3754 = vmul.f32 1.0, %v3753
  %v3755 = vrcp.pop %v3650
  %v3756 = vmul.f32 1.0, %v3755
  %v3757 = vrcp.pop %v3651
  %v3758 = vmul.f32 1.0, %v3757
  %v3759 = vrcp.pop %v3652
  %v3760 = vmul.f32 1.0, %v3759
  %v3761 = vrcp.pop %v3653
  %v3762 = vmul.f32 1.0, %v3761
  %v3763 = vrcp.pop %v3654
  %v3764 = vmul.f32 1.0, %v3763
  %v3765 = vrcp.pop %v3655
  %v3766 = vmul.f32 1.0, %v3765
  %v3767 = vrcp.pop %v3656
  %v3768 = vmul.f32 1.0, %v3767
  %v3769 = vrcp.pop %v3657
  %v3770 = vmul.f32 1.0, %v3769
  %v3771 = vrcp.pop %v3658
  %v3772 = vmul.f32 1.0, %v3771
  %v3773 = vrcp.pop %v3659
  %v3774 = vmul.f32 1.0, %v3773
  %v3775 = vrcp.pop %v3660
  %v3776 = vmul.f32 1.0, %v3775
  %v3777 = vrcp.pop %v3661
  %v3778 = vmul.f32 1.0, %v3777
  %v3779 = vrcp.pop %v3662
  %v3780 = vmul.f32 1.0, %v3779
  %v3781 = vrcp.pop %v3663
  %v3782 = vmul.f32 1.0, %v3781
  %v3783 = vrcp.pop %v3664
  %v3784 = vmul.f32 1.0, %v3783
  %v3785 = vrcp.pop %v3665
  %v3786 = vmul.f32 1.0, %v3785
  %v3787 = vrcp.pop %v3666
  %v3788 = vmul.f32 1.0, %v3787
  %v3789 = vrcp.pop %v3667
  %v3790 = vmul.f32 1.0, %v3789
  %v3791 = vrcp.pop %v3668
  %v3792 = vmul.f32 1.0, %v3791
  %v3793 = vrcp.pop %v3669
  %v3794 = vmul.f32 1.0, %v3793
  %v3795 = vrcp.pop %v3670
  %v3796 = vmul.f32 1.0, %v3795
  %v3797 = vrcp.pop %v3671
  %v3798 = vmul.f32 1.0, %v3797
  %v3799 = vrcp.pop %v3672
  %v3800 = vmul.f32 1.0, %v3799
  %v3801 = vmul.f32 %v3353, %v3674
  %v3802 = vmul.f32 %v3354, %v3676
  %v3803 = vmul.f32 %v3355, %v3678
  %v3804 = vmul.f32 %v3356, %v3680
  %v3805 = vmul.f32 %v3357, %v3682
  %v3806 = vmul.f32 %v3358, %v3684
  %v3807 = vmul.f32 %v3359, %v3686
  %v3808 = vmul.f32 %v3360, %v3688
  %v3809 = vmul.f32 %v3361, %v3690
  %v3810 = vmul.f32 %v3362, %v3692
  %v3811 = vmul.f32 %v3363, %v3694
  %v3812 = vmul.f32 %v3364, %v3696
  %v3813 = vmul.f32 %v3365, %v3698
  %v3814 = vmul.f32 %v3366, %v3700
  %v3815 = vmul.f32 %v3367, %v3702
  %v3816 = vmul.f32 %v3368, %v3704
  %v3817 = vmul.f32 %v3369, %v3706
  %v3818 = vmul.f32 %v3370, %v3708
  %v3819 = vmul.f32 %v3371, %v3710
  %v3820 = vmul.f32 %v3372, %v3712
  %v3821 = vmul.f32 %v3373, %v3714
  %v3822 = vmul.f32 %v3374, %v3716
  %v3823 = vmul.f32 %v3375, %v3718
  %v3824 = vmul.f32 %v3376, %v3720
  %v3825 = vmul.f32 %v3377, %v3722
  %v3826 = vmul.f32 %v3378, %v3724
  %v3827 = vmul.f32 %v3379, %v3726
  %v3828 = vmul.f32 %v3380, %v3728
  %v3829 = vmul.f32 %v3381, %v3730
  %v3830 = vmul.f32 %v3382, %v3732
  %v3831 = vmul.f32 %v3383, %v3734
  %v3832 = vmul.f32 %v3384, %v3736
  %v3833 = vmul.f32 %v3385, %v3738
  %v3834 = vmul.f32 %v3386, %v3740
  %v3835 = vmul.f32 %v3387, %v3742
  %v3836 = vmul.f32 %v3388, %v3744
  %v3837 = vmul.f32 %v3389, %v3746
  %v3838 = vmul.f32 %v3390, %v3748
  %v3839 = vmul.f32 %v3391, %v3750
  %v3840 = vmul.f32 %v3392, %v3752
  %v3841 = vmul.f32 %v3393, %v3754
  %v3842 = vmul.f32 %v3394, %v3756
  %v3843 = vmul.f32 %v3395, %v3758
  %v3844 = vmul.f32 %v3396, %v3760
  %v3845 = vmul.f32 %v3397, %v3762
  %v3846 = vmul.f32 %v3398, %v3764
  %v3847 = vmul.f32 %v3399, %v3766
  %v3848 = vmul.f32 %v3400, %v3768
  %v3849 = vmul.f32 %v3401, %v3770
  %v3850 = vmul.f32 %v3402, %v3772
  %v3851 = vmul.f32 %v3403, %v3774
  %v3852 = vmul.f32 %v3404, %v3776
  %v3853 = vmul.f32 %v3405, %v3778
  %v3854 = vmul.f32 %v3406, %v3780
  %v3855 = vmul.f32 %v3407, %v3782
  %v3856 = vmul.f32 %v3408, %v3784
  %v3857 = vmul.f32 %v3409, %v3786
  %v3858 = vmul.f32 %v3410, %v3788
  %v3859 = vmul.f32 %v3411, %v3790
  %v3860 = vmul.f32 %v3412, %v3792
  %v3861 = vmul.f32 %v3413, %v3794
  %v3862 = vmul.f32 %v3414, %v3796
  %v3863 = vmul.f32 %v3415, %v3798
  %v3864 = vmul.f32 %v3416, %v3800
  %3865 = vst.msk [vmem:[%s8] sm:$0xff] %vm2383, %v3801
  %3866 = vst.msk [vmem:[%s8 + $0x8] sm:$0xff] %vm2383, %v3802
  %3867 = vst.msk [vmem:[%s8 + $0x10] sm:$0xff] %vm2383, %v3803
  %3868 = vst.msk [vmem:[%s8 + $0x18] sm:$0xff] %vm2383, %v3804
  %3869 = vst.msk [vmem:[%s8 + $0x20] sm:$0xff] %vm2383, %v3805
  %3870 = vst.msk [vmem:[%s8 + $0x28] sm:$0xff] %vm2383, %v3806
  %3871 = vst.msk [vmem:[%s8 + $0x30] sm:$0xff] %vm2383, %v3807
  %3872 = vst.msk [vmem:[%s8 + $0x38] sm:$0xff] %vm2383, %v3808
  %3873 = vst.msk [vmem:[%s8 + $0x40] sm:$0xff] %vm2383, %v3809
  %3874 = vst.msk [vmem:[%s8 + $0x48] sm:$0xff] %vm2383, %v3810
  %3875 = vst.msk [vmem:[%s8 + $0x50] sm:$0xff] %vm2383, %v3811
  %3876 = vst.msk [vmem:[%s8 + $0x58] sm:$0xff] %vm2383, %v3812
  %3877 = vst.msk [vmem:[%s8 + $0x60] sm:$0xff] %vm2383, %v3813
  %3878 = vst.msk [vmem:[%s8 + $0x68] sm:$0xff] %vm2383, %v3814
  %3879 = vst.msk [vmem:[%s8 + $0x70] sm:$0xff] %vm2383, %v3815
  %3880 = vst.msk [vmem:[%s8 + $0x78] sm:$0xff] %vm2383, %v3816
  %3881 = vst.msk [vmem:[%s8 + $0x80] sm:$0xff] %vm2383, %v3817
  %3882 = vst.msk [vmem:[%s8 + $0x88] sm:$0xff] %vm2383, %v3818
  %3883 = vst.msk [vmem:[%s8 + $0x90] sm:$0xff] %vm2383, %v3819
  %3884 = vst.msk [vmem:[%s8 + $0x98] sm:$0xff] %vm2383, %v3820
  %3885 = vst.msk [vmem:[%s8 + $0xa0] sm:$0xff] %vm2383, %v3821
  %3886 = vst.msk [vmem:[%s8 + $0xa8] sm:$0xff] %vm2383, %v3822
  %3887 = vst.msk [vmem:[%s8 + $0xb0] sm:$0xff] %vm2383, %v3823
  %3888 = vst.msk [vmem:[%s8 + $0xb8] sm:$0xff] %vm2383, %v3824
  %3889 = vst.msk [vmem:[%s8 + $0xc0] sm:$0xff] %vm2383, %v3825
  %3890 = vst.msk [vmem:[%s8 + $0xc8] sm:$0xff] %vm2383, %v3826
  %3891 = vst.msk [vmem:[%s8 + $0xd0] sm:$0xff] %vm2383, %v3827
  %3892 = vst.msk [vmem:[%s8 + $0xd8] sm:$0xff] %vm2383, %v3828
  %3893 = vst.msk [vmem:[%s8 + $0xe0] sm:$0xff] %vm2383, %v3829
  %3894 = vst.msk [vmem:[%s8 + $0xe8] sm:$0xff] %vm2383, %v3830
  %3895 = vst.msk [vmem:[%s8 + $0xf0] sm:$0xff] %vm2383, %v3831
  %3896 = vst.msk [vmem:[%s8 + $0xf8] sm:$0xff] %vm2383, %v3832
  %3897 = vst.msk [vmem:[%s8 + $0x100] sm:$0xff] %vm2383, %v3833
  %3898 = vst.msk [vmem:[%s8 + $0x108] sm:$0xff] %vm2383, %v3834
  %3899 = vst.msk [vmem:[%s8 + $0x110] sm:$0xff] %vm2383, %v3835
  %3900 = vst.msk [vmem:[%s8 + $0x118] sm:$0xff] %vm2383, %v3836
  %3901 = vst.msk [vmem:[%s8 + $0x120] sm:$0xff] %vm2383, %v3837
  %3902 = vst.msk [vmem:[%s8 + $0x128] sm:$0xff] %vm2383, %v3838
  %3903 = vst.msk [vmem:[%s8 + $0x130] sm:$0xff] %vm2383, %v3839
  %3904 = vst.msk [vmem:[%s8 + $0x138] sm:$0xff] %vm2383, %v3840
  %3905 = vst.msk [vmem:[%s8 + $0x140] sm:$0xff] %vm2383, %v3841
  %3906 = vst.msk [vmem:[%s8 + $0x148] sm:$0xff] %vm2383, %v3842
  %3907 = vst.msk [vmem:[%s8 + $0x150] sm:$0xff] %vm2383, %v3843
  %3908 = vst.msk [vmem:[%s8 + $0x158] sm:$0xff] %vm2383, %v3844
  %3909 = vst.msk [vmem:[%s8 + $0x160] sm:$0xff] %vm2383, %v3845
  %3910 = vst.msk [vmem:[%s8 + $0x168] sm:$0xff] %vm2383, %v3846
  %3911 = vst.msk [vmem:[%s8 + $0x170] sm:$0xff] %vm2383, %v3847
  %3912 = vst.msk [vmem:[%s8 + $0x178] sm:$0xff] %vm2383, %v3848
  %3913 = vst.msk [vmem:[%s8 + $0x180] sm:$0xff] %vm2383, %v3849
  %3914 = vst.msk [vmem:[%s8 + $0x188] sm:$0xff] %vm2383, %v3850
  %3915 = vst.msk [vmem:[%s8 + $0x190] sm:$0xff] %vm2383, %v3851
  %3916 = vst.msk [vmem:[%s8 + $0x198] sm:$0xff] %vm2383, %v3852
  %3917 = vst.msk [vmem:[%s8 + $0x1a0] sm:$0xff] %vm2383, %v3853
  %3918 = vst.msk [vmem:[%s8 + $0x1a8] sm:$0xff] %vm2383, %v3854
  %3919 = vst.msk [vmem:[%s8 + $0x1b0] sm:$0xff] %vm2383, %v3855
  %3920 = vst.msk [vmem:[%s8 + $0x1b8] sm:$0xff] %vm2383, %v3856
  %3921 = vst.msk [vmem:[%s8 + $0x1c0] sm:$0xff] %vm2383, %v3857
  %3922 = vst.msk [vmem:[%s8 + $0x1c8] sm:$0xff] %vm2383, %v3858
  %3923 = vst.msk [vmem:[%s8 + $0x1d0] sm:$0xff] %vm2383, %v3859
  %3924 = vst.msk [vmem:[%s8 + $0x1d8] sm:$0xff] %vm2383, %v3860
  %3925 = vst.msk [vmem:[%s8 + $0x1e0] sm:$0xff] %vm2383, %v3861
  %3926 = vst.msk [vmem:[%s8 + $0x1e8] sm:$0xff] %vm2383, %v3862
  %3927 = vst.msk [vmem:[%s8 + $0x1f0] sm:$0xff] %vm2383, %v3863
  %3928 = vst.msk [vmem:[%s8 + $0x1f8] sm:$0xff] %vm2383, %v3864
  // Predicated region
  $region34: #{embedding_block_forward.1} parent=0 // pred_check
    _
  $region35: #{embedding_block_forward.1} parent=0 // pred_check_branch
    %3930 = sbr.rel (0) target = $region37
  $region36: #{embedding_block_forward.1} parent=0 // pred_region
    _
  $region37: #{embedding_block_forward.1} parent=0 // pred_fallthru
    _
  // Predicated region
  $region38: #{embedding_block_forward.1} parent=0 // pred_check
    _
  $region39: #{embedding_block_forward.1} parent=0 // pred_check_branch
    %3932 = sbr.rel (0) target = $region41
  $region40: #{embedding_block_forward.1} parent=0 // pred_region
    _
  $region41: #{embedding_block_forward.1} parent=0 // pred_fallthru
    _

</llo_original>
